<compile_context>
chip_gen: v5e
topology: v5e:2x2
jax: 0.10.0
libtpu: 0.0.40
codegen_flags: <defaults>
</compile_context>

<pallas_src>
import functools
import math

import jax
import jax.numpy as jnp
from jax import lax
from jax.experimental import pallas as pl
from jax.experimental.pallas import tpu as pltpu

LN_EPS = 1e-5


def _layernorm(x, gamma, beta):
    # PyTorch nn.LayerNorm: biased variance, eps inside sqrt.  f32 math.
    mean = jnp.mean(x, axis=-1, keepdims=True)
    var = jnp.mean((x - mean) ** 2, axis=-1, keepdims=True)
    return (x - mean) * lax.rsqrt(var + LN_EPS) * gamma + beta


def _gelu_exact(x):
    # PyTorch nn.GELU() default = exact erf form.
    return 0.5 * x * (1.0 + lax.erf(x * (1.0 / math.sqrt(2.0))))


def _transformer_kernel(
    x_full_ref, x_q_ref,
    an_g_ref, an_b_ref,
    wq_ref, bq_ref, wk_ref, bk_ref, wv_ref, bv_ref,
    wout_ref, bout_ref,
    fn_g_ref, fn_b_ref, w1_ref, b1_ref, w2_ref, b2_ref,
    fin_g_ref, fin_b_ref,
    o_ref,
    *, heads, scale,
):
    x_full = x_full_ref[0]   # [S, D]  f32 — full sequence (K/V path)
    x_q = x_q_ref[0]         # [TQ, D] f32 — this grid step's query tile

    # ---------------- Attn block (pre-norm + residual) ----------------
    xn_full = _layernorm(x_full, an_g_ref[0], an_b_ref[0])
    xn_q = _layernorm(x_q, an_g_ref[0], an_b_ref[0])
    xn_full_bf = xn_full.astype(jnp.bfloat16)
    xn_q_bf = xn_q.astype(jnp.bfloat16)

    # Accumulate the output projection per head (no concat, no head_outs list).
    acc = jnp.zeros(x_q.shape, jnp.float32)           # [TQ, D]
    for h in range(heads):                            # static unroll
        qh = jnp.dot(xn_q_bf, wq_ref[h],
                     preferred_element_type=jnp.float32) + bq_ref[h]     # [TQ, hd]
        kh = jnp.dot(xn_full_bf, wk_ref[h],
                     preferred_element_type=jnp.float32) + bk_ref[h]     # [S, hd]
        vh = jnp.dot(xn_full_bf, wv_ref[h],
                     preferred_element_type=jnp.float32) + bv_ref[h]     # [S, hd]
        # scores = q @ k^T without an explicit transpose (contract dim 1 of both)
        s = lax.dot_general(
            qh.astype(jnp.bfloat16), kh.astype(jnp.bfloat16),
            (((1,), (1,)), ((), ())),
            preferred_element_type=jnp.float32) * scale                  # [TQ, S]
        s = s - jnp.max(s, axis=-1, keepdims=True)
        e = jnp.exp(s)
        p = e * pl.reciprocal(jnp.sum(e, axis=-1, keepdims=True), approx=True)
        oh = jnp.dot(p.astype(jnp.bfloat16), vh.astype(jnp.bfloat16),
                     preferred_element_type=jnp.float32)                 # [TQ, hd]
        acc = acc + jnp.dot(oh.astype(jnp.bfloat16), wout_ref[h],
                            preferred_element_type=jnp.float32)          # [TQ, D]

    x1 = acc + bout_ref[0] + x_q

    # ---------------- FFN block (pre-norm + residual) ----------------
    x1n = _layernorm(x1, fn_g_ref[0], fn_b_ref[0])
    h1 = jnp.dot(x1n.astype(jnp.bfloat16), w1_ref[...],
                 preferred_element_type=jnp.float32) + b1_ref[0]         # [TQ, hidden]
    h1 = _gelu_exact(h1)
    h2 = jnp.dot(h1.astype(jnp.bfloat16), w2_ref[...],
                 preferred_element_type=jnp.float32) + b2_ref[0]         # [TQ, D]
    x2 = h2 + x1

    # ---------------- Final LayerNorm ----------------
    o_ref[0] = _layernorm(x2, fin_g_ref[0], fin_b_ref[0])


def _pick_tq(S):
    """Query-tile size: multiple of 8, divides S, ≤128."""
    if S % 128 == 0 and S > 128:
        return 128
    for tq in (64, 32, 16, 8):
        if tq < S and S % tq == 0:
            return tq
    return S


def transformer_pallas(x_nchw, params, *, heads, head_dim):
    """x_nchw: [B, C, H, W] float32.  Returns [B, C, H, W] float32."""
    B, C, H, W = x_nchw.shape
    S, D = H * W, C
    inner = heads * head_dim
    scale = head_dim ** (-0.5)
    tq = _pick_tq(S)
    n_q = S // tq

    # rearrange 'b c h w -> b (h w) c'
    x_tok = jnp.transpose(x_nchw.reshape(B, C, S), (0, 2, 1))  # [B, S, D] f32

    # --- host-side (free) weight re-layout: per-head, bf16 for matmul inputs ---
    wqkv = params["wqkv"]       # [D, 3*inner]  (in, out)
    bqkv = params["bqkv"][0]    # [3*inner]

    def split_per_head(idx):
        wh = wqkv[:, idx * inner:(idx + 1) * inner].reshape(D, heads, head_dim)
        wh = jnp.transpose(wh, (1, 0, 2)).astype(jnp.bfloat16)        # [heads, D, hd]
        bh = bqkv[idx * inner:(idx + 1) * inner].reshape(heads, 1, head_dim)  # f32
        return wh, bh

    wq, bq = split_per_head(0)
    wk, bk = split_per_head(1)
    wv, bv = split_per_head(2)
    wout = params["wout"].reshape(heads, head_dim, D).astype(jnp.bfloat16)  # [heads, hd, D]
    w1 = params["w1"].astype(jnp.bfloat16)
    w2 = params["w2"].astype(jnp.bfloat16)

    weight_args = (
        params["attn_norm_g"], params["attn_norm_b"],
        wq, bq, wk, bk, wv, bv,
        wout, params["bout"],
        params["ffn_norm_g"], params["ffn_norm_b"],
        w1, params["b1"], w2, params["b2"],
        params["final_norm_g"], params["final_norm_b"],
    )

    def full_spec(shape):
        nd = len(shape)
        return pl.BlockSpec(shape, lambda b, q, _nd=nd: (0,) * _nd)

    in_specs = [
        pl.BlockSpec((1, S, D), lambda b, q: (b, 0, 0)),   # full sequence (K/V)
        pl.BlockSpec((1, tq, D), lambda b, q: (b, q, 0)),  # query tile
    ] + [full_spec(w.shape) for w in weight_args]

    kernel = functools.partial(_transformer_kernel, heads=heads, scale=scale)

    out_tok = pl.pallas_call(
        kernel,
        out_shape=jax.ShapeDtypeStruct((B, S, D), jnp.float32),
        grid_spec=pltpu.PrefetchScalarGridSpec(
            num_scalar_prefetch=0,
            grid=(B, n_q),
            in_specs=in_specs,
            out_specs=pl.BlockSpec((1, tq, D), lambda b, q: (b, q, 0)),
        ),
        compiler_params=pltpu.CompilerParams(
            dimension_semantics=("parallel", "parallel"),
            vmem_limit_bytes=32 * 1024 * 1024,
        ),
    )(x_tok, x_tok, *weight_args)

    # rearrange 'b (h w) c -> b c h w'
    return jnp.transpose(out_tok, (0, 2, 1)).reshape(B, C, H, W)


def make_params(key, dim, heads, head_dim, mlp_ratio):
    """Deterministic synthetic parameter init (weights stored as [in, out], f32)."""
    inner = heads * head_dim
    hidden = int(dim * mlp_ratio)
    ks = jax.random.split(key, 4)

    def lin(k, fan_in, fan_out):
        kw, kb = jax.random.split(k)
        bound = 1.0 / math.sqrt(fan_in)
        w = jax.random.uniform(kw, (fan_in, fan_out), jnp.float32, -bound, bound)
        b = jax.random.uniform(kb, (1, fan_out), jnp.float32, -bound, bound)
        return w, b

    wqkv, bqkv = lin(ks[0], dim, 3 * inner)
    wout, bout = lin(ks[1], inner, dim)
    w1, b1 = lin(ks[2], dim, hidden)
    w2, b2 = lin(ks[3], hidden, dim)

    ones = lambda n: jnp.ones((1, n), jnp.float32)
    zeros = lambda n: jnp.zeros((1, n), jnp.float32)

    return {
        "attn_norm_g": ones(dim), "attn_norm_b": zeros(dim),
        "wqkv": wqkv, "bqkv": bqkv,
        "wout": wout, "bout": bout,
        "ffn_norm_g": ones(dim), "ffn_norm_b": zeros(dim),
        "w1": w1, "b1": b1,
        "w2": w2, "b2": b2,
        "final_norm_g": ones(dim), "final_norm_b": zeros(dim),
    }


def transformer_ref(x_nchw, params, *, heads, head_dim):
    """Pure-JAX f32 reference (PyTorch semantics) for correctness check."""
    B, C, H, W = x_nchw.shape
    S = H * W
    inner = heads * head_dim
    scale = head_dim ** (-0.5)
    x = jnp.transpose(x_nchw.reshape(B, C, S), (0, 2, 1))

    xn = _layernorm(x, params["attn_norm_g"][0], params["attn_norm_b"][0])
    qkv = xn @ params["wqkv"] + params["bqkv"][0]
    q, k, v = jnp.split(qkv, 3, axis=-1)
    rearr = lambda t: jnp.transpose(t.reshape(B, S, heads, head_dim), (0, 2, 1, 3))
    q, k, v = rearr(q), rearr(k), rearr(v)
    s = jnp.einsum("bnsd,bntd->bnst", q, k) * scale
    p = jax.nn.softmax(s, axis=-1)
    o = jnp.einsum("bnst,bntd->bnsd", p, v)
    o = jnp.transpose(o, (0, 2, 1, 3)).reshape(B, S, inner)
    o = o @ params["wout"] + params["bout"][0]
    x1 = o + x

    x1n = _layernorm(x1, params["ffn_norm_g"][0], params["ffn_norm_b"][0])
    h = _gelu_exact(x1n @ params["w1"] + params["b1"][0])
    x2 = h @ params["w2"] + params["b2"][0] + x1

    y = _layernorm(x2, params["final_norm_g"][0], params["final_norm_b"][0])
    return jnp.transpose(y, (0, 2, 1)).reshape(B, C, H, W)


if __name__ == "__main__":
    # Small but lane-dense config: dim = C = 128, seq = H*W = 64, inner = 128.
    B, C, H, W = 2, 128, 8, 8
    heads, head_dim = 2, 64
    mlp_ratio = 2.0               # hidden = 256

    key = jax.random.PRNGKey(0)
    kx, kp = jax.random.split(key)
    x = jax.random.normal(kx, (B, C, H, W), jnp.float32)
    params = make_params(kp, C, heads, head_dim, mlp_ratio)

    out = jax.block_until_ready(
        transformer_pallas(x, params, heads=heads, head_dim=head_dim))
    ref = jax.block_until_ready(
        transformer_ref(x, params, heads=heads, head_dim=head_dim))

    assert out.shape == (B, C, H, W)
    err = float(jnp.max(jnp.abs(out - ref)))
    # bf16 matmul inputs + approx reciprocal vs pure-f32 reference.
    assert err < 5e-2, f"mismatch vs reference (max abs err {err})"

    print("KERNEL_OK")
</pallas_src>

<mosaic_0001>
module attributes {stable_mosaic.version = 11 : i64} {
  func.func @_transformer_kernel(%arg0: i32, %arg1: i32, %arg2: memref<1x64x128xf32, #tpu.memory_space<vmem>>, %arg3: memref<1x32x128xf32, #tpu.memory_space<vmem>>, %arg4: memref<1x128xf32, #tpu.memory_space<vmem>>, %arg5: memref<1x128xf32, #tpu.memory_space<vmem>>, %arg6: memref<2x128x64xbf16, #tpu.memory_space<vmem>>, %arg7: memref<2x1x64xf32, #tpu.memory_space<vmem>>, %arg8: memref<2x128x64xbf16, #tpu.memory_space<vmem>>, %arg9: memref<2x1x64xf32, #tpu.memory_space<vmem>>, %arg10: memref<2x128x64xbf16, #tpu.memory_space<vmem>>, %arg11: memref<2x1x64xf32, #tpu.memory_space<vmem>>, %arg12: memref<2x64x128xbf16, #tpu.memory_space<vmem>>, %arg13: memref<1x128xf32, #tpu.memory_space<vmem>>, %arg14: memref<1x128xf32, #tpu.memory_space<vmem>>, %arg15: memref<1x128xf32, #tpu.memory_space<vmem>>, %arg16: memref<128x256xbf16, #tpu.memory_space<vmem>>, %arg17: memref<1x256xf32, #tpu.memory_space<vmem>>, %arg18: memref<256x128xbf16, #tpu.memory_space<vmem>>, %arg19: memref<1x128xf32, #tpu.memory_space<vmem>>, %arg20: memref<1x128xf32, #tpu.memory_space<vmem>>, %arg21: memref<1x128xf32, #tpu.memory_space<vmem>>, %arg22: memref<1x32x128xf32, #tpu.memory_space<vmem>>) attributes {dimension_semantics = [#tpu.dimension_semantics<parallel>, #tpu.dimension_semantics<parallel>], iteration_bounds = array<i64: 2, 2>, scalar_prefetch = 0 : i64, scratch_operands = 0 : i64, tpu.core_type = #tpu.core_type<tc>, window_params = [{transform_indices = @transform_0, window_bounds = array<i64: 1, 64, 128>}, {transform_indices = @transform_1, window_bounds = array<i64: 1, 32, 128>}, {pipeline_mode = #tpu.pipeline_mode<synchronous>, transform_indices = @transform_2, window_bounds = array<i64: 1, 128>}, {pipeline_mode = #tpu.pipeline_mode<synchronous>, transform_indices = @transform_3, window_bounds = array<i64: 1, 128>}, {pipeline_mode = #tpu.pipeline_mode<synchronous>, transform_indices = @transform_4, window_bounds = array<i64: 2, 128, 64>}, {pipeline_mode = #tpu.pipeline_mode<synchronous>, transform_indices = @transform_5, window_bounds = array<i64: 2, 1, 64>}, {pipeline_mode = #tpu.pipeline_mode<synchronous>, transform_indices = @transform_6, window_bounds = array<i64: 2, 128, 64>}, {pipeline_mode = #tpu.pipeline_mode<synchronous>, transform_indices = @transform_7, window_bounds = array<i64: 2, 1, 64>}, {pipeline_mode = #tpu.pipeline_mode<synchronous>, transform_indices = @transform_8, window_bounds = array<i64: 2, 128, 64>}, {pipeline_mode = #tpu.pipeline_mode<synchronous>, transform_indices = @transform_9, window_bounds = array<i64: 2, 1, 64>}, {pipeline_mode = #tpu.pipeline_mode<synchronous>, transform_indices = @transform_10, window_bounds = array<i64: 2, 64, 128>}, {pipeline_mode = #tpu.pipeline_mode<synchronous>, transform_indices = @transform_11, window_bounds = array<i64: 1, 128>}, {pipeline_mode = #tpu.pipeline_mode<synchronous>, transform_indices = @transform_12, window_bounds = array<i64: 1, 128>}, {pipeline_mode = #tpu.pipeline_mode<synchronous>, transform_indices = @transform_13, window_bounds = array<i64: 1, 128>}, {pipeline_mode = #tpu.pipeline_mode<synchronous>, transform_indices = @transform_14, window_bounds = array<i64: 128, 256>}, {pipeline_mode = #tpu.pipeline_mode<synchronous>, transform_indices = @transform_15, window_bounds = array<i64: 1, 256>}, {pipeline_mode = #tpu.pipeline_mode<synchronous>, transform_indices = @transform_16, window_bounds = array<i64: 256, 128>}, {pipeline_mode = #tpu.pipeline_mode<synchronous>, transform_indices = @transform_17, window_bounds = array<i64: 1, 128>}, {pipeline_mode = #tpu.pipeline_mode<synchronous>, transform_indices = @transform_18, window_bounds = array<i64: 1, 128>}, {pipeline_mode = #tpu.pipeline_mode<synchronous>, transform_indices = @transform_19, window_bounds = array<i64: 1, 128>}, {transform_indices = @transform_20, window_bounds = array<i64: 1, 32, 128>}]} {
    %c0 = arith.constant 0 : index
    %c0_0 = arith.constant 0 : index
    %c0_1 = arith.constant 0 : index
    %0 = vector.load %arg2[%c0, %c0_0, %c0_1] : memref<1x64x128xf32, #tpu.memory_space<vmem>>, vector<1x64x128xf32>
    %1 = vector.shape_cast %0 : vector<1x64x128xf32> to vector<64x128xf32>
    %c0_2 = arith.constant 0 : index
    %c0_3 = arith.constant 0 : index
    %c0_4 = arith.constant 0 : index
    %2 = vector.load %arg3[%c0_2, %c0_3, %c0_4] : memref<1x32x128xf32, #tpu.memory_space<vmem>>, vector<1x32x128xf32>
    %3 = vector.shape_cast %2 : vector<1x32x128xf32> to vector<32x128xf32>
    %c0_5 = arith.constant 0 : index
    %c0_6 = arith.constant 0 : index
    %4 = vector.load %arg4[%c0_5, %c0_6] : memref<1x128xf32, #tpu.memory_space<vmem>>, vector<1x128xf32>
    %5 = vector.shape_cast %4 : vector<1x128xf32> to vector<128xf32>
    %c0_7 = arith.constant 0 : index
    %c0_8 = arith.constant 0 : index
    %6 = vector.load %arg5[%c0_7, %c0_8] : memref<1x128xf32, #tpu.memory_space<vmem>>, vector<1x128xf32>
    %7 = vector.shape_cast %6 : vector<1x128xf32> to vector<128xf32>
    %cst = arith.constant dense<0.000000e+00> : vector<64xf32>
    %8 = vector.multi_reduction <add>, %1, %cst [1] : vector<64x128xf32> to vector<64xf32>
    %9 = vector.shape_cast %8 : vector<64xf32> to vector<64x1xf32>
    %cst_9 = arith.constant 1.280000e+02 : f32
    %10 = vector.broadcast %cst_9 : f32 to vector<64x1xf32>
    %11 = arith.divf %9, %10 : vector<64x1xf32>
    %12 = vector.broadcast %11 : vector<64x1xf32> to vector<64x128xf32>
    %13 = arith.subf %1, %12 : vector<64x128xf32>
    %14 = arith.mulf %13, %13 : vector<64x128xf32>
    %cst_10 = arith.constant dense<0.000000e+00> : vector<64xf32>
    %15 = vector.multi_reduction <add>, %14, %cst_10 [1] : vector<64x128xf32> to vector<64xf32>
    %16 = vector.shape_cast %15 : vector<64xf32> to vector<64x1xf32>
    %cst_11 = arith.constant 1.280000e+02 : f32
    %17 = vector.broadcast %cst_11 : f32 to vector<64x1xf32>
    %18 = arith.divf %16, %17 : vector<64x1xf32>
    %19 = vector.broadcast %11 : vector<64x1xf32> to vector<64x128xf32>
    %20 = arith.subf %1, %19 : vector<64x128xf32>
    %cst_12 = arith.constant 9.99999974E-6 : f32
    %21 = vector.broadcast %cst_12 : f32 to vector<64x1xf32>
    %22 = arith.addf %18, %21 : vector<64x1xf32>
    %23 = math.rsqrt %22 : vector<64x1xf32>
    %24 = vector.broadcast %23 : vector<64x1xf32> to vector<64x128xf32>
    %25 = arith.mulf %20, %24 : vector<64x128xf32>
    %26 = vector.shape_cast %5 : vector<128xf32> to vector<1x128xf32>
    %27 = vector.broadcast %26 : vector<1x128xf32> to vector<64x128xf32>
    %28 = arith.mulf %25, %27 : vector<64x128xf32>
    %29 = vector.shape_cast %7 : vector<128xf32> to vector<1x128xf32>
    %30 = vector.broadcast %29 : vector<1x128xf32> to vector<64x128xf32>
    %31 = arith.addf %28, %30 : vector<64x128xf32>
    %c0_13 = arith.constant 0 : index
    %c0_14 = arith.constant 0 : index
    %32 = vector.load %arg4[%c0_13, %c0_14] : memref<1x128xf32, #tpu.memory_space<vmem>>, vector<1x128xf32>
    %33 = vector.shape_cast %32 : vector<1x128xf32> to vector<128xf32>
    %c0_15 = arith.constant 0 : index
    %c0_16 = arith.constant 0 : index
    %34 = vector.load %arg5[%c0_15, %c0_16] : memref<1x128xf32, #tpu.memory_space<vmem>>, vector<1x128xf32>
    %35 = vector.shape_cast %34 : vector<1x128xf32> to vector<128xf32>
    %cst_17 = arith.constant dense<0.000000e+00> : vector<32xf32>
    %36 = vector.multi_reduction <add>, %3, %cst_17 [1] : vector<32x128xf32> to vector<32xf32>
    %37 = vector.shape_cast %36 : vector<32xf32> to vector<32x1xf32>
    %cst_18 = arith.constant 1.280000e+02 : f32
    %38 = vector.broadcast %cst_18 : f32 to vector<32x1xf32>
    %39 = arith.divf %37, %38 : vector<32x1xf32>
    %40 = vector.broadcast %39 : vector<32x1xf32> to vector<32x128xf32>
    %41 = arith.subf %3, %40 : vector<32x128xf32>
    %42 = arith.mulf %41, %41 : vector<32x128xf32>
    %cst_19 = arith.constant dense<0.000000e+00> : vector<32xf32>
    %43 = vector.multi_reduction <add>, %42, %cst_19 [1] : vector<32x128xf32> to vector<32xf32>
    %44 = vector.shape_cast %43 : vector<32xf32> to vector<32x1xf32>
    %cst_20 = arith.constant 1.280000e+02 : f32
    %45 = vector.broadcast %cst_20 : f32 to vector<32x1xf32>
    %46 = arith.divf %44, %45 : vector<32x1xf32>
    %47 = vector.broadcast %39 : vector<32x1xf32> to vector<32x128xf32>
    %48 = arith.subf %3, %47 : vector<32x128xf32>
    %cst_21 = arith.constant 9.99999974E-6 : f32
    %49 = vector.broadcast %cst_21 : f32 to vector<32x1xf32>
    %50 = arith.addf %46, %49 : vector<32x1xf32>
    %51 = math.rsqrt %50 : vector<32x1xf32>
    %52 = vector.broadcast %51 : vector<32x1xf32> to vector<32x128xf32>
    %53 = arith.mulf %48, %52 : vector<32x128xf32>
    %54 = vector.shape_cast %33 : vector<128xf32> to vector<1x128xf32>
    %55 = vector.broadcast %54 : vector<1x128xf32> to vector<32x128xf32>
    %56 = arith.mulf %53, %55 : vector<32x128xf32>
    %57 = vector.shape_cast %35 : vector<128xf32> to vector<1x128xf32>
    %58 = vector.broadcast %57 : vector<1x128xf32> to vector<32x128xf32>
    %59 = arith.addf %56, %58 : vector<32x128xf32>
    %60 = arith.truncf %31 : vector<64x128xf32> to vector<64x128xbf16>
    %61 = arith.truncf %59 : vector<32x128xf32> to vector<32x128xbf16>
    %cst_22 = arith.constant 0.000000e+00 : f32
    %62 = vector.broadcast %cst_22 : f32 to vector<32x128xf32>
    %c0_23 = arith.constant 0 : index
    %c0_24 = arith.constant 0 : index
    %c0_25 = arith.constant 0 : index
    %63 = vector.load %arg6[%c0_23, %c0_24, %c0_25] : memref<2x128x64xbf16, #tpu.memory_space<vmem>>, vector<1x128x64xbf16>
    %64 = vector.shape_cast %63 : vector<1x128x64xbf16> to vector<128x64xbf16>
    %cst_26 = arith.constant dense<0.000000e+00> : vector<32x64xf32>
    %65 = tpu.matmul %61, %64, %cst_26 {dimension_numbers = #tpu.dot_dimension_numbers<[1], [0], [0], [1], [0, 0, 1, 1], [], []>} : vector<32x128xbf16>, vector<128x64xbf16>, vector<32x64xf32> -> vector<32x64xf32>
    %c0_27 = arith.constant 0 : index
    %c0_28 = arith.constant 0 : index
    %c0_29 = arith.constant 0 : index
    %66 = vector.load %arg7[%c0_27, %c0_28, %c0_29] : memref<2x1x64xf32, #tpu.memory_space<vmem>>, vector<1x1x64xf32>
    %67 = vector.shape_cast %66 : vector<1x1x64xf32> to vector<1x64xf32>
    %68 = vector.broadcast %67 : vector<1x64xf32> to vector<32x64xf32>
    %69 = arith.addf %65, %68 : vector<32x64xf32>
    %c0_30 = arith.constant 0 : index
    %c0_31 = arith.constant 0 : index
    %c0_32 = arith.constant 0 : index
    %70 = vector.load %arg8[%c0_30, %c0_31, %c0_32] : memref<2x128x64xbf16, #tpu.memory_space<vmem>>, vector<1x128x64xbf16>
    %71 = vector.shape_cast %70 : vector<1x128x64xbf16> to vector<128x64xbf16>
    %cst_33 = arith.constant dense<0.000000e+00> : vector<64x64xf32>
    %72 = tpu.matmul %60, %71, %cst_33 {dimension_numbers = #tpu.dot_dimension_numbers<[1], [0], [0], [1], [0, 0, 1, 1], [], []>} : vector<64x128xbf16>, vector<128x64xbf16>, vector<64x64xf32> -> vector<64x64xf32>
    %c0_34 = arith.constant 0 : index
    %c0_35 = arith.constant 0 : index
    %c0_36 = arith.constant 0 : index
    %73 = vector.load %arg9[%c0_34, %c0_35, %c0_36] : memref<2x1x64xf32, #tpu.memory_space<vmem>>, vector<1x1x64xf32>
    %74 = vector.shape_cast %73 : vector<1x1x64xf32> to vector<1x64xf32>
    %75 = vector.broadcast %74 : vector<1x64xf32> to vector<64x64xf32>
    %76 = arith.addf %72, %75 : vector<64x64xf32>
    %c0_37 = arith.constant 0 : index
    %c0_38 = arith.constant 0 : index
    %c0_39 = arith.constant 0 : index
    %77 = vector.load %arg10[%c0_37, %c0_38, %c0_39] : memref<2x128x64xbf16, #tpu.memory_space<vmem>>, vector<1x128x64xbf16>
    %78 = vector.shape_cast %77 : vector<1x128x64xbf16> to vector<128x64xbf16>
    %cst_40 = arith.constant dense<0.000000e+00> : vector<64x64xf32>
    %79 = tpu.matmul %60, %78, %cst_40 {dimension_numbers = #tpu.dot_dimension_numbers<[1], [0], [0], [1], [0, 0, 1, 1], [], []>} : vector<64x128xbf16>, vector<128x64xbf16>, vector<64x64xf32> -> vector<64x64xf32>
    %c0_41 = arith.constant 0 : index
    %c0_42 = arith.constant 0 : index
    %c0_43 = arith.constant 0 : index
    %80 = vector.load %arg11[%c0_41, %c0_42, %c0_43] : memref<2x1x64xf32, #tpu.memory_space<vmem>>, vector<1x1x64xf32>
    %81 = vector.shape_cast %80 : vector<1x1x64xf32> to vector<1x64xf32>
    %82 = vector.broadcast %81 : vector<1x64xf32> to vector<64x64xf32>
    %83 = arith.addf %79, %82 : vector<64x64xf32>
    %84 = arith.truncf %69 : vector<32x64xf32> to vector<32x64xbf16>
    %85 = arith.truncf %76 : vector<64x64xf32> to vector<64x64xbf16>
    %cst_44 = arith.constant dense<0.000000e+00> : vector<32x64xf32>
    %86 = tpu.matmul %84, %85, %cst_44 {dimension_numbers = #tpu.dot_dimension_numbers<[1], [1], [0], [0], [0, 0, 1, 0], [], []>} : vector<32x64xbf16>, vector<64x64xbf16>, vector<32x64xf32> -> vector<32x64xf32>
    %cst_45 = arith.constant 1.250000e-01 : f32
    %87 = vector.broadcast %cst_45 : f32 to vector<32x64xf32>
    %88 = arith.mulf %86, %87 : vector<32x64xf32>
    %cst_46 = arith.constant dense<0xFF800000> : vector<32xf32>
    %89 = vector.multi_reduction <maximumf>, %88, %cst_46 [1] : vector<32x64xf32> to vector<32xf32>
    %90 = vector.shape_cast %89 : vector<32xf32> to vector<32x1xf32>
    %91 = vector.broadcast %90 : vector<32x1xf32> to vector<32x64xf32>
    %92 = arith.subf %88, %91 : vector<32x64xf32>
    %93 = math.exp %92 : vector<32x64xf32>
    %cst_47 = arith.constant dense<0.000000e+00> : vector<32xf32>
    %94 = vector.multi_reduction <add>, %93, %cst_47 [1] : vector<32x64xf32> to vector<32xf32>
    %95 = vector.shape_cast %94 : vector<32xf32> to vector<32x1xf32>
    %96 = tpu.reciprocal %95 {approx = true} : vector<32x1xf32> -> vector<32x1xf32>
    %97 = vector.broadcast %96 : vector<32x1xf32> to vector<32x64xf32>
    %98 = arith.mulf %93, %97 : vector<32x64xf32>
    %99 = arith.truncf %98 : vector<32x64xf32> to vector<32x64xbf16>
    %100 = arith.truncf %83 : vector<64x64xf32> to vector<64x64xbf16>
    %cst_48 = arith.constant dense<0.000000e+00> : vector<32x64xf32>
    %101 = tpu.matmul %99, %100, %cst_48 {dimension_numbers = #tpu.dot_dimension_numbers<[1], [0], [0], [1], [0, 0, 1, 1], [], []>} : vector<32x64xbf16>, vector<64x64xbf16>, vector<32x64xf32> -> vector<32x64xf32>
    %102 = arith.truncf %101 : vector<32x64xf32> to vector<32x64xbf16>
    %c0_49 = arith.constant 0 : index
    %c0_50 = arith.constant 0 : index
    %c0_51 = arith.constant 0 : index
    %103 = vector.load %arg12[%c0_49, %c0_50, %c0_51] : memref<2x64x128xbf16, #tpu.memory_space<vmem>>, vector<1x64x128xbf16>
    %104 = vector.shape_cast %103 : vector<1x64x128xbf16> to vector<64x128xbf16>
    %cst_52 = arith.constant dense<0.000000e+00> : vector<32x128xf32>
    %105 = tpu.matmul %102, %104, %cst_52 {dimension_numbers = #tpu.dot_dimension_numbers<[1], [0], [0], [1], [0, 0, 1, 1], [], []>} : vector<32x64xbf16>, vector<64x128xbf16>, vector<32x128xf32> -> vector<32x128xf32>
    %106 = arith.addf %62, %105 : vector<32x128xf32>
    %c1 = arith.constant 1 : index
    %c0_53 = arith.constant 0 : index
    %c0_54 = arith.constant 0 : index
    %107 = vector.load %arg6[%c1, %c0_53, %c0_54] : memref<2x128x64xbf16, #tpu.memory_space<vmem>>, vector<1x128x64xbf16>
    %108 = vector.shape_cast %107 : vector<1x128x64xbf16> to vector<128x64xbf16>
    %cst_55 = arith.constant dense<0.000000e+00> : vector<32x64xf32>
    %109 = tpu.matmul %61, %108, %cst_55 {dimension_numbers = #tpu.dot_dimension_numbers<[1], [0], [0], [1], [0, 0, 1, 1], [], []>} : vector<32x128xbf16>, vector<128x64xbf16>, vector<32x64xf32> -> vector<32x64xf32>
    %c1_56 = arith.constant 1 : index
    %c0_57 = arith.constant 0 : index
    %c0_58 = arith.constant 0 : index
    %110 = vector.load %arg7[%c1_56, %c0_57, %c0_58] : memref<2x1x64xf32, #tpu.memory_space<vmem>>, vector<1x1x64xf32>
    %111 = vector.shape_cast %110 : vector<1x1x64xf32> to vector<1x64xf32>
    %112 = vector.broadcast %111 : vector<1x64xf32> to vector<32x64xf32>
    %113 = arith.addf %109, %112 : vector<32x64xf32>
    %c1_59 = arith.constant 1 : index
    %c0_60 = arith.constant 0 : index
    %c0_61 = arith.constant 0 : index
    %114 = vector.load %arg8[%c1_59, %c0_60, %c0_61] : memref<2x128x64xbf16, #tpu.memory_space<vmem>>, vector<1x128x64xbf16>
    %115 = vector.shape_cast %114 : vector<1x128x64xbf16> to vector<128x64xbf16>
    %cst_62 = arith.constant dense<0.000000e+00> : vector<64x64xf32>
    %116 = tpu.matmul %60, %115, %cst_62 {dimension_numbers = #tpu.dot_dimension_numbers<[1], [0], [0], [1], [0, 0, 1, 1], [], []>} : vector<64x128xbf16>, vector<128x64xbf16>, vector<64x64xf32> -> vector<64x64xf32>
    %c1_63 = arith.constant 1 : index
    %c0_64 = arith.constant 0 : index
    %c0_65 = arith.constant 0 : index
    %117 = vector.load %arg9[%c1_63, %c0_64, %c0_65] : memref<2x1x64xf32, #tpu.memory_space<vmem>>, vector<1x1x64xf32>
    %118 = vector.shape_cast %117 : vector<1x1x64xf32> to vector<1x64xf32>
    %119 = vector.broadcast %118 : vector<1x64xf32> to vector<64x64xf32>
    %120 = arith.addf %116, %119 : vector<64x64xf32>
    %c1_66 = arith.constant 1 : index
    %c0_67 = arith.constant 0 : index
    %c0_68 = arith.constant 0 : index
    %121 = vector.load %arg10[%c1_66, %c0_67, %c0_68] : memref<2x128x64xbf16, #tpu.memory_space<vmem>>, vector<1x128x64xbf16>
    %122 = vector.shape_cast %121 : vector<1x128x64xbf16> to vector<128x64xbf16>
    %cst_69 = arith.constant dense<0.000000e+00> : vector<64x64xf32>
    %123 = tpu.matmul %60, %122, %cst_69 {dimension_numbers = #tpu.dot_dimension_numbers<[1], [0], [0], [1], [0, 0, 1, 1], [], []>} : vector<64x128xbf16>, vector<128x64xbf16>, vector<64x64xf32> -> vector<64x64xf32>
    %c1_70 = arith.constant 1 : index
    %c0_71 = arith.constant 0 : index
    %c0_72 = arith.constant 0 : index
    %124 = vector.load %arg11[%c1_70, %c0_71, %c0_72] : memref<2x1x64xf32, #tpu.memory_space<vmem>>, vector<1x1x64xf32>
    %125 = vector.shape_cast %124 : vector<1x1x64xf32> to vector<1x64xf32>
    %126 = vector.broadcast %125 : vector<1x64xf32> to vector<64x64xf32>
    %127 = arith.addf %123, %126 : vector<64x64xf32>
    %128 = arith.truncf %113 : vector<32x64xf32> to vector<32x64xbf16>
    %129 = arith.truncf %120 : vector<64x64xf32> to vector<64x64xbf16>
    %cst_73 = arith.constant dense<0.000000e+00> : vector<32x64xf32>
    %130 = tpu.matmul %128, %129, %cst_73 {dimension_numbers = #tpu.dot_dimension_numbers<[1], [1], [0], [0], [0, 0, 1, 0], [], []>} : vector<32x64xbf16>, vector<64x64xbf16>, vector<32x64xf32> -> vector<32x64xf32>
    %cst_74 = arith.constant 1.250000e-01 : f32
    %131 = vector.broadcast %cst_74 : f32 to vector<32x64xf32>
    %132 = arith.mulf %130, %131 : vector<32x64xf32>
    %cst_75 = arith.constant dense<0xFF800000> : vector<32xf32>
    %133 = vector.multi_reduction <maximumf>, %132, %cst_75 [1] : vector<32x64xf32> to vector<32xf32>
    %134 = vector.shape_cast %133 : vector<32xf32> to vector<32x1xf32>
    %135 = vector.broadcast %134 : vector<32x1xf32> to vector<32x64xf32>
    %136 = arith.subf %132, %135 : vector<32x64xf32>
    %137 = math.exp %136 : vector<32x64xf32>
    %cst_76 = arith.constant dense<0.000000e+00> : vector<32xf32>
    %138 = vector.multi_reduction <add>, %137, %cst_76 [1] : vector<32x64xf32> to vector<32xf32>
    %139 = vector.shape_cast %138 : vector<32xf32> to vector<32x1xf32>
    %140 = tpu.reciprocal %139 {approx = true} : vector<32x1xf32> -> vector<32x1xf32>
    %141 = vector.broadcast %140 : vector<32x1xf32> to vector<32x64xf32>
    %142 = arith.mulf %137, %141 : vector<32x64xf32>
    %143 = arith.truncf %142 : vector<32x64xf32> to vector<32x64xbf16>
    %144 = arith.truncf %127 : vector<64x64xf32> to vector<64x64xbf16>
    %cst_77 = arith.constant dense<0.000000e+00> : vector<32x64xf32>
    %145 = tpu.matmul %143, %144, %cst_77 {dimension_numbers = #tpu.dot_dimension_numbers<[1], [0], [0], [1], [0, 0, 1, 1], [], []>} : vector<32x64xbf16>, vector<64x64xbf16>, vector<32x64xf32> -> vector<32x64xf32>
    %146 = arith.truncf %145 : vector<32x64xf32> to vector<32x64xbf16>
    %c1_78 = arith.constant 1 : index
    %c0_79 = arith.constant 0 : index
    %c0_80 = arith.constant 0 : index
    %147 = vector.load %arg12[%c1_78, %c0_79, %c0_80] : memref<2x64x128xbf16, #tpu.memory_space<vmem>>, vector<1x64x128xbf16>
    %148 = vector.shape_cast %147 : vector<1x64x128xbf16> to vector<64x128xbf16>
    %cst_81 = arith.constant dense<0.000000e+00> : vector<32x128xf32>
    %149 = tpu.matmul %146, %148, %cst_81 {dimension_numbers = #tpu.dot_dimension_numbers<[1], [0], [0], [1], [0, 0, 1, 1], [], []>} : vector<32x64xbf16>, vector<64x128xbf16>, vector<32x128xf32> -> vector<32x128xf32>
    %150 = arith.addf %106, %149 : vector<32x128xf32>
    %c0_82 = arith.constant 0 : index
    %c0_83 = arith.constant 0 : index
    %151 = vector.load %arg13[%c0_82, %c0_83] : memref<1x128xf32, #tpu.memory_space<vmem>>, vector<1x128xf32>
    %152 = vector.shape_cast %151 : vector<1x128xf32> to vector<128xf32>
    %153 = vector.shape_cast %152 : vector<128xf32> to vector<1x128xf32>
    %154 = vector.broadcast %153 : vector<1x128xf32> to vector<32x128xf32>
    %155 = arith.addf %150, %154 : vector<32x128xf32>
    %156 = arith.addf %155, %3 : vector<32x128xf32>
    %c0_84 = arith.constant 0 : index
    %c0_85 = arith.constant 0 : index
    %157 = vector.load %arg14[%c0_84, %c0_85] : memref<1x128xf32, #tpu.memory_space<vmem>>, vector<1x128xf32>
    %158 = vector.shape_cast %157 : vector<1x128xf32> to vector<128xf32>
    %c0_86 = arith.constant 0 : index
    %c0_87 = arith.constant 0 : index
    %159 = vector.load %arg15[%c0_86, %c0_87] : memref<1x128xf32, #tpu.memory_space<vmem>>, vector<1x128xf32>
    %160 = vector.shape_cast %159 : vector<1x128xf32> to vector<128xf32>
    %cst_88 = arith.constant dense<0.000000e+00> : vector<32xf32>
    %161 = vector.multi_reduction <add>, %156, %cst_88 [1] : vector<32x128xf32> to vector<32xf32>
    %162 = vector.shape_cast %161 : vector<32xf32> to vector<32x1xf32>
    %cst_89 = arith.constant 1.280000e+02 : f32
    %163 = vector.broadcast %cst_89 : f32 to vector<32x1xf32>
    %164 = arith.divf %162, %163 : vector<32x1xf32>
    %165 = vector.broadcast %164 : vector<32x1xf32> to vector<32x128xf32>
    %166 = arith.subf %156, %165 : vector<32x128xf32>
    %167 = arith.mulf %166, %166 : vector<32x128xf32>
    %cst_90 = arith.constant dense<0.000000e+00> : vector<32xf32>
    %168 = vector.multi_reduction <add>, %167, %cst_90 [1] : vector<32x128xf32> to vector<32xf32>
    %169 = vector.shape_cast %168 : vector<32xf32> to vector<32x1xf32>
    %cst_91 = arith.constant 1.280000e+02 : f32
    %170 = vector.broadcast %cst_91 : f32 to vector<32x1xf32>
    %171 = arith.divf %169, %170 : vector<32x1xf32>
    %172 = vector.broadcast %164 : vector<32x1xf32> to vector<32x128xf32>
    %173 = arith.subf %156, %172 : vector<32x128xf32>
    %cst_92 = arith.constant 9.99999974E-6 : f32
    %174 = vector.broadcast %cst_92 : f32 to vector<32x1xf32>
    %175 = arith.addf %171, %174 : vector<32x1xf32>
    %176 = math.rsqrt %175 : vector<32x1xf32>
    %177 = vector.broadcast %176 : vector<32x1xf32> to vector<32x128xf32>
    %178 = arith.mulf %173, %177 : vector<32x128xf32>
    %179 = vector.shape_cast %158 : vector<128xf32> to vector<1x128xf32>
    %180 = vector.broadcast %179 : vector<1x128xf32> to vector<32x128xf32>
    %181 = arith.mulf %178, %180 : vector<32x128xf32>
    %182 = vector.shape_cast %160 : vector<128xf32> to vector<1x128xf32>
    %183 = vector.broadcast %182 : vector<1x128xf32> to vector<32x128xf32>
    %184 = arith.addf %181, %183 : vector<32x128xf32>
    %185 = arith.truncf %184 : vector<32x128xf32> to vector<32x128xbf16>
    %c0_93 = arith.constant 0 : index
    %c0_94 = arith.constant 0 : index
    %186 = vector.load %arg16[%c0_93, %c0_94] : memref<128x256xbf16, #tpu.memory_space<vmem>>, vector<128x256xbf16>
    %cst_95 = arith.constant dense<0.000000e+00> : vector<32x256xf32>
    %187 = tpu.matmul %185, %186, %cst_95 {dimension_numbers = #tpu.dot_dimension_numbers<[1], [0], [0], [1], [0, 0, 1, 1], [], []>} : vector<32x128xbf16>, vector<128x256xbf16>, vector<32x256xf32> -> vector<32x256xf32>
    %c0_96 = arith.constant 0 : index
    %c0_97 = arith.constant 0 : index
    %188 = vector.load %arg17[%c0_96, %c0_97] : memref<1x256xf32, #tpu.memory_space<vmem>>, vector<1x256xf32>
    %189 = vector.shape_cast %188 : vector<1x256xf32> to vector<256xf32>
    %190 = vector.shape_cast %189 : vector<256xf32> to vector<1x256xf32>
    %191 = vector.broadcast %190 : vector<1x256xf32> to vector<32x256xf32>
    %192 = arith.addf %187, %191 : vector<32x256xf32>
    %cst_98 = arith.constant 5.000000e-01 : f32
    %193 = vector.broadcast %cst_98 : f32 to vector<32x256xf32>
    %194 = arith.mulf %193, %192 : vector<32x256xf32>
    %cst_99 = arith.constant 0.707106769 : f32
    %195 = vector.broadcast %cst_99 : f32 to vector<32x256xf32>
    %196 = arith.mulf %192, %195 : vector<32x256xf32>
    %197 = math.erf %196 : vector<32x256xf32>
    %cst_100 = arith.constant 1.000000e+00 : f32
    %198 = vector.broadcast %cst_100 : f32 to vector<32x256xf32>
    %199 = arith.addf %198, %197 : vector<32x256xf32>
    %200 = arith.mulf %194, %199 : vector<32x256xf32>
    %201 = arith.truncf %200 : vector<32x256xf32> to vector<32x256xbf16>
    %c0_101 = arith.constant 0 : index
    %c0_102 = arith.constant 0 : index
    %202 = vector.load %arg18[%c0_101, %c0_102] : memref<256x128xbf16, #tpu.memory_space<vmem>>, vector<256x128xbf16>
    %cst_103 = arith.constant dense<0.000000e+00> : vector<32x128xf32>
    %203 = tpu.matmul %201, %202, %cst_103 {dimension_numbers = #tpu.dot_dimension_numbers<[1], [0], [0], [1], [0, 0, 1, 1], [], []>} : vector<32x256xbf16>, vector<256x128xbf16>, vector<32x128xf32> -> vector<32x128xf32>
    %c0_104 = arith.constant 0 : index
    %c0_105 = arith.constant 0 : index
    %204 = vector.load %arg19[%c0_104, %c0_105] : memref<1x128xf32, #tpu.memory_space<vmem>>, vector<1x128xf32>
    %205 = vector.shape_cast %204 : vector<1x128xf32> to vector<128xf32>
    %206 = vector.shape_cast %205 : vector<128xf32> to vector<1x128xf32>
    %207 = vector.broadcast %206 : vector<1x128xf32> to vector<32x128xf32>
    %208 = arith.addf %203, %207 : vector<32x128xf32>
    %209 = arith.addf %208, %156 : vector<32x128xf32>
    %c0_106 = arith.constant 0 : index
    %c0_107 = arith.constant 0 : index
    %210 = vector.load %arg20[%c0_106, %c0_107] : memref<1x128xf32, #tpu.memory_space<vmem>>, vector<1x128xf32>
    %211 = vector.shape_cast %210 : vector<1x128xf32> to vector<128xf32>
    %c0_108 = arith.constant 0 : index
    %c0_109 = arith.constant 0 : index
    %212 = vector.load %arg21[%c0_108, %c0_109] : memref<1x128xf32, #tpu.memory_space<vmem>>, vector<1x128xf32>
    %213 = vector.shape_cast %212 : vector<1x128xf32> to vector<128xf32>
    %cst_110 = arith.constant dense<0.000000e+00> : vector<32xf32>
    %214 = vector.multi_reduction <add>, %209, %cst_110 [1] : vector<32x128xf32> to vector<32xf32>
    %215 = vector.shape_cast %214 : vector<32xf32> to vector<32x1xf32>
    %cst_111 = arith.constant 1.280000e+02 : f32
    %216 = vector.broadcast %cst_111 : f32 to vector<32x1xf32>
    %217 = arith.divf %215, %216 : vector<32x1xf32>
    %218 = vector.broadcast %217 : vector<32x1xf32> to vector<32x128xf32>
    %219 = arith.subf %209, %218 : vector<32x128xf32>
    %220 = arith.mulf %219, %219 : vector<32x128xf32>
    %cst_112 = arith.constant dense<0.000000e+00> : vector<32xf32>
    %221 = vector.multi_reduction <add>, %220, %cst_112 [1] : vector<32x128xf32> to vector<32xf32>
    %222 = vector.shape_cast %221 : vector<32xf32> to vector<32x1xf32>
    %cst_113 = arith.constant 1.280000e+02 : f32
    %223 = vector.broadcast %cst_113 : f32 to vector<32x1xf32>
    %224 = arith.divf %222, %223 : vector<32x1xf32>
    %225 = vector.broadcast %217 : vector<32x1xf32> to vector<32x128xf32>
    %226 = arith.subf %209, %225 : vector<32x128xf32>
    %cst_114 = arith.constant 9.99999974E-6 : f32
    %227 = vector.broadcast %cst_114 : f32 to vector<32x1xf32>
    %228 = arith.addf %224, %227 : vector<32x1xf32>
    %229 = math.rsqrt %228 : vector<32x1xf32>
    %230 = vector.broadcast %229 : vector<32x1xf32> to vector<32x128xf32>
    %231 = arith.mulf %226, %230 : vector<32x128xf32>
    %232 = vector.shape_cast %211 : vector<128xf32> to vector<1x128xf32>
    %233 = vector.broadcast %232 : vector<1x128xf32> to vector<32x128xf32>
    %234 = arith.mulf %231, %233 : vector<32x128xf32>
    %235 = vector.shape_cast %213 : vector<128xf32> to vector<1x128xf32>
    %236 = vector.broadcast %235 : vector<1x128xf32> to vector<32x128xf32>
    %237 = arith.addf %234, %236 : vector<32x128xf32>
    %c0_115 = arith.constant 0 : index
    %c0_116 = arith.constant 0 : index
    %c0_117 = arith.constant 0 : index
    %238 = vector.load %arg22[%c0_115, %c0_116, %c0_117] : memref<1x32x128xf32, #tpu.memory_space<vmem>>, vector<1x32x128xf32>
    %239 = vector.shape_cast %238 : vector<1x32x128xf32> to vector<32x128xf32>
    %240 = vector.shape_cast %237 : vector<32x128xf32> to vector<1x32x128xf32>
    tpu.vector_store %arg22[%c0_115, %c0_116, %c0_117], %240 {strides = array<i32>} : memref<1x32x128xf32, #tpu.memory_space<vmem>>, vector<1x32x128xf32>,
    return
  }
  func.func @transform_0(%arg0: i32, %arg1: i32) -> (i32, i32, i32) {
    %c0_i32 = arith.constant 0 : i32
    %c0_i32_0 = arith.constant 0 : i32
    %c0_i32_1 = arith.constant 0 : i32
    return %arg0, %c0_i32, %c0_i32_0 : i32, i32, i32
  }
  func.func @transform_1(%arg0: i32, %arg1: i32) -> (i32, i32, i32) {
    %c0_i32 = arith.constant 0 : i32
    %c0_i32_0 = arith.constant 0 : i32
    return %arg0, %arg1, %c0_i32 : i32, i32, i32
  }
  func.func @transform_2(%arg0: i32, %arg1: i32) -> (i32, i32) {
    %c0_i32 = arith.constant 0 : i32
    %c0_i32_0 = arith.constant 0 : i32
    %c0_i32_1 = arith.constant 0 : i32
    return %c0_i32, %c0_i32_0 : i32, i32
  }
  func.func @transform_3(%arg0: i32, %arg1: i32) -> (i32, i32) {
    %c0_i32 = arith.constant 0 : i32
    %c0_i32_0 = arith.constant 0 : i32
    %c0_i32_1 = arith.constant 0 : i32
    return %c0_i32, %c0_i32_0 : i32, i32
  }
  func.func @transform_4(%arg0: i32, %arg1: i32) -> (i32, i32, i32) {
    %c0_i32 = arith.constant 0 : i32
    %c0_i32_0 = arith.constant 0 : i32
    %c0_i32_1 = arith.constant 0 : i32
    %c0_i32_2 = arith.constant 0 : i32
    return %c0_i32, %c0_i32_0, %c0_i32_1 : i32, i32, i32
  }
  func.func @transform_5(%arg0: i32, %arg1: i32) -> (i32, i32, i32) {
    %c0_i32 = arith.constant 0 : i32
    %c0_i32_0 = arith.constant 0 : i32
    %c0_i32_1 = arith.constant 0 : i32
    %c0_i32_2 = arith.constant 0 : i32
    return %c0_i32, %c0_i32_0, %c0_i32_1 : i32, i32, i32
  }
  func.func @transform_6(%arg0: i32, %arg1: i32) -> (i32, i32, i32) {
    %c0_i32 = arith.constant 0 : i32
    %c0_i32_0 = arith.constant 0 : i32
    %c0_i32_1 = arith.constant 0 : i32
    %c0_i32_2 = arith.constant 0 : i32
    return %c0_i32, %c0_i32_0, %c0_i32_1 : i32, i32, i32
  }
  func.func @transform_7(%arg0: i32, %arg1: i32) -> (i32, i32, i32) {
    %c0_i32 = arith.constant 0 : i32
    %c0_i32_0 = arith.constant 0 : i32
    %c0_i32_1 = arith.constant 0 : i32
    %c0_i32_2 = arith.constant 0 : i32
    return %c0_i32, %c0_i32_0, %c0_i32_1 : i32, i32, i32
  }
  func.func @transform_8(%arg0: i32, %arg1: i32) -> (i32, i32, i32) {
    %c0_i32 = arith.constant 0 : i32
    %c0_i32_0 = arith.constant 0 : i32
    %c0_i32_1 = arith.constant 0 : i32
    %c0_i32_2 = arith.constant 0 : i32
    return %c0_i32, %c0_i32_0, %c0_i32_1 : i32, i32, i32
  }
  func.func @transform_9(%arg0: i32, %arg1: i32) -> (i32, i32, i32) {
    %c0_i32 = arith.constant 0 : i32
    %c0_i32_0 = arith.constant 0 : i32
    %c0_i32_1 = arith.constant 0 : i32
    %c0_i32_2 = arith.constant 0 : i32
    return %c0_i32, %c0_i32_0, %c0_i32_1 : i32, i32, i32
  }
  func.func @transform_10(%arg0: i32, %arg1: i32) -> (i32, i32, i32) {
    %c0_i32 = arith.constant 0 : i32
    %c0_i32_0 = arith.constant 0 : i32
    %c0_i32_1 = arith.constant 0 : i32
    %c0_i32_2 = arith.constant 0 : i32
    return %c0_i32, %c0_i32_0, %c0_i32_1 : i32, i32, i32
  }
  func.func @transform_11(%arg0: i32, %arg1: i32) -> (i32, i32) {
    %c0_i32 = arith.constant 0 : i32
    %c0_i32_0 = arith.constant 0 : i32
    %c0_i32_1 = arith.constant 0 : i32
    return %c0_i32, %c0_i32_0 : i32, i32
  }
  func.func @transform_12(%arg0: i32, %arg1: i32) -> (i32, i32) {
    %c0_i32 = arith.constant 0 : i32
    %c0_i32_0 = arith.constant 0 : i32
    %c0_i32_1 = arith.constant 0 : i32
    return %c0_i32, %c0_i32_0 : i32, i32
  }
  func.func @transform_13(%arg0: i32, %arg1: i32) -> (i32, i32) {
    %c0_i32 = arith.constant 0 : i32
    %c0_i32_0 = arith.constant 0 : i32
    %c0_i32_1 = arith.constant 0 : i32
    return %c0_i32, %c0_i32_0 : i32, i32
  }
  func.func @transform_14(%arg0: i32, %arg1: i32) -> (i32, i32) {
    %c0_i32 = arith.constant 0 : i32
    %c0_i32_0 = arith.constant 0 : i32
    %c0_i32_1 = arith.constant 0 : i32
    return %c0_i32, %c0_i32_0 : i32, i32
  }
  func.func @transform_15(%arg0: i32, %arg1: i32) -> (i32, i32) {
    %c0_i32 = arith.constant 0 : i32
    %c0_i32_0 = arith.constant 0 : i32
    %c0_i32_1 = arith.constant 0 : i32
    return %c0_i32, %c0_i32_0 : i32, i32
  }
  func.func @transform_16(%arg0: i32, %arg1: i32) -> (i32, i32) {
    %c0_i32 = arith.constant 0 : i32
    %c0_i32_0 = arith.constant 0 : i32
    %c0_i32_1 = arith.constant 0 : i32
    return %c0_i32, %c0_i32_0 : i32, i32
  }
  func.func @transform_17(%arg0: i32, %arg1: i32) -> (i32, i32) {
    %c0_i32 = arith.constant 0 : i32
    %c0_i32_0 = arith.constant 0 : i32
    %c0_i32_1 = arith.constant 0 : i32
    return %c0_i32, %c0_i32_0 : i32, i32
  }
  func.func @transform_18(%arg0: i32, %arg1: i32) -> (i32, i32) {
    %c0_i32 = arith.constant 0 : i32
    %c0_i32_0 = arith.constant 0 : i32
    %c0_i32_1 = arith.constant 0 : i32
    return %c0_i32, %c0_i32_0 : i32, i32
  }
  func.func @transform_19(%arg0: i32, %arg1: i32) -> (i32, i32) {
    %c0_i32 = arith.constant 0 : i32
    %c0_i32_0 = arith.constant 0 : i32
    %c0_i32_1 = arith.constant 0 : i32
    return %c0_i32, %c0_i32_0 : i32, i32
  }
  func.func @transform_20(%arg0: i32, %arg1: i32) -> (i32, i32, i32) {
    %c0_i32 = arith.constant 0 : i32
    %c0_i32_0 = arith.constant 0 : i32
    return %arg0, %arg1, %c0_i32 : i32, i32, i32
  }
}

</mosaic_0001>

<llo_original>
// kernel: tpu_custom_call.1
$region0: #{tpu_custom_call.1}
  #allocation0 [shape = 'u32[]', space=smem, size = 0x4, offset = 0x4, fixed_abs, tag = 'smem constant byte address 0x4 - core index']
  #allocation1 [shape = 'u32[72,128]{1,0:T(1,128)}', space=vmem, size = 0x9000, scoped, tag = 'internal scratch']
  %s0 = inlined_call_operand.vmem [shape: f32[2,64,128], index: 0, kind: input, shape index: {}]
  %s1 = inlined_call_operand.vmem [shape: f32[2,64,128], index: 1, kind: input, shape index: {}]
  %s2 = inlined_call_operand.hbm [shape: f32[1,128], index: 2, kind: input, shape index: {}]
  %s3 = inlined_call_operand.hbm [shape: f32[1,128], index: 3, kind: input, shape index: {}]
  %s4 = inlined_call_operand.vmem [shape: bf16[2,128,64], index: 4, kind: input, shape index: {}]
  %s5 = inlined_call_operand.hbm [shape: f32[2,1,64], index: 5, kind: input, shape index: {}]
  %s6 = inlined_call_operand.vmem [shape: bf16[2,128,64], index: 6, kind: input, shape index: {}]
  %s7 = inlined_call_operand.vmem [shape: f32[2,1,64], index: 7, kind: input, shape index: {}]
  %s8 = inlined_call_operand.vmem [shape: bf16[2,128,64], index: 8, kind: input, shape index: {}]
  %s9 = inlined_call_operand.vmem [shape: f32[2,1,64], index: 9, kind: input, shape index: {}]
  %s10 = inlined_call_operand.vmem [shape: bf16[2,64,128], index: 10, kind: input, shape index: {}]
  %s11 = inlined_call_operand.hbm [shape: f32[1,128], index: 11, kind: input, shape index: {}]
  %s12 = inlined_call_operand.hbm [shape: f32[1,128], index: 12, kind: input, shape index: {}]
  %s13 = inlined_call_operand.hbm [shape: f32[1,128], index: 13, kind: input, shape index: {}]
  %s14 = inlined_call_operand.vmem [shape: bf16[128,256], index: 14, kind: input, shape index: {}]
  %s15 = inlined_call_operand.vmem [shape: f32[1,256], index: 15, kind: input, shape index: {}]
  %s16 = inlined_call_operand.hbm [shape: bf16[256,128], index: 16, kind: input, shape index: {}]
  %s17 = inlined_call_operand.vmem [shape: f32[1,128], index: 17, kind: input, shape index: {}]
  %s18 = inlined_call_operand.vmem [shape: f32[1,128], index: 18, kind: input, shape index: {}]
  %s19 = inlined_call_operand.vmem [shape: f32[1,128], index: 19, kind: input, shape index: {}]
  %s20 = inlined_call_operand.hbm [shape: f32[2,64,128], index: 20, kind: output, shape index: {}]
  %s21 = sld [smem:[#allocation0]]
  $region141: #{tpu_custom_call.1} parent=0
    _
  %s23 = ssub.s32 1, %s21
  %s24 = scalar_select 0, %s23, %s21
  $region1: #{tpu_custom_call.1} parent=0
    #allocation2 [shape = 'u8[512]{0}', space=vmem, size = 0x400, scoped, tag = 'input window, operand 2, single buffered']
    #allocation3 [shape = 's32[2]{0}', space=sflag, size = 0x8, scoped, tag = 'scoped memory for tpu_custom_call.1']
    #allocation4 [shape = 's32[2]{0}', space=sflag, size = 0x8, scoped, tag = 'scoped memory for tpu_custom_call.1']
    #allocation5 [shape = 'u8[512]{0}', space=vmem, size = 0x400, scoped, tag = 'input window, operand 3, single buffered']
    #allocation6 [shape = 's32[1]{0}', space=sflag, size = 0x4, scoped, tag = 'scoped memory for tpu_custom_call.1']
    #allocation7 [shape = 'u8[1024]{0}', space=vmem, size = 0x400, scoped, tag = 'input window, operand 5, single buffered']
    #allocation8 [shape = 'u8[512]{0}', space=vmem, size = 0x400, scoped, tag = 'input window, operand 11, single buffered']
    #allocation9 [shape = 's32[1]{0}', space=sflag, size = 0x4, scoped, tag = 'scoped memory for tpu_custom_call.1']
    #allocation10 [shape = 'u8[512]{0}', space=vmem, size = 0x400, scoped, tag = 'input window, operand 12, single buffered']
    #allocation11 [shape = 'u8[512]{0}', space=vmem, size = 0x400, scoped, tag = 'input window, operand 13, single buffered']
    #allocation12 [shape = 's32[1]{0}', space=sflag, size = 0x4, scoped, tag = 'scoped memory for tpu_custom_call.1']
    #allocation13 [shape = 'u8[65536]{0}', space=vmem, size = 0x10000, scoped, tag = 'input window, operand 16, single buffered']
    #allocation14 [shape = 'u8[32768]{0}', space=vmem, size = 0x8000, scoped, tag = 'output window, operand 0']
    %25 = vsyncpa [#allocation3], 0
    %26 = vsyncpa [#allocation6], 0
    %27 = vsyncpa [#allocation9], 0
    %28 = vsyncpa [#allocation12], 0
    %29 = vsyncpa [#allocation4], 0
    %s30 = scalar_lea.sflag [#allocation4], 1
    %31 = vsyncpa %s30, 0
    loop: start=0, step=1, limit=6
    $region2: #{tpu_custom_call.1} parent=1 // loop_pre_header
      _
    $region3: #{tpu_custom_call.1} parent=1 // loop_header
      %s33 = sphi 0, %s37
      %p34 = scmp.ge.s32.totalorder %s33, 6
      %s40 = sphi 0, %s52
      %s41 = sphi 0, %s48
      %s42 = sphi 0, %s40
      %s43 = sphi 0, %s41
      %s44 = sphi 0, %s42
      %s45 = sphi 0, %s43
      %s55 = sphi 0, %s57
      %s58 = sphi 0, %s55
      %s59 = sphi 0, %s58
      %s75 = sphi 0, %s59
      %s83 = sphi 0, %s85
      %s86 = sphi 0, %s83
      %s87 = sphi 0, %s86
      %s103 = sphi 0, %s87
      %s107 = sphi 0, %s107
      %s109 = sphi 0, %s107
      %s110 = sphi 0, %s109
      %s124 = sphi 0, %s110
      %s128 = sphi 0, %s128
      %s130 = sphi 0, %s128
      %s131 = sphi 0, %s130
      %s145 = sphi 0, %s131
      %s149 = sphi 0, %s149
      %s151 = sphi 0, %s149
      %s152 = sphi 0, %s151
      %s166 = sphi 0, %s152
      %s170 = sphi 0, %s170
      %s172 = sphi 0, %s170
      %s173 = sphi 0, %s172
      %s187 = sphi 0, %s173
      %s191 = sphi 0, %s191
      %s193 = sphi 0, %s191
      %s194 = sphi 0, %s193
      %s208 = sphi 0, %s194
      %s212 = sphi 0, %s212
      %s214 = sphi 0, %s212
      %s215 = sphi 0, %s214
      %s229 = sphi 0, %s215
      %s233 = sphi 0, %s233
      %s235 = sphi 0, %s233
      %s236 = sphi 0, %s235
      %s250 = sphi 0, %s236
      %s254 = sphi 0, %s254
      %s256 = sphi 0, %s254
      %s257 = sphi 0, %s256
      %s271 = sphi 0, %s257
      %s275 = sphi 0, %s275
      %s277 = sphi 0, %s275
      %s278 = sphi 0, %s277
      %s292 = sphi 0, %s278
      %s296 = sphi 0, %s296
      %s298 = sphi 0, %s296
      %s299 = sphi 0, %s298
      %s313 = sphi 0, %s299
      %s317 = sphi 0, %s317
      %s319 = sphi 0, %s317
      %s320 = sphi 0, %s319
      %s334 = sphi 0, %s320
      %s338 = sphi 0, %s338
      %s340 = sphi 0, %s338
      %s341 = sphi 0, %s340
      %s355 = sphi 0, %s341
      %s359 = sphi 0, %s359
      %s361 = sphi 0, %s359
      %s362 = sphi 0, %s361
      %s376 = sphi 0, %s362
      %s380 = sphi 0, %s380
      %s382 = sphi 0, %s380
      %s383 = sphi 0, %s382
      %s397 = sphi 0, %s383
      %s401 = sphi 0, %s401
      %s403 = sphi 0, %s401
      %s404 = sphi 0, %s403
      %s418 = sphi 0, %s404
      %s422 = sphi 0, %s422
      %s424 = sphi 0, %s422
      %s425 = sphi 0, %s424
      %s439 = sphi 0, %s425
      %s443 = sphi 0, %s443
      %s445 = sphi 0, %s443
      %s446 = sphi 0, %s445
      %s460 = sphi 0, %s446
      %s464 = sphi 0, %s464
      %s466 = sphi 0, %s464
      %s467 = sphi 0, %s466
      %s481 = sphi 0, %s467
      %s489 = sphi 0, %s491
      %s492 = sphi 0, %s489
      %s493 = sphi 0, %s492
      %s509 = sphi 0, %s493
    $region4: #{tpu_custom_call.1} parent=1 // loop_header_branch
      %36 = sbr.rel (%p34) target = $region8
    $region5: #{tpu_custom_call.1} parent=1 // loop_body
      %s38 = ssub.s32 %s33, 1
      %s39 = ssub.s32 %s33, 2
      %s46 = sadd.s32 1, %s41
      %p47 = scmp.ge.s32.totalorder %s46, 2
      %s48 = scalar_select %p47, 0, %s46
      %s49 = sadd.s32 1, %s40
      %s50 = scalar_select %p47, %s49, %s40
      %p51 = scmp.ge.s32.totalorder %s50, 2
      %s52 = scalar_select %p51, 0, %s50
      %s53 = ssub.s32 %s40, %s52
      %p54 = scmp.eq.s32.totalorder %s53, 0
      %s56 = sadd.s32 %s55, 1
      %s57 = scalar_select %p54, %s55, %s56
      %p60 = pneg %p54
      %p61 = scmp.eq.s32.totalorder %s33, 3
      %p62 = por %p60, %p61
      %p63 = scmp.ne.s32.totalorder %s55, %s58
      %p64 = scmp.eq.s32.totalorder %s33, 0
      %p65 = por %p63, %p64
      %p66 = scmp.ne.s32.totalorder %s55, %s58
      %p67 = scmp.eq.s32.totalorder %s38, 3
      %p68 = por %p66, %p67
      %p69 = scmp.ne.s32.totalorder %s58, %s59
      %p70 = scmp.eq.s32.totalorder %s38, 0
      %p71 = por %p69, %p70
      %p72 = scmp.ne.s32.totalorder %s58, %s59
      %p73 = scmp.eq.s32.totalorder %s39, 3
      %p74 = por %p72, %p73
      %p76 = scmp.ne.s32.totalorder %s59, %s75
      %p77 = scmp.eq.s32.totalorder %s39, 0
      %p78 = por %p76, %p77
      %s79 = ssub.s32 %s40, %s52
      %s80 = ssub.s32 %s41, %s48
      %s81 = sor.u32 %s79, %s80
      %p82 = scmp.eq.s32.totalorder %s81, 0
      %s84 = sadd.s32 %s83, 1
      %s85 = scalar_select %p82, %s83, %s84
      %p88 = pneg %p82
      %p89 = scmp.eq.s32.totalorder %s33, 3
      %p90 = por %p88, %p89
      %p91 = scmp.ne.s32.totalorder %s83, %s86
      %p92 = scmp.eq.s32.totalorder %s33, 0
      %p93 = por %p91, %p92
      %p94 = scmp.ne.s32.totalorder %s83, %s86
      %p95 = scmp.eq.s32.totalorder %s38, 3
      %p96 = por %p94, %p95
      %p97 = scmp.ne.s32.totalorder %s86, %s87
      %p98 = scmp.eq.s32.totalorder %s38, 0
      %p99 = por %p97, %p98
      %p100 = scmp.ne.s32.totalorder %s86, %s87
      %p101 = scmp.eq.s32.totalorder %s39, 3
      %p102 = por %p100, %p101
      %p104 = scmp.ne.s32.totalorder %s87, %s103
      %p105 = scmp.eq.s32.totalorder %s39, 0
      %p106 = por %p104, %p105
      %s108 = sadd.s32 %s107, 1
      %p111 = scmp.eq.s32.totalorder %s33, 3
      %p112 = scmp.ne.s32.totalorder %s107, %s109
      %p113 = scmp.eq.s32.totalorder %s33, 0
      %p114 = por %p112, %p113
      %p115 = scmp.ne.s32.totalorder %s107, %s109
      %p116 = scmp.eq.s32.totalorder %s38, 3
      %p117 = por %p115, %p116
      %p118 = scmp.ne.s32.totalorder %s109, %s110
      %p119 = scmp.eq.s32.totalorder %s38, 0
      %p120 = por %p118, %p119
      %p121 = scmp.ne.s32.totalorder %s109, %s110
      %p122 = scmp.eq.s32.totalorder %s39, 3
      %p123 = por %p121, %p122
      %p125 = scmp.ne.s32.totalorder %s110, %s124
      %p126 = scmp.eq.s32.totalorder %s39, 0
      %p127 = por %p125, %p126
      %s129 = sadd.s32 %s128, 1
      %p132 = scmp.eq.s32.totalorder %s33, 3
      %p133 = scmp.ne.s32.totalorder %s128, %s130
      %p134 = scmp.eq.s32.totalorder %s33, 0
      %p135 = por %p133, %p134
      %p136 = scmp.ne.s32.totalorder %s128, %s130
      %p137 = scmp.eq.s32.totalorder %s38, 3
      %p138 = por %p136, %p137
      %p139 = scmp.ne.s32.totalorder %s130, %s131
      %p140 = scmp.eq.s32.totalorder %s38, 0
      %p141 = por %p139, %p140
      %p142 = scmp.ne.s32.totalorder %s130, %s131
      %p143 = scmp.eq.s32.totalorder %s39, 3
      %p144 = por %p142, %p143
      %p146 = scmp.ne.s32.totalorder %s131, %s145
      %p147 = scmp.eq.s32.totalorder %s39, 0
      %p148 = por %p146, %p147
      %s150 = sadd.s32 %s149, 1
      %p153 = scmp.eq.s32.totalorder %s33, 3
      %p154 = scmp.ne.s32.totalorder %s149, %s151
      %p155 = scmp.eq.s32.totalorder %s33, 0
      %p156 = por %p154, %p155
      %p157 = scmp.ne.s32.totalorder %s149, %s151
      %p158 = scmp.eq.s32.totalorder %s38, 3
      %p159 = por %p157, %p158
      %p160 = scmp.ne.s32.totalorder %s151, %s152
      %p161 = scmp.eq.s32.totalorder %s38, 0
      %p162 = por %p160, %p161
      %p163 = scmp.ne.s32.totalorder %s151, %s152
      %p164 = scmp.eq.s32.totalorder %s39, 3
      %p165 = por %p163, %p164
      %p167 = scmp.ne.s32.totalorder %s152, %s166
      %p168 = scmp.eq.s32.totalorder %s39, 0
      %p169 = por %p167, %p168
      %s171 = sadd.s32 %s170, 1
      %p174 = scmp.eq.s32.totalorder %s33, 3
      %p175 = scmp.ne.s32.totalorder %s170, %s172
      %p176 = scmp.eq.s32.totalorder %s33, 0
      %p177 = por %p175, %p176
      %p178 = scmp.ne.s32.totalorder %s170, %s172
      %p179 = scmp.eq.s32.totalorder %s38, 3
      %p180 = por %p178, %p179
      %p181 = scmp.ne.s32.totalorder %s172, %s173
      %p182 = scmp.eq.s32.totalorder %s38, 0
      %p183 = por %p181, %p182
      %p184 = scmp.ne.s32.totalorder %s172, %s173
      %p185 = scmp.eq.s32.totalorder %s39, 3
      %p186 = por %p184, %p185
      %p188 = scmp.ne.s32.totalorder %s173, %s187
      %p189 = scmp.eq.s32.totalorder %s39, 0
      %p190 = por %p188, %p189
      %s192 = sadd.s32 %s191, 1
      %p195 = scmp.eq.s32.totalorder %s33, 3
      %p196 = scmp.ne.s32.totalorder %s191, %s193
      %p197 = scmp.eq.s32.totalorder %s33, 0
      %p198 = por %p196, %p197
      %p199 = scmp.ne.s32.totalorder %s191, %s193
      %p200 = scmp.eq.s32.totalorder %s38, 3
      %p201 = por %p199, %p200
      %p202 = scmp.ne.s32.totalorder %s193, %s194
      %p203 = scmp.eq.s32.totalorder %s38, 0
      %p204 = por %p202, %p203
      %p205 = scmp.ne.s32.totalorder %s193, %s194
      %p206 = scmp.eq.s32.totalorder %s39, 3
      %p207 = por %p205, %p206
      %p209 = scmp.ne.s32.totalorder %s194, %s208
      %p210 = scmp.eq.s32.totalorder %s39, 0
      %p211 = por %p209, %p210
      %s213 = sadd.s32 %s212, 1
      %p216 = scmp.eq.s32.totalorder %s33, 3
      %p217 = scmp.ne.s32.totalorder %s212, %s214
      %p218 = scmp.eq.s32.totalorder %s33, 0
      %p219 = por %p217, %p218
      %p220 = scmp.ne.s32.totalorder %s212, %s214
      %p221 = scmp.eq.s32.totalorder %s38, 3
      %p222 = por %p220, %p221
      %p223 = scmp.ne.s32.totalorder %s214, %s215
      %p224 = scmp.eq.s32.totalorder %s38, 0
      %p225 = por %p223, %p224
      %p226 = scmp.ne.s32.totalorder %s214, %s215
      %p227 = scmp.eq.s32.totalorder %s39, 3
      %p228 = por %p226, %p227
      %p230 = scmp.ne.s32.totalorder %s215, %s229
      %p231 = scmp.eq.s32.totalorder %s39, 0
      %p232 = por %p230, %p231
      %s234 = sadd.s32 %s233, 1
      %p237 = scmp.eq.s32.totalorder %s33, 3
      %p238 = scmp.ne.s32.totalorder %s233, %s235
      %p239 = scmp.eq.s32.totalorder %s33, 0
      %p240 = por %p238, %p239
      %p241 = scmp.ne.s32.totalorder %s233, %s235
      %p242 = scmp.eq.s32.totalorder %s38, 3
      %p243 = por %p241, %p242
      %p244 = scmp.ne.s32.totalorder %s235, %s236
      %p245 = scmp.eq.s32.totalorder %s38, 0
      %p246 = por %p244, %p245
      %p247 = scmp.ne.s32.totalorder %s235, %s236
      %p248 = scmp.eq.s32.totalorder %s39, 3
      %p249 = por %p247, %p248
      %p251 = scmp.ne.s32.totalorder %s236, %s250
      %p252 = scmp.eq.s32.totalorder %s39, 0
      %p253 = por %p251, %p252
      %s255 = sadd.s32 %s254, 1
      %p258 = scmp.eq.s32.totalorder %s33, 3
      %p259 = scmp.ne.s32.totalorder %s254, %s256
      %p260 = scmp.eq.s32.totalorder %s33, 0
      %p261 = por %p259, %p260
      %p262 = scmp.ne.s32.totalorder %s254, %s256
      %p263 = scmp.eq.s32.totalorder %s38, 3
      %p264 = por %p262, %p263
      %p265 = scmp.ne.s32.totalorder %s256, %s257
      %p266 = scmp.eq.s32.totalorder %s38, 0
      %p267 = por %p265, %p266
      %p268 = scmp.ne.s32.totalorder %s256, %s257
      %p269 = scmp.eq.s32.totalorder %s39, 3
      %p270 = por %p268, %p269
      %p272 = scmp.ne.s32.totalorder %s257, %s271
      %p273 = scmp.eq.s32.totalorder %s39, 0
      %p274 = por %p272, %p273
      %s276 = sadd.s32 %s275, 1
      %p279 = scmp.eq.s32.totalorder %s33, 3
      %p280 = scmp.ne.s32.totalorder %s275, %s277
      %p281 = scmp.eq.s32.totalorder %s33, 0
      %p282 = por %p280, %p281
      %p283 = scmp.ne.s32.totalorder %s275, %s277
      %p284 = scmp.eq.s32.totalorder %s38, 3
      %p285 = por %p283, %p284
      %p286 = scmp.ne.s32.totalorder %s277, %s278
      %p287 = scmp.eq.s32.totalorder %s38, 0
      %p288 = por %p286, %p287
      %p289 = scmp.ne.s32.totalorder %s277, %s278
      %p290 = scmp.eq.s32.totalorder %s39, 3
      %p291 = por %p289, %p290
      %p293 = scmp.ne.s32.totalorder %s278, %s292
      %p294 = scmp.eq.s32.totalorder %s39, 0
      %p295 = por %p293, %p294
      %s297 = sadd.s32 %s296, 1
      %p300 = scmp.eq.s32.totalorder %s33, 3
      %p301 = scmp.ne.s32.totalorder %s296, %s298
      %p302 = scmp.eq.s32.totalorder %s33, 0
      %p303 = por %p301, %p302
      %p304 = scmp.ne.s32.totalorder %s296, %s298
      %p305 = scmp.eq.s32.totalorder %s38, 3
      %p306 = por %p304, %p305
      %p307 = scmp.ne.s32.totalorder %s298, %s299
      %p308 = scmp.eq.s32.totalorder %s38, 0
      %p309 = por %p307, %p308
      %p310 = scmp.ne.s32.totalorder %s298, %s299
      %p311 = scmp.eq.s32.totalorder %s39, 3
      %p312 = por %p310, %p311
      %p314 = scmp.ne.s32.totalorder %s299, %s313
      %p315 = scmp.eq.s32.totalorder %s39, 0
      %p316 = por %p314, %p315
      %s318 = sadd.s32 %s317, 1
      %p321 = scmp.eq.s32.totalorder %s33, 3
      %p322 = scmp.ne.s32.totalorder %s317, %s319
      %p323 = scmp.eq.s32.totalorder %s33, 0
      %p324 = por %p322, %p323
      %p325 = scmp.ne.s32.totalorder %s317, %s319
      %p326 = scmp.eq.s32.totalorder %s38, 3
      %p327 = por %p325, %p326
      %p328 = scmp.ne.s32.totalorder %s319, %s320
      %p329 = scmp.eq.s32.totalorder %s38, 0
      %p330 = por %p328, %p329
      %p331 = scmp.ne.s32.totalorder %s319, %s320
      %p332 = scmp.eq.s32.totalorder %s39, 3
      %p333 = por %p331, %p332
      %p335 = scmp.ne.s32.totalorder %s320, %s334
      %p336 = scmp.eq.s32.totalorder %s39, 0
      %p337 = por %p335, %p336
      %s339 = sadd.s32 %s338, 1
      %p342 = scmp.eq.s32.totalorder %s33, 3
      %p343 = scmp.ne.s32.totalorder %s338, %s340
      %p344 = scmp.eq.s32.totalorder %s33, 0
      %p345 = por %p343, %p344
      %p346 = scmp.ne.s32.totalorder %s338, %s340
      %p347 = scmp.eq.s32.totalorder %s38, 3
      %p348 = por %p346, %p347
      %p349 = scmp.ne.s32.totalorder %s340, %s341
      %p350 = scmp.eq.s32.totalorder %s38, 0
      %p351 = por %p349, %p350
      %p352 = scmp.ne.s32.totalorder %s340, %s341
      %p353 = scmp.eq.s32.totalorder %s39, 3
      %p354 = por %p352, %p353
      %p356 = scmp.ne.s32.totalorder %s341, %s355
      %p357 = scmp.eq.s32.totalorder %s39, 0
      %p358 = por %p356, %p357
      %s360 = sadd.s32 %s359, 1
      %p363 = scmp.eq.s32.totalorder %s33, 3
      %p364 = scmp.ne.s32.totalorder %s359, %s361
      %p365 = scmp.eq.s32.totalorder %s33, 0
      %p366 = por %p364, %p365
      %p367 = scmp.ne.s32.totalorder %s359, %s361
      %p368 = scmp.eq.s32.totalorder %s38, 3
      %p369 = por %p367, %p368
      %p370 = scmp.ne.s32.totalorder %s361, %s362
      %p371 = scmp.eq.s32.totalorder %s38, 0
      %p372 = por %p370, %p371
      %p373 = scmp.ne.s32.totalorder %s361, %s362
      %p374 = scmp.eq.s32.totalorder %s39, 3
      %p375 = por %p373, %p374
      %p377 = scmp.ne.s32.totalorder %s362, %s376
      %p378 = scmp.eq.s32.totalorder %s39, 0
      %p379 = por %p377, %p378
      %s381 = sadd.s32 %s380, 1
      %p384 = scmp.eq.s32.totalorder %s33, 3
      %p385 = scmp.ne.s32.totalorder %s380, %s382
      %p386 = scmp.eq.s32.totalorder %s33, 0
      %p387 = por %p385, %p386
      %p388 = scmp.ne.s32.totalorder %s380, %s382
      %p389 = scmp.eq.s32.totalorder %s38, 3
      %p390 = por %p388, %p389
      %p391 = scmp.ne.s32.totalorder %s382, %s383
      %p392 = scmp.eq.s32.totalorder %s38, 0
      %p393 = por %p391, %p392
      %p394 = scmp.ne.s32.totalorder %s382, %s383
      %p395 = scmp.eq.s32.totalorder %s39, 3
      %p396 = por %p394, %p395
      %p398 = scmp.ne.s32.totalorder %s383, %s397
      %p399 = scmp.eq.s32.totalorder %s39, 0
      %p400 = por %p398, %p399
      %s402 = sadd.s32 %s401, 1
      %p405 = scmp.eq.s32.totalorder %s33, 3
      %p406 = scmp.ne.s32.totalorder %s401, %s403
      %p407 = scmp.eq.s32.totalorder %s33, 0
      %p408 = por %p406, %p407
      %p409 = scmp.ne.s32.totalorder %s401, %s403
      %p410 = scmp.eq.s32.totalorder %s38, 3
      %p411 = por %p409, %p410
      %p412 = scmp.ne.s32.totalorder %s403, %s404
      %p413 = scmp.eq.s32.totalorder %s38, 0
      %p414 = por %p412, %p413
      %p415 = scmp.ne.s32.totalorder %s403, %s404
      %p416 = scmp.eq.s32.totalorder %s39, 3
      %p417 = por %p415, %p416
      %p419 = scmp.ne.s32.totalorder %s404, %s418
      %p420 = scmp.eq.s32.totalorder %s39, 0
      %p421 = por %p419, %p420
      %s423 = sadd.s32 %s422, 1
      %p426 = scmp.eq.s32.totalorder %s33, 3
      %p427 = scmp.ne.s32.totalorder %s422, %s424
      %p428 = scmp.eq.s32.totalorder %s33, 0
      %p429 = por %p427, %p428
      %p430 = scmp.ne.s32.totalorder %s422, %s424
      %p431 = scmp.eq.s32.totalorder %s38, 3
      %p432 = por %p430, %p431
      %p433 = scmp.ne.s32.totalorder %s424, %s425
      %p434 = scmp.eq.s32.totalorder %s38, 0
      %p435 = por %p433, %p434
      %p436 = scmp.ne.s32.totalorder %s424, %s425
      %p437 = scmp.eq.s32.totalorder %s39, 3
      %p438 = por %p436, %p437
      %p440 = scmp.ne.s32.totalorder %s425, %s439
      %p441 = scmp.eq.s32.totalorder %s39, 0
      %p442 = por %p440, %p441
      %s444 = sadd.s32 %s443, 1
      %p447 = scmp.eq.s32.totalorder %s33, 3
      %p448 = scmp.ne.s32.totalorder %s443, %s445
      %p449 = scmp.eq.s32.totalorder %s33, 0
      %p450 = por %p448, %p449
      %p451 = scmp.ne.s32.totalorder %s443, %s445
      %p452 = scmp.eq.s32.totalorder %s38, 3
      %p453 = por %p451, %p452
      %p454 = scmp.ne.s32.totalorder %s445, %s446
      %p455 = scmp.eq.s32.totalorder %s38, 0
      %p456 = por %p454, %p455
      %p457 = scmp.ne.s32.totalorder %s445, %s446
      %p458 = scmp.eq.s32.totalorder %s39, 3
      %p459 = por %p457, %p458
      %p461 = scmp.ne.s32.totalorder %s446, %s460
      %p462 = scmp.eq.s32.totalorder %s39, 0
      %p463 = por %p461, %p462
      %s465 = sadd.s32 %s464, 1
      %p468 = scmp.eq.s32.totalorder %s33, 3
      %p469 = scmp.ne.s32.totalorder %s464, %s466
      %p470 = scmp.eq.s32.totalorder %s33, 0
      %p471 = por %p469, %p470
      %p472 = scmp.ne.s32.totalorder %s464, %s466
      %p473 = scmp.eq.s32.totalorder %s38, 3
      %p474 = por %p472, %p473
      %p475 = scmp.ne.s32.totalorder %s466, %s467
      %p476 = scmp.eq.s32.totalorder %s38, 0
      %p477 = por %p475, %p476
      %p478 = scmp.ne.s32.totalorder %s466, %s467
      %p479 = scmp.eq.s32.totalorder %s39, 3
      %p480 = por %p478, %p479
      %p482 = scmp.ne.s32.totalorder %s467, %s481
      %p483 = scmp.eq.s32.totalorder %s39, 0
      %p484 = por %p482, %p483
      %s485 = ssub.s32 %s40, %s52
      %s486 = ssub.s32 %s41, %s48
      %s487 = sor.u32 %s485, %s486
      %p488 = scmp.eq.s32.totalorder %s487, 0
      %s490 = sadd.s32 %s489, 1
      %s491 = scalar_select %p488, %s489, %s490
      %p494 = pneg %p488
      %p495 = scmp.eq.s32.totalorder %s33, 3
      %p496 = por %p494, %p495
      %p497 = scmp.ne.s32.totalorder %s489, %s492
      %p498 = scmp.eq.s32.totalorder %s33, 0
      %p499 = por %p497, %p498
      %p500 = scmp.ne.s32.totalorder %s489, %s492
      %p501 = scmp.eq.s32.totalorder %s38, 3
      %p502 = por %p500, %p501
      %p503 = scmp.ne.s32.totalorder %s492, %s493
      %p504 = scmp.eq.s32.totalorder %s38, 0
      %p505 = por %p503, %p504
      %p506 = scmp.ne.s32.totalorder %s492, %s493
      %p507 = scmp.eq.s32.totalorder %s39, 3
      %p508 = por %p506, %p507
      %p510 = scmp.ne.s32.totalorder %s493, %s509
      %p511 = scmp.eq.s32.totalorder %s39, 0
      %p512 = por %p510, %p511
      %p513 = scmp.le.s32.totalorder 1, %s33
      %p514 = scmp.lt.s32.totalorder %s33, 5
      %p515 = pnand %p513, %p514
      %p516 = pneg %p515
      // Predicated region
      $region9: #{tpu_custom_call.1} parent=5 // pred_check
        _
      $region10: #{tpu_custom_call.1} parent=5 // pred_check_branch
        %518 = sbr.rel (%p515) target = $region12
      $region11: #{tpu_custom_call.1} parent=5 // pred_region
        %s519 = ssub.s32 %s33, 1
        // Predicated region
        $region13: #{tpu_custom_call.1} parent=11 // pred_check
          %p520 = pneg %p120
        $region14: #{tpu_custom_call.1} parent=11 // pred_check_branch
          %522 = sbr.rel (%p520) target = $region16
        $region15: #{tpu_custom_call.1} parent=11 // pred_region
          %524 = vsyncadd [#allocation3], 0
          %s526 = sshll.u32 %s2, 4
          %s527 = int_to_ptr.hbm [resolvable:$true] %s526
          %s528 = sshll.u32 [#allocation2], 4
          %s529 = int_to_ptr.vmem [resolvable:$true] %s528
          %531 = dma.hbm_to_vmem [thread:$0]  %s527, 16, %s529, [#allocation3]
        $region16: #{tpu_custom_call.1} parent=11 // pred_fallthru
          _
        // Predicated region
        $region17: #{tpu_custom_call.1} parent=11 // pred_check
          %p532 = pneg %p141
        $region18: #{tpu_custom_call.1} parent=11 // pred_check_branch
          %534 = sbr.rel (%p532) target = $region20
        $region19: #{tpu_custom_call.1} parent=11 // pred_region
          %536 = vsyncadd [#allocation6], 0
          %s538 = sshll.u32 %s3, 4
          %s539 = int_to_ptr.hbm [resolvable:$true] %s538
          %s540 = sshll.u32 [#allocation5], 4
          %s541 = int_to_ptr.vmem [resolvable:$true] %s540
          %543 = dma.hbm_to_vmem [thread:$0]  %s539, 16, %s541, [#allocation6]
        $region20: #{tpu_custom_call.1} parent=11 // pred_fallthru
          _
        // Predicated region
        $region21: #{tpu_custom_call.1} parent=11 // pred_check
          %p544 = pneg %p162
        $region22: #{tpu_custom_call.1} parent=11 // pred_check_branch
          %546 = sbr.rel (%p544) target = $region24
        $region23: #{tpu_custom_call.1} parent=11 // pred_region
          _
        $region24: #{tpu_custom_call.1} parent=11 // pred_fallthru
          _
        // Predicated region
        $region25: #{tpu_custom_call.1} parent=11 // pred_check
          %p547 = pneg %p183
        $region26: #{tpu_custom_call.1} parent=11 // pred_check_branch
          %549 = sbr.rel (%p547) target = $region28
        $region27: #{tpu_custom_call.1} parent=11 // pred_region
          %551 = vsyncadd [#allocation6], 0
          %s552 = sshll.u32 %s5, 4
          %s553 = int_to_ptr.hbm [resolvable:$true] %s552
          %s554 = sshll.u32 [#allocation7], 4
          %s555 = int_to_ptr.vmem [resolvable:$true] %s554
          %560 = dma.hbm_to_vmem [thread:$0]  %s553, 32, %s555, [#allocation6], 16, 16, 1
        $region28: #{tpu_custom_call.1} parent=11 // pred_fallthru
          _
        // Predicated region
        $region29: #{tpu_custom_call.1} parent=11 // pred_check
          %p561 = pneg %p204
        $region30: #{tpu_custom_call.1} parent=11 // pred_check_branch
          %563 = sbr.rel (%p561) target = $region32
        $region31: #{tpu_custom_call.1} parent=11 // pred_region
          _
        $region32: #{tpu_custom_call.1} parent=11 // pred_fallthru
          _
        // Predicated region
        $region33: #{tpu_custom_call.1} parent=11 // pred_check
          %p564 = pneg %p225
        $region34: #{tpu_custom_call.1} parent=11 // pred_check_branch
          %566 = sbr.rel (%p564) target = $region36
        $region35: #{tpu_custom_call.1} parent=11 // pred_region
          _
        $region36: #{tpu_custom_call.1} parent=11 // pred_fallthru
          _
        // Predicated region
        $region37: #{tpu_custom_call.1} parent=11 // pred_check
          %p567 = pneg %p246
        $region38: #{tpu_custom_call.1} parent=11 // pred_check_branch
          %569 = sbr.rel (%p567) target = $region40
        $region39: #{tpu_custom_call.1} parent=11 // pred_region
          _
        $region40: #{tpu_custom_call.1} parent=11 // pred_fallthru
          _
        // Predicated region
        $region41: #{tpu_custom_call.1} parent=11 // pred_check
          %p570 = pneg %p267
        $region42: #{tpu_custom_call.1} parent=11 // pred_check_branch
          %572 = sbr.rel (%p570) target = $region44
        $region43: #{tpu_custom_call.1} parent=11 // pred_region
          _
        $region44: #{tpu_custom_call.1} parent=11 // pred_fallthru
          _
        // Predicated region
        $region45: #{tpu_custom_call.1} parent=11 // pred_check
          %p573 = pneg %p288
        $region46: #{tpu_custom_call.1} parent=11 // pred_check_branch
          %575 = sbr.rel (%p573) target = $region48
        $region47: #{tpu_custom_call.1} parent=11 // pred_region
          _
        $region48: #{tpu_custom_call.1} parent=11 // pred_fallthru
          _
        // Predicated region
        $region49: #{tpu_custom_call.1} parent=11 // pred_check
          %p576 = pneg %p309
        $region50: #{tpu_custom_call.1} parent=11 // pred_check_branch
          %578 = sbr.rel (%p576) target = $region52
        $region51: #{tpu_custom_call.1} parent=11 // pred_region
          %580 = vsyncadd [#allocation9], 0
          %s582 = sshll.u32 %s11, 4
          %s583 = int_to_ptr.hbm [resolvable:$true] %s582
          %s584 = sshll.u32 [#allocation8], 4
          %s585 = int_to_ptr.vmem [resolvable:$true] %s584
          %587 = dma.hbm_to_vmem [thread:$0]  %s583, 16, %s585, [#allocation9]
        $region52: #{tpu_custom_call.1} parent=11 // pred_fallthru
          _
        // Predicated region
        $region53: #{tpu_custom_call.1} parent=11 // pred_check
          %p588 = pneg %p330
        $region54: #{tpu_custom_call.1} parent=11 // pred_check_branch
          %590 = sbr.rel (%p588) target = $region56
        $region55: #{tpu_custom_call.1} parent=11 // pred_region
          %592 = vsyncadd [#allocation9], 0
          %s594 = sshll.u32 %s12, 4
          %s595 = int_to_ptr.hbm [resolvable:$true] %s594
          %s596 = sshll.u32 [#allocation10], 4
          %s597 = int_to_ptr.vmem [resolvable:$true] %s596
          %599 = dma.hbm_to_vmem [thread:$0]  %s595, 16, %s597, [#allocation9]
        $region56: #{tpu_custom_call.1} parent=11 // pred_fallthru
          _
        // Predicated region
        $region57: #{tpu_custom_call.1} parent=11 // pred_check
          %p600 = pneg %p351
        $region58: #{tpu_custom_call.1} parent=11 // pred_check_branch
          %602 = sbr.rel (%p600) target = $region60
        $region59: #{tpu_custom_call.1} parent=11 // pred_region
          %604 = vsyncadd [#allocation12], 0
          %s606 = sshll.u32 %s13, 4
          %s607 = int_to_ptr.hbm [resolvable:$true] %s606
          %s608 = sshll.u32 [#allocation11], 4
          %s609 = int_to_ptr.vmem [resolvable:$true] %s608
          %611 = dma.hbm_to_vmem [thread:$0]  %s607, 16, %s609, [#allocation12]
        $region60: #{tpu_custom_call.1} parent=11 // pred_fallthru
          _
        // Predicated region
        $region61: #{tpu_custom_call.1} parent=11 // pred_check
          %p612 = pneg %p372
        $region62: #{tpu_custom_call.1} parent=11 // pred_check_branch
          %614 = sbr.rel (%p612) target = $region64
        $region63: #{tpu_custom_call.1} parent=11 // pred_region
          _
        $region64: #{tpu_custom_call.1} parent=11 // pred_fallthru
          _
        // Predicated region
        $region65: #{tpu_custom_call.1} parent=11 // pred_check
          %p615 = pneg %p393
        $region66: #{tpu_custom_call.1} parent=11 // pred_check_branch
          %617 = sbr.rel (%p615) target = $region68
        $region67: #{tpu_custom_call.1} parent=11 // pred_region
          _
        $region68: #{tpu_custom_call.1} parent=11 // pred_fallthru
          _
        // Predicated region
        $region69: #{tpu_custom_call.1} parent=11 // pred_check
          %p618 = pneg %p414
        $region70: #{tpu_custom_call.1} parent=11 // pred_check_branch
          %620 = sbr.rel (%p618) target = $region72
        $region71: #{tpu_custom_call.1} parent=11 // pred_region
          %622 = vsyncadd [#allocation12], 0
          %s623 = sshll.u32 %s16, 4
          %s624 = int_to_ptr.hbm [resolvable:$true] %s623
          %s625 = sshll.u32 [#allocation13], 4
          %s626 = int_to_ptr.vmem [resolvable:$true] %s625
          %631 = dma.hbm_to_vmem [thread:$0]  %s624, 2048, %s626, [#allocation12], 64, 64, 4
        $region72: #{tpu_custom_call.1} parent=11 // pred_fallthru
          _
        // Predicated region
        $region73: #{tpu_custom_call.1} parent=11 // pred_check
          %p632 = pneg %p435
        $region74: #{tpu_custom_call.1} parent=11 // pred_check_branch
          %634 = sbr.rel (%p632) target = $region76
        $region75: #{tpu_custom_call.1} parent=11 // pred_region
          _
        $region76: #{tpu_custom_call.1} parent=11 // pred_fallthru
          _
        // Predicated region
        $region77: #{tpu_custom_call.1} parent=11 // pred_check
          %p635 = pneg %p456
        $region78: #{tpu_custom_call.1} parent=11 // pred_check_branch
          %637 = sbr.rel (%p635) target = $region80
        $region79: #{tpu_custom_call.1} parent=11 // pred_region
          _
        $region80: #{tpu_custom_call.1} parent=11 // pred_fallthru
          _
        // Predicated region
        $region81: #{tpu_custom_call.1} parent=11 // pred_check
          %p638 = pneg %p477
        $region82: #{tpu_custom_call.1} parent=11 // pred_check_branch
          %640 = sbr.rel (%p638) target = $region84
        $region83: #{tpu_custom_call.1} parent=11 // pred_region
          _
        $region84: #{tpu_custom_call.1} parent=11 // pred_fallthru
          _
      $region12: #{tpu_custom_call.1} parent=5 // pred_fallthru
        _
      %p641 = scmp.lt.s32.totalorder %s33, 4
      // Predicated region
      $region85: #{tpu_custom_call.1} parent=5 // pred_check
        %p642 = pneg %p641
      $region86: #{tpu_custom_call.1} parent=5 // pred_check_branch
        %644 = sbr.rel (%p642) target = $region88
      $region87: #{tpu_custom_call.1} parent=5 // pred_region
        // Predicated region
        $region89: #{tpu_custom_call.1} parent=87 // pred_check
          %p645 = pneg %p65
        $region90: #{tpu_custom_call.1} parent=87 // pred_check_branch
          %647 = sbr.rel (%p645) target = $region92
        $region91: #{tpu_custom_call.1} parent=87 // pred_region
          %p648 = scmp.lt.s32.totalorder %s40, 1
          %s649 = scalar_select %p648, %s40, 1
          %s650 = smul.addr %s649, 8
          %s651 = smul.addr %s650, 8
          %s652 = scalar_lea.vmem %s0, %s651
        $region92: #{tpu_custom_call.1} parent=87 // pred_fallthru
          _
        // Predicated region
        $region93: #{tpu_custom_call.1} parent=87 // pred_check
          %p653 = pneg %p93
        $region94: #{tpu_custom_call.1} parent=87 // pred_check_branch
          %655 = sbr.rel (%p653) target = $region96
        $region95: #{tpu_custom_call.1} parent=87 // pred_region
          %s656 = smul.u32 4, %s41
          %p657 = scmp.lt.s32.totalorder %s40, 1
          %s658 = scalar_select %p657, %s40, 1
          %p659 = scmp.lt.s32.totalorder %s656, 7
          %s660 = scalar_select %p659, %s656, 7
          %s661 = smul.addr %s658, 8
          %s662 = sadd.s32 %s660, %s661
          %s663 = smul.addr %s662, 8
          %s664 = scalar_lea.vmem %s1, %s663
          %s665 = smul.u32 4, %s41
        $region96: #{tpu_custom_call.1} parent=87 // pred_fallthru
          _
      $region88: #{tpu_custom_call.1} parent=5 // pred_fallthru
        _
      %p666 = scmp.le.s32.totalorder 1, %s33
      %p667 = scmp.lt.s32.totalorder %s33, 5
      %p668 = pnand %p666, %p667
      %p669 = pneg %p668
      // Predicated region
      $region97: #{tpu_custom_call.1} parent=5 // pred_check
        _
      $region98: #{tpu_custom_call.1} parent=5 // pred_check_branch
        %671 = sbr.rel (%p668) target = $region100
      $region99: #{tpu_custom_call.1} parent=5 // pred_region
        %s672 = ssub.s32 %s33, 1
        // Predicated region
        $region101: #{tpu_custom_call.1} parent=99 // pred_check
          %p673 = pneg %p120
        $region102: #{tpu_custom_call.1} parent=99 // pred_check_branch
          %675 = sbr.rel (%p673) target = $region104
        $region103: #{tpu_custom_call.1} parent=99 // pred_region
          %677 = dma.done [#allocation3], 16
        $region104: #{tpu_custom_call.1} parent=99 // pred_fallthru
          _
        // Predicated region
        $region105: #{tpu_custom_call.1} parent=99 // pred_check
          %p678 = pneg %p141
        $region106: #{tpu_custom_call.1} parent=99 // pred_check_branch
          %680 = sbr.rel (%p678) target = $region108
        $region107: #{tpu_custom_call.1} parent=99 // pred_region
          %682 = dma.done [#allocation6], 16
        $region108: #{tpu_custom_call.1} parent=99 // pred_fallthru
          _
        // Predicated region
        $region109: #{tpu_custom_call.1} parent=99 // pred_check
          %p683 = pneg %p183
        $region110: #{tpu_custom_call.1} parent=99 // pred_check_branch
          %685 = sbr.rel (%p683) target = $region112
        $region111: #{tpu_custom_call.1} parent=99 // pred_region
          %687 = dma.done [#allocation6], 32
        $region112: #{tpu_custom_call.1} parent=99 // pred_fallthru
          _
        // Predicated region
        $region113: #{tpu_custom_call.1} parent=99 // pred_check
          %p688 = pneg %p309
        $region114: #{tpu_custom_call.1} parent=99 // pred_check_branch
          %690 = sbr.rel (%p688) target = $region116
        $region115: #{tpu_custom_call.1} parent=99 // pred_region
          %692 = dma.done [#allocation9], 16
        $region116: #{tpu_custom_call.1} parent=99 // pred_fallthru
          _
        // Predicated region
        $region117: #{tpu_custom_call.1} parent=99 // pred_check
          %p693 = pneg %p330
        $region118: #{tpu_custom_call.1} parent=99 // pred_check_branch
          %695 = sbr.rel (%p693) target = $region120
        $region119: #{tpu_custom_call.1} parent=99 // pred_region
          %697 = dma.done [#allocation9], 16
        $region120: #{tpu_custom_call.1} parent=99 // pred_fallthru
          _
        // Predicated region
        $region121: #{tpu_custom_call.1} parent=99 // pred_check
          %p698 = pneg %p351
        $region122: #{tpu_custom_call.1} parent=99 // pred_check_branch
          %700 = sbr.rel (%p698) target = $region124
        $region123: #{tpu_custom_call.1} parent=99 // pred_region
          %702 = dma.done [#allocation12], 16
        $region124: #{tpu_custom_call.1} parent=99 // pred_fallthru
          _
        // Predicated region
        $region125: #{tpu_custom_call.1} parent=99 // pred_check
          %p703 = pneg %p414
        $region126: #{tpu_custom_call.1} parent=99 // pred_check_branch
          %705 = sbr.rel (%p703) target = $region128
        $region127: #{tpu_custom_call.1} parent=99 // pred_region
          %707 = dma.done [#allocation12], 2048
        $region128: #{tpu_custom_call.1} parent=99 // pred_fallthru
          _
        %p708 = scmp.lt.s32.totalorder %s42, 1
        %s709 = scalar_select %p708, %s42, 1
        %s710 = smul.addr %s709, 8
        %s711 = smul.addr %s710, 8
        %s712 = scalar_lea.vmem %s0, %s711
        %p713 = pneg %p71
        %p714 = pneg %p68
        %s715 = smul.u32 4, %s43
        %p716 = scmp.lt.s32.totalorder %s42, 1
        %s717 = scalar_select %p716, %s42, 1
        %p718 = scmp.lt.s32.totalorder %s715, 7
        %s719 = scalar_select %p718, %s715, 7
        %s720 = smul.addr %s717, 8
        %s721 = sadd.s32 %s719, %s720
        %s722 = smul.addr %s721, 8
        %s723 = scalar_lea.vmem %s1, %s722
        %p724 = pneg %p99
        %p725 = pneg %p96
        %p726 = pneg %p120
        %p727 = pneg %p117
        %p728 = pneg %p141
        %p729 = pneg %p138
        %p730 = pneg %p162
        %p731 = pneg %p159
        %p732 = pneg %p183
        %p733 = pneg %p180
        %p734 = pneg %p204
        %p735 = pneg %p201
        %p736 = pneg %p225
        %p737 = pneg %p222
        %p738 = pneg %p246
        %p739 = pneg %p243
        %p740 = pneg %p267
        %p741 = pneg %p264
        %p742 = pneg %p288
        %p743 = pneg %p285
        %p744 = pneg %p309
        %p745 = pneg %p306
        %p746 = pneg %p330
        %p747 = pneg %p327
        %p748 = pneg %p351
        %p749 = pneg %p348
        %p750 = pneg %p372
        %p751 = pneg %p369
        %p752 = pneg %p393
        %p753 = pneg %p390
        %p754 = pneg %p414
        %p755 = pneg %p411
        %p756 = pneg %p435
        %p757 = pneg %p432
        %p758 = pneg %p456
        %p759 = pneg %p453
        %p760 = pneg %p477
        %p761 = pneg %p474
        %p762 = pneg %p505
        %p763 = pneg %p502
        %s764 = sand.u32 %s492, 1
        %s765 = scalar_lea.sflag [#allocation4], %s764
        %s766 = sand.u32 %s492, 1
        %s767 = smul.addr %s766, 32
        %s768 = scalar_lea.vmem [#allocation14], %s767
        %p769 = scmp.lt.s32.totalorder %s42, 1
        %s770 = scalar_select %p769, %s42, 1
        %s771 = smul.addr %s770, 8
        %s772 = smul.addr %s771, 8
        %s773 = scalar_lea.vmem %s0, %s772
        %s774 = smul.u32 4, %s43
        %p775 = scmp.lt.s32.totalorder %s42, 1
        %s776 = scalar_select %p775, %s42, 1
        %p777 = scmp.lt.s32.totalorder %s774, 7
        %s778 = scalar_select %p777, %s774, 7
        %s779 = smul.addr %s776, 8
        %s780 = sadd.s32 %s778, %s779
        %s781 = smul.addr %s780, 8
        %s782 = scalar_lea.vmem %s1, %s781
        %s783 = smul.u32 4, %s43
        %s784 = smul.u32 4, %s43
        %v786 = vld [vmem:[%s773] sm:$0xff]
        %v787 = vld [vmem:[%s773 + $0x8] sm:$0xff]
        %v788 = vld [vmem:[%s773 + $0x10] sm:$0xff]
        %v789 = vld [vmem:[%s773 + $0x18] sm:$0xff]
        %v790 = vld [vmem:[%s773 + $0x20] sm:$0xff]
        %v791 = vld [vmem:[%s773 + $0x28] sm:$0xff]
        %v792 = vld [vmem:[%s773 + $0x30] sm:$0xff]
        %v793 = vld [vmem:[%s773 + $0x38] sm:$0xff]
        %v794 = vld [vmem:[%s782] sm:$0xff]
        %v795 = vld [vmem:[%s782 + $0x8] sm:$0xff]
        %v796 = vld [vmem:[%s782 + $0x10] sm:$0xff]
        %v797 = vld [vmem:[%s782 + $0x18] sm:$0xff]
        %v798 = vld [vmem:[#allocation2] sm:$0x1]
        %v799 = vld [vmem:[#allocation5] sm:$0x1]
        %800 = vadd.xlane.f32.xlu0 %v786
        %v801 = vpop.xlane.xlu0 %800
        %802 = vadd.xlane.f32.xlu0 %v787
        %v803 = vpop.xlane.xlu0 %802
        %804 = vadd.xlane.f32.xlu0 %v788
        %v805 = vpop.xlane.xlu0 %804
        %806 = vadd.xlane.f32.xlu0 %v789
        %v807 = vpop.xlane.xlu0 %806
        %808 = vadd.xlane.f32.xlu0 %v790
        %v809 = vpop.xlane.xlu0 %808
        %810 = vadd.xlane.f32.xlu0 %v791
        %v811 = vpop.xlane.xlu0 %810
        %812 = vadd.xlane.f32.xlu0 %v792
        %v813 = vpop.xlane.xlu0 %812
        %814 = vadd.xlane.f32.xlu0 %v793
        %v815 = vpop.xlane.xlu0 %814
        %v816 = vrcp.pop 128.0
        %v817 = vmul.f32 128.0, %v816
        %v818 = vsub.f32 1.0, %v817
        %v819 = vmul.f32 %v816, %v818
        %v820 = vadd.f32 %v816, %v819
        %vm821 = vweird.f32 %v816
        %v822 = vsel %vm821, %v816, %v820
        %v823 = vmul.f32 %v801, %v822
        %v824 = vmul.f32 %v803, %v822
        %v825 = vmul.f32 %v805, %v822
        %v826 = vmul.f32 %v807, %v822
        %v827 = vmul.f32 %v809, %v822
        %v828 = vmul.f32 %v811, %v822
        %v829 = vmul.f32 %v813, %v822
        %v830 = vmul.f32 %v815, %v822
        %v831 = vsub.f32 %v786, %v823
        %v832 = vsub.f32 %v787, %v824
        %v833 = vsub.f32 %v788, %v825
        %v834 = vsub.f32 %v789, %v826
        %v835 = vsub.f32 %v790, %v827
        %v836 = vsub.f32 %v791, %v828
        %v837 = vsub.f32 %v792, %v829
        %v838 = vsub.f32 %v793, %v830
        %v839 = vmul.f32 %v831, %v831
        %v840 = vmul.f32 %v832, %v832
        %v841 = vmul.f32 %v833, %v833
        %v842 = vmul.f32 %v834, %v834
        %v843 = vmul.f32 %v835, %v835
        %v844 = vmul.f32 %v836, %v836
        %v845 = vmul.f32 %v837, %v837
        %v846 = vmul.f32 %v838, %v838
        %847 = vadd.xlane.f32.xlu0 %v839
        %v848 = vpop.xlane.xlu0 %847
        %849 = vadd.xlane.f32.xlu0 %v840
        %v850 = vpop.xlane.xlu0 %849
        %851 = vadd.xlane.f32.xlu0 %v841
        %v852 = vpop.xlane.xlu0 %851
        %853 = vadd.xlane.f32.xlu0 %v842
        %v854 = vpop.xlane.xlu0 %853
        %855 = vadd.xlane.f32.xlu0 %v843
        %v856 = vpop.xlane.xlu0 %855
        %857 = vadd.xlane.f32.xlu0 %v844
        %v858 = vpop.xlane.xlu0 %857
        %859 = vadd.xlane.f32.xlu0 %v845
        %v860 = vpop.xlane.xlu0 %859
        %861 = vadd.xlane.f32.xlu0 %v846
        %v862 = vpop.xlane.xlu0 %861
        %v863 = vmul.f32 %v848, %v822
        %v864 = vmul.f32 %v850, %v822
        %v865 = vmul.f32 %v852, %v822
        %v866 = vmul.f32 %v854, %v822
        %v867 = vmul.f32 %v856, %v822
        %v868 = vmul.f32 %v858, %v822
        %v869 = vmul.f32 %v860, %v822
        %v870 = vmul.f32 %v862, %v822
        %v871 = vadd.f32 %v863, 1e-05
        %v872 = vadd.f32 %v864, 1e-05
        %v873 = vadd.f32 %v865, 1e-05
        %v874 = vadd.f32 %v866, 1e-05
        %v875 = vadd.f32 %v867, 1e-05
        %v876 = vadd.f32 %v868, 1e-05
        %v877 = vadd.f32 %v869, 1e-05
        %v878 = vadd.f32 %v870, 1e-05
        %v879 = vrsqrt.pop %v871
        %v880 = vmul.f32 %v879, %v871
        %v881 = vmul.f32 %v880, %v879
        %v882 = vmul.f32 0.5, %v881
        %v883 = vsub.f32 1.5, %v882
        %v884 = vmul.f32 %v879, %v883
        %vm885 = vweird.f32 %v871
        %vm886 = vweird.f32 %v879
        %vm887 = vmor %vm885, %vm886
        %v888 = vsel %vm887, %v879, %v884
        %v889 = vrsqrt.pop %v872
        %v890 = vmul.f32 %v889, %v872
        %v891 = vmul.f32 %v890, %v889
        %v892 = vmul.f32 0.5, %v891
        %v893 = vsub.f32 1.5, %v892
        %v894 = vmul.f32 %v889, %v893
        %vm895 = vweird.f32 %v872
        %vm896 = vweird.f32 %v889
        %vm897 = vmor %vm895, %vm896
        %v898 = vsel %vm897, %v889, %v894
        %v899 = vrsqrt.pop %v873
        %v900 = vmul.f32 %v899, %v873
        %v901 = vmul.f32 %v900, %v899
        %v902 = vmul.f32 0.5, %v901
        %v903 = vsub.f32 1.5, %v902
        %v904 = vmul.f32 %v899, %v903
        %vm905 = vweird.f32 %v873
        %vm906 = vweird.f32 %v899
        %vm907 = vmor %vm905, %vm906
        %v908 = vsel %vm907, %v899, %v904
        %v909 = vrsqrt.pop %v874
        %v910 = vmul.f32 %v909, %v874
        %v911 = vmul.f32 %v910, %v909
        %v912 = vmul.f32 0.5, %v911
        %v913 = vsub.f32 1.5, %v912
        %v914 = vmul.f32 %v909, %v913
        %vm915 = vweird.f32 %v874
        %vm916 = vweird.f32 %v909
        %vm917 = vmor %vm915, %vm916
        %v918 = vsel %vm917, %v909, %v914
        %v919 = vrsqrt.pop %v875
        %v920 = vmul.f32 %v919, %v875
        %v921 = vmul.f32 %v920, %v919
        %v922 = vmul.f32 0.5, %v921
        %v923 = vsub.f32 1.5, %v922
        %v924 = vmul.f32 %v919, %v923
        %vm925 = vweird.f32 %v875
        %vm926 = vweird.f32 %v919
        %vm927 = vmor %vm925, %vm926
        %v928 = vsel %vm927, %v919, %v924
        %v929 = vrsqrt.pop %v876
        %v930 = vmul.f32 %v929, %v876
        %v931 = vmul.f32 %v930, %v929
        %v932 = vmul.f32 0.5, %v931
        %v933 = vsub.f32 1.5, %v932
        %v934 = vmul.f32 %v929, %v933
        %vm935 = vweird.f32 %v876
        %vm936 = vweird.f32 %v929
        %vm937 = vmor %vm935, %vm936
        %v938 = vsel %vm937, %v929, %v934
        %v939 = vrsqrt.pop %v877
        %v940 = vmul.f32 %v939, %v877
        %v941 = vmul.f32 %v940, %v939
        %v942 = vmul.f32 0.5, %v941
        %v943 = vsub.f32 1.5, %v942
        %v944 = vmul.f32 %v939, %v943
        %vm945 = vweird.f32 %v877
        %vm946 = vweird.f32 %v939
        %vm947 = vmor %vm945, %vm946
        %v948 = vsel %vm947, %v939, %v944
        %v949 = vrsqrt.pop %v878
        %v950 = vmul.f32 %v949, %v878
        %v951 = vmul.f32 %v950, %v949
        %v952 = vmul.f32 0.5, %v951
        %v953 = vsub.f32 1.5, %v952
        %v954 = vmul.f32 %v949, %v953
        %vm955 = vweird.f32 %v878
        %vm956 = vweird.f32 %v949
        %vm957 = vmor %vm955, %vm956
        %v958 = vsel %vm957, %v949, %v954
        %v959 = vmul.f32 %v831, %v888
        %v960 = vmul.f32 %v832, %v898
        %v961 = vmul.f32 %v833, %v908
        %v962 = vmul.f32 %v834, %v918
        %v963 = vmul.f32 %v835, %v928
        %v964 = vmul.f32 %v836, %v938
        %v965 = vmul.f32 %v837, %v948
        %v966 = vmul.f32 %v838, %v958
        %v968 = vperm.slane %v798, 0
        %v970 = vmul.f32 %v959, %v968
        %v971 = vmul.f32 %v960, %v968
        %v972 = vmul.f32 %v961, %v968
        %v973 = vmul.f32 %v962, %v968
        %v974 = vmul.f32 %v963, %v968
        %v975 = vmul.f32 %v964, %v968
        %v976 = vmul.f32 %v965, %v968
        %v977 = vmul.f32 %v966, %v968
        %v979 = vperm.slane %v799, 0
        %v981 = vadd.f32 %v970, %v979
        %v982 = vadd.f32 %v971, %v979
        %v983 = vadd.f32 %v972, %v979
        %v984 = vadd.f32 %v973, %v979
        %v985 = vadd.f32 %v974, %v979
        %v986 = vadd.f32 %v975, %v979
        %v987 = vadd.f32 %v976, %v979
        %v988 = vadd.f32 %v977, %v979
        %989 = vadd.xlane.f32.xlu0 %v794
        %v990 = vpop.xlane.xlu0 %989
        %991 = vadd.xlane.f32.xlu0 %v795
        %v992 = vpop.xlane.xlu0 %991
        %993 = vadd.xlane.f32.xlu0 %v796
        %v994 = vpop.xlane.xlu0 %993
        %995 = vadd.xlane.f32.xlu0 %v797
        %v996 = vpop.xlane.xlu0 %995
        %v997 = vmul.f32 %v990, %v822
        %v998 = vmul.f32 %v992, %v822
        %v999 = vmul.f32 %v994, %v822
        %v1000 = vmul.f32 %v996, %v822
        %v1001 = vsub.f32 %v794, %v997
        %v1002 = vsub.f32 %v795, %v998
        %v1003 = vsub.f32 %v796, %v999
        %v1004 = vsub.f32 %v797, %v1000
        %v1005 = vmul.f32 %v1001, %v1001
        %v1006 = vmul.f32 %v1002, %v1002
        %v1007 = vmul.f32 %v1003, %v1003
        %v1008 = vmul.f32 %v1004, %v1004
        %1009 = vadd.xlane.f32.xlu0 %v1005
        %v1010 = vpop.xlane.xlu0 %1009
        %1011 = vadd.xlane.f32.xlu0 %v1006
        %v1012 = vpop.xlane.xlu0 %1011
        %1013 = vadd.xlane.f32.xlu0 %v1007
        %v1014 = vpop.xlane.xlu0 %1013
        %1015 = vadd.xlane.f32.xlu0 %v1008
        %v1016 = vpop.xlane.xlu0 %1015
        %v1017 = vmul.f32 %v1010, %v822
        %v1018 = vmul.f32 %v1012, %v822
        %v1019 = vmul.f32 %v1014, %v822
        %v1020 = vmul.f32 %v1016, %v822
        %v1021 = vadd.f32 %v1017, 1e-05
        %v1022 = vadd.f32 %v1018, 1e-05
        %v1023 = vadd.f32 %v1019, 1e-05
        %v1024 = vadd.f32 %v1020, 1e-05
        %v1025 = vrsqrt.pop %v1021
        %v1026 = vmul.f32 %v1025, %v1021
        %v1027 = vmul.f32 %v1026, %v1025
        %v1028 = vmul.f32 0.5, %v1027
        %v1029 = vsub.f32 1.5, %v1028
        %v1030 = vmul.f32 %v1025, %v1029
        %vm1031 = vweird.f32 %v1021
        %vm1032 = vweird.f32 %v1025
        %vm1033 = vmor %vm1031, %vm1032
        %v1034 = vsel %vm1033, %v1025, %v1030
        %v1035 = vrsqrt.pop %v1022
        %v1036 = vmul.f32 %v1035, %v1022
        %v1037 = vmul.f32 %v1036, %v1035
        %v1038 = vmul.f32 0.5, %v1037
        %v1039 = vsub.f32 1.5, %v1038
        %v1040 = vmul.f32 %v1035, %v1039
        %vm1041 = vweird.f32 %v1022
        %vm1042 = vweird.f32 %v1035
        %vm1043 = vmor %vm1041, %vm1042
        %v1044 = vsel %vm1043, %v1035, %v1040
        %v1045 = vrsqrt.pop %v1023
        %v1046 = vmul.f32 %v1045, %v1023
        %v1047 = vmul.f32 %v1046, %v1045
        %v1048 = vmul.f32 0.5, %v1047
        %v1049 = vsub.f32 1.5, %v1048
        %v1050 = vmul.f32 %v1045, %v1049
        %vm1051 = vweird.f32 %v1023
        %vm1052 = vweird.f32 %v1045
        %vm1053 = vmor %vm1051, %vm1052
        %v1054 = vsel %vm1053, %v1045, %v1050
        %v1055 = vrsqrt.pop %v1024
        %v1056 = vmul.f32 %v1055, %v1024
        %v1057 = vmul.f32 %v1056, %v1055
        %v1058 = vmul.f32 0.5, %v1057
        %v1059 = vsub.f32 1.5, %v1058
        %v1060 = vmul.f32 %v1055, %v1059
        %vm1061 = vweird.f32 %v1024
        %vm1062 = vweird.f32 %v1055
        %vm1063 = vmor %vm1061, %vm1062
        %v1064 = vsel %vm1063, %v1055, %v1060
        %v1065 = vmul.f32 %v1001, %v1034
        %v1066 = vmul.f32 %v1002, %v1044
        %v1067 = vmul.f32 %v1003, %v1054
        %v1068 = vmul.f32 %v1004, %v1064
        %v1069 = vmul.f32 %v1065, %v968
        %v1070 = vmul.f32 %v1066, %v968
        %v1071 = vmul.f32 %v1067, %v968
        %v1072 = vmul.f32 %v1068, %v968
        %v1073 = vadd.f32 %v1069, %v979
        %v1074 = vadd.f32 %v1070, %v979
        %v1075 = vadd.f32 %v1071, %v979
        %v1076 = vadd.f32 %v1072, %v979
        %v1077 = vpack.c.bf16 %v982, %v981
        %v1078 = vpack.c.bf16 %v984, %v983
        %v1079 = vpack.c.bf16 %v986, %v985
        %v1080 = vpack.c.bf16 %v988, %v987
        %v1081 = vpack.c.bf16 %v1074, %v1073
        %v1082 = vpack.c.bf16 %v1076, %v1075
        %v1083 = vld [vmem:[%s4] sm:$0xf]
        %v1084 = vld [vmem:[%s4 + $0x4] sm:$0xf]
        %v1085 = vld [vmem:[%s4 + $0x8] sm:$0xf]
        %v1086 = vld [vmem:[%s4 + $0xc] sm:$0xf]
        %v1087 = vld [vmem:[%s4 + $0x10] sm:$0xf]
        %v1088 = vld [vmem:[%s4 + $0x14] sm:$0xf]
        %v1089 = vld [vmem:[%s4 + $0x18] sm:$0xf]
        %v1090 = vld [vmem:[%s4 + $0x1c] sm:$0xf]
        %v1091 = vld [vmem:[%s4 + $0x20] sm:$0xf]
        %v1092 = vld [vmem:[%s4 + $0x24] sm:$0xf]
        %v1093 = vld [vmem:[%s4 + $0x28] sm:$0xf]
        %v1094 = vld [vmem:[%s4 + $0x2c] sm:$0xf]
        %v1095 = vld [vmem:[%s4 + $0x30] sm:$0xf]
        %v1096 = vld [vmem:[%s4 + $0x34] sm:$0xf]
        %v1097 = vld [vmem:[%s4 + $0x38] sm:$0xf]
        %v1098 = vld [vmem:[%s4 + $0x3c] sm:$0xf]
        %v1099 = vld [vmem:[#allocation7] sm:$0x1]
        %v1101 = vperm.slane %v1099, 0
        %v1119 = vunpack.c.l.b16 %v1083
        %v1120 = vunpack.c.l.b16 %v1084
        %v1121 = vunpack.c.l.b16 %v1085
        %v1122 = vunpack.c.l.b16 %v1086
        %v1123 = vunpack.c.l.b16 %v1087
        %v1124 = vunpack.c.l.b16 %v1088
        %v1125 = vunpack.c.l.b16 %v1089
        %v1126 = vunpack.c.l.b16 %v1090
        %v1127 = vunpack.c.l.b16 %v1091
        %v1128 = vunpack.c.l.b16 %v1092
        %v1129 = vunpack.c.l.b16 %v1093
        %v1130 = vunpack.c.l.b16 %v1094
        %v1131 = vunpack.c.l.b16 %v1095
        %v1132 = vunpack.c.l.b16 %v1096
        %v1133 = vunpack.c.l.b16 %v1097
        %v1134 = vunpack.c.l.b16 %v1098
        %v1135 = vpack.c.b16 %v1120, %v1119
        %v1136 = vpack.c.b16 %v1122, %v1121
        %v1137 = vpack.c.b16 %v1124, %v1123
        %v1138 = vpack.c.b16 %v1126, %v1125
        %v1139 = vpack.c.b16 %v1128, %v1127
        %v1140 = vpack.c.b16 %v1130, %v1129
        %v1141 = vpack.c.b16 %v1132, %v1131
        %v1142 = vpack.c.b16 %v1134, %v1133
        %1151 = vmatpush.bf16.msra.mxu0 %v1142
        %1152 = vmatpush.bf16.msra.mxu0 %v1141
        %1153 = vmatpush.bf16.msra.mxu0 %v1140
        %1154 = vmatpush.bf16.msra.mxu0 %v1139
        %1155 = vmatpush.bf16.msra.mxu0 %v1138
        %1156 = vmatpush.bf16.msra.mxu0 %v1137
        %1157 = vmatpush.bf16.msra.mxu0 %v1136
        %1158 = vmatpush.bf16.msra.mxu0 %v1135
        %1159 = vmatmul.bf16.gmra.mxu0 %v1081
        %v1160 = vpop.f32.mrf.mxu0
        %v1161 = vadd.f32 %v1101, %v1160
        %v1162 = vpop.f32.mrf.mxu0
        %v1163 = vadd.f32 %v1101, %v1162
        %1164 = vmatmul.bf16.gmra.mxu0 %v1082
        %v1165 = vpop.f32.mrf.mxu0
        %v1166 = vadd.f32 %v1101, %v1165
        %v1167 = vpop.f32.mrf.mxu0
        %v1168 = vadd.f32 %v1101, %v1167
        %1169 = vdwg.mxu0
        %v1170 = vld [vmem:[%s6] sm:$0xf]
        %v1171 = vld [vmem:[%s6 + $0x4] sm:$0xf]
        %v1172 = vld [vmem:[%s6 + $0x8] sm:$0xf]
        %v1173 = vld [vmem:[%s6 + $0xc] sm:$0xf]
        %v1174 = vld [vmem:[%s6 + $0x10] sm:$0xf]
        %v1175 = vld [vmem:[%s6 + $0x14] sm:$0xf]
        %v1176 = vld [vmem:[%s6 + $0x18] sm:$0xf]
        %v1177 = vld [vmem:[%s6 + $0x1c] sm:$0xf]
        %v1178 = vld [vmem:[%s6 + $0x20] sm:$0xf]
        %v1179 = vld [vmem:[%s6 + $0x24] sm:$0xf]
        %v1180 = vld [vmem:[%s6 + $0x28] sm:$0xf]
        %v1181 = vld [vmem:[%s6 + $0x2c] sm:$0xf]
        %v1182 = vld [vmem:[%s6 + $0x30] sm:$0xf]
        %v1183 = vld [vmem:[%s6 + $0x34] sm:$0xf]
        %v1184 = vld [vmem:[%s6 + $0x38] sm:$0xf]
        %v1185 = vld [vmem:[%s6 + $0x3c] sm:$0xf]
        %v1186 = vld [vmem:[%s7] sm:$0x1]
        %v1188 = vperm.slane %v1186, 0
        %v1206 = vunpack.c.l.b16 %v1170
        %v1207 = vunpack.c.l.b16 %v1171
        %v1208 = vunpack.c.l.b16 %v1172
        %v1209 = vunpack.c.l.b16 %v1173
        %v1210 = vunpack.c.l.b16 %v1174
        %v1211 = vunpack.c.l.b16 %v1175
        %v1212 = vunpack.c.l.b16 %v1176
        %v1213 = vunpack.c.l.b16 %v1177
        %v1214 = vunpack.c.l.b16 %v1178
        %v1215 = vunpack.c.l.b16 %v1179
        %v1216 = vunpack.c.l.b16 %v1180
        %v1217 = vunpack.c.l.b16 %v1181
        %v1218 = vunpack.c.l.b16 %v1182
        %v1219 = vunpack.c.l.b16 %v1183
        %v1220 = vunpack.c.l.b16 %v1184
        %v1221 = vunpack.c.l.b16 %v1185
        %v1222 = vpack.c.b16 %v1207, %v1206
        %v1223 = vpack.c.b16 %v1209, %v1208
        %v1224 = vpack.c.b16 %v1211, %v1210
        %v1225 = vpack.c.b16 %v1213, %v1212
        %v1226 = vpack.c.b16 %v1215, %v1214
        %v1227 = vpack.c.b16 %v1217, %v1216
        %v1228 = vpack.c.b16 %v1219, %v1218
        %v1229 = vpack.c.b16 %v1221, %v1220
        %1238 = vmatpush.bf16.msra.mxu0 %v1229
        %1239 = vmatpush.bf16.msra.mxu0 %v1228
        %1240 = vmatpush.bf16.msra.mxu0 %v1227
        %1241 = vmatpush.bf16.msra.mxu0 %v1226
        %1242 = vmatpush.bf16.msra.mxu0 %v1225
        %1243 = vmatpush.bf16.msra.mxu0 %v1224
        %1244 = vmatpush.bf16.msra.mxu0 %v1223
        %1245 = vmatpush.bf16.msra.mxu0 %v1222
        %1246 = vmatmul.bf16.gmra.mxu0 %v1077
        %v1247 = vpop.f32.mrf.mxu0
        %v1248 = vadd.f32 %v1188, %v1247
        %v1249 = vpop.f32.mrf.mxu0
        %v1250 = vadd.f32 %v1188, %v1249
        %1251 = vmatmul.bf16.gmra.mxu0 %v1078
        %v1252 = vpop.f32.mrf.mxu0
        %v1253 = vadd.f32 %v1188, %v1252
        %v1254 = vpop.f32.mrf.mxu0
        %v1255 = vadd.f32 %v1188, %v1254
        %1256 = vmatmul.bf16.gmra.mxu0 %v1079
        %v1257 = vpop.f32.mrf.mxu0
        %v1258 = vadd.f32 %v1188, %v1257
        %v1259 = vpop.f32.mrf.mxu0
        %v1260 = vadd.f32 %v1188, %v1259
        %1261 = vmatmul.bf16.gmra.mxu0 %v1080
        %v1262 = vpop.f32.mrf.mxu0
        %v1263 = vadd.f32 %v1188, %v1262
        %v1264 = vpop.f32.mrf.mxu0
        %v1265 = vadd.f32 %v1188, %v1264
        %1266 = vdwg.mxu0
        %v1267 = vld [vmem:[%s8] sm:$0xf]
        %v1268 = vld [vmem:[%s8 + $0x4] sm:$0xf]
        %v1269 = vld [vmem:[%s8 + $0x8] sm:$0xf]
        %v1270 = vld [vmem:[%s8 + $0xc] sm:$0xf]
        %v1271 = vld [vmem:[%s8 + $0x10] sm:$0xf]
        %v1272 = vld [vmem:[%s8 + $0x14] sm:$0xf]
        %v1273 = vld [vmem:[%s8 + $0x18] sm:$0xf]
        %v1274 = vld [vmem:[%s8 + $0x1c] sm:$0xf]
        %v1275 = vld [vmem:[%s8 + $0x20] sm:$0xf]
        %v1276 = vld [vmem:[%s8 + $0x24] sm:$0xf]
        %v1277 = vld [vmem:[%s8 + $0x28] sm:$0xf]
        %v1278 = vld [vmem:[%s8 + $0x2c] sm:$0xf]
        %v1279 = vld [vmem:[%s8 + $0x30] sm:$0xf]
        %v1280 = vld [vmem:[%s8 + $0x34] sm:$0xf]
        %v1281 = vld [vmem:[%s8 + $0x38] sm:$0xf]
        %v1282 = vld [vmem:[%s8 + $0x3c] sm:$0xf]
        %v1283 = vld [vmem:[%s9] sm:$0x1]
        %v1285 = vperm.slane %v1283, 0
        %v1303 = vunpack.c.l.b16 %v1267
        %v1304 = vunpack.c.l.b16 %v1268
        %v1305 = vunpack.c.l.b16 %v1269
        %v1306 = vunpack.c.l.b16 %v1270
        %v1307 = vunpack.c.l.b16 %v1271
        %v1308 = vunpack.c.l.b16 %v1272
        %v1309 = vunpack.c.l.b16 %v1273
        %v1310 = vunpack.c.l.b16 %v1274
        %v1311 = vunpack.c.l.b16 %v1275
        %v1312 = vunpack.c.l.b16 %v1276
        %v1313 = vunpack.c.l.b16 %v1277
        %v1314 = vunpack.c.l.b16 %v1278
        %v1315 = vunpack.c.l.b16 %v1279
        %v1316 = vunpack.c.l.b16 %v1280
        %v1317 = vunpack.c.l.b16 %v1281
        %v1318 = vunpack.c.l.b16 %v1282
        %v1319 = vpack.c.b16 %v1304, %v1303
        %v1320 = vpack.c.b16 %v1306, %v1305
        %v1321 = vpack.c.b16 %v1308, %v1307
        %v1322 = vpack.c.b16 %v1310, %v1309
        %v1323 = vpack.c.b16 %v1312, %v1311
        %v1324 = vpack.c.b16 %v1314, %v1313
        %v1325 = vpack.c.b16 %v1316, %v1315
        %v1326 = vpack.c.b16 %v1318, %v1317
        %1335 = vmatpush.bf16.msra.mxu0 %v1326
        %1336 = vmatpush.bf16.msra.mxu0 %v1325
        %1337 = vmatpush.bf16.msra.mxu0 %v1324
        %1338 = vmatpush.bf16.msra.mxu0 %v1323
        %1339 = vmatpush.bf16.msra.mxu0 %v1322
        %1340 = vmatpush.bf16.msra.mxu0 %v1321
        %1341 = vmatpush.bf16.msra.mxu0 %v1320
        %1342 = vmatpush.bf16.msra.mxu0 %v1319
        %1343 = vmatmul.bf16.gmra.mxu0 %v1077
        %v1344 = vpop.f32.mrf.mxu0
        %v1345 = vadd.f32 %v1285, %v1344
        %v1346 = vpop.f32.mrf.mxu0
        %v1347 = vadd.f32 %v1285, %v1346
        %1348 = vmatmul.bf16.gmra.mxu0 %v1078
        %v1349 = vpop.f32.mrf.mxu0
        %v1350 = vadd.f32 %v1285, %v1349
        %v1351 = vpop.f32.mrf.mxu0
        %v1352 = vadd.f32 %v1285, %v1351
        %1353 = vmatmul.bf16.gmra.mxu0 %v1079
        %v1354 = vpop.f32.mrf.mxu0
        %v1355 = vadd.f32 %v1285, %v1354
        %v1356 = vpop.f32.mrf.mxu0
        %v1357 = vadd.f32 %v1285, %v1356
        %1358 = vmatmul.bf16.gmra.mxu0 %v1080
        %v1359 = vpop.f32.mrf.mxu0
        %v1360 = vadd.f32 %v1285, %v1359
        %v1361 = vpop.f32.mrf.mxu0
        %v1362 = vadd.f32 %v1285, %v1361
        %1363 = vdwg.mxu0
        %v1364 = vpack.c.bf16 %v1163, %v1161
        %v1365 = vpack.c.bf16 %v1168, %v1166
        %v1366 = vpack.c.bf16 %v1250, %v1248
        %v1367 = vpack.c.bf16 %v1255, %v1253
        %v1368 = vpack.c.bf16 %v1260, %v1258
        %v1369 = vpack.c.bf16 %v1265, %v1263
        %vm1370 = vcmask 523264
        %v1372 = vsel %vm1370, %v1364, 0
        %v1375 = vsel %vm1370, %v1365, 0
        %v1378 = vsel %vm1370, %v1366, 0
        %v1381 = vsel %vm1370, %v1367, 0
        %v1384 = vsel %vm1370, %v1368, 0
        %v1387 = vsel %vm1370, %v1369, 0
        %1389 = vmatpush.bf16.xpose.msra.mxu0 0
        %1390 = vmatpush.bf16.xpose.msra.mxu0 0
        %1391 = vmatpush.bf16.xpose.msra.mxu0 0
        %1392 = vmatpush.bf16.xpose.msra.mxu0 0
        %1393 = vmatpush.bf16.xpose.msra.mxu0 %v1387
        %1394 = vmatpush.bf16.xpose.msra.mxu0 %v1384
        %1395 = vmatpush.bf16.xpose.msra.mxu0 %v1381
        %1396 = vmatpush.bf16.xpose.msra.mxu0 %v1378
        %1397 = vmatmul.bf16.gmra.mxu0 %v1372
        %v1398 = vpop.f32.mrf.mxu0
        %v1399 = vadd.f32 0.0, %v1398
        %v1400 = vpop.f32.mrf.mxu0
        %v1401 = vadd.f32 0.0, %v1400
        %1402 = vmatmul.bf16.gmra.mxu0 %v1375
        %v1403 = vpop.f32.mrf.mxu0
        %v1404 = vadd.f32 0.0, %v1403
        %v1405 = vpop.f32.mrf.mxu0
        %v1406 = vadd.f32 0.0, %v1405
        %1407 = vdwg.mxu0
        %v1408 = vmul.f32 %v1399, 0.125
        %v1409 = vmul.f32 %v1401, 0.125
        %v1410 = vmul.f32 %v1404, 0.125
        %v1411 = vmul.f32 %v1406, 0.125
        %v1412 = vsel %vm1370, %v1408, -inf
        %1413 = vmax.xlane.f32.xlu0 %v1412
        %v1414 = vpop.xlane.xlu0 %1413
        %v1415 = vsel %vm1370, %v1409, -inf
        %1416 = vmax.xlane.f32.xlu0 %v1415
        %v1417 = vpop.xlane.xlu0 %1416
        %v1418 = vsel %vm1370, %v1410, -inf
        %1419 = vmax.xlane.f32.xlu0 %v1418
        %v1420 = vpop.xlane.xlu0 %1419
        %v1421 = vsel %vm1370, %v1411, -inf
        %1422 = vmax.xlane.f32.xlu0 %v1421
        %v1423 = vpop.xlane.xlu0 %1422
        %v1424 = vsub.f32 %v1408, %v1414
        %v1425 = vsub.f32 %v1409, %v1417
        %v1426 = vsub.f32 %v1410, %v1420
        %v1427 = vsub.f32 %v1411, %v1423
        %v1428 = vmul.f32 %v1424, 1.442695
        %v1429 = vpow.pop %v1428
        %v1430 = vmul.f32 %v1425, 1.442695
        %v1431 = vpow.pop %v1430
        %v1432 = vmul.f32 %v1426, 1.442695
        %v1433 = vpow.pop %v1432
        %v1434 = vmul.f32 %v1427, 1.442695
        %v1435 = vpow.pop %v1434
        %v1436 = vsel %vm1370, %v1429, 0.0
        %1437 = vadd.xlane.f32.xlu0 %v1436
        %v1438 = vpop.xlane.xlu0 %1437
        %v1439 = vsel %vm1370, %v1431, 0.0
        %1440 = vadd.xlane.f32.xlu0 %v1439
        %v1441 = vpop.xlane.xlu0 %1440
        %v1442 = vsel %vm1370, %v1433, 0.0
        %1443 = vadd.xlane.f32.xlu0 %v1442
        %v1444 = vpop.xlane.xlu0 %1443
        %v1445 = vsel %vm1370, %v1435, 0.0
        %1446 = vadd.xlane.f32.xlu0 %v1445
        %v1447 = vpop.xlane.xlu0 %1446
        %v1448 = vrcp.pop %v1438
        %v1449 = vrcp.pop %v1441
        %v1450 = vrcp.pop %v1444
        %v1451 = vrcp.pop %v1447
        %v1452 = vmul.f32 %v1429, %v1448
        %v1453 = vmul.f32 %v1431, %v1449
        %v1454 = vmul.f32 %v1433, %v1450
        %v1455 = vmul.f32 %v1435, %v1451
        %v1456 = vpack.c.bf16 %v1453, %v1452
        %v1457 = vpack.c.bf16 %v1455, %v1454
        %v1458 = vpack.c.bf16 %v1347, %v1345
        %v1459 = vpack.c.bf16 %v1352, %v1350
        %v1460 = vpack.c.bf16 %v1357, %v1355
        %v1461 = vpack.c.bf16 %v1362, %v1360
        %v1463 = vsel %vm1370, %v1456, 0
        %v1466 = vsel %vm1370, %v1457, 0
        %1468 = vmatpush.bf16.msra.mxu0 0
        %1469 = vmatpush.bf16.msra.mxu0 0
        %1470 = vmatpush.bf16.msra.mxu0 0
        %1471 = vmatpush.bf16.msra.mxu0 0
        %1472 = vmatpush.bf16.msra.mxu0 %v1461
        %1473 = vmatpush.bf16.msra.mxu0 %v1460
        %1474 = vmatpush.bf16.msra.mxu0 %v1459
        %1475 = vmatpush.bf16.msra.mxu0 %v1458
        %1476 = vmatmul.bf16.gmra.mxu0 %v1463
        %v1477 = vpop.f32.mrf.mxu0
        %v1478 = vadd.f32 0.0, %v1477
        %v1479 = vpop.f32.mrf.mxu0
        %v1480 = vadd.f32 0.0, %v1479
        %1481 = vmatmul.bf16.gmra.mxu0 %v1466
        %v1482 = vpop.f32.mrf.mxu0
        %v1483 = vadd.f32 0.0, %v1482
        %v1484 = vpop.f32.mrf.mxu0
        %v1485 = vadd.f32 0.0, %v1484
        %1486 = vdwg.mxu0
        %v1487 = vpack.c.bf16 %v1480, %v1478
        %v1488 = vpack.c.bf16 %v1485, %v1483
        %v1489 = vld [vmem:[%s10] sm:$0xf]
        %v1490 = vld [vmem:[%s10 + $0x4] sm:$0xf]
        %v1491 = vld [vmem:[%s10 + $0x8] sm:$0xf]
        %v1492 = vld [vmem:[%s10 + $0xc] sm:$0xf]
        %v1493 = vld [vmem:[%s10 + $0x10] sm:$0xf]
        %v1494 = vld [vmem:[%s10 + $0x14] sm:$0xf]
        %v1495 = vld [vmem:[%s10 + $0x18] sm:$0xf]
        %v1496 = vld [vmem:[%s10 + $0x1c] sm:$0xf]
        %s1497 = scalar_lea.vmem %s4, 64
        %v1498 = vld [vmem:[%s1497] sm:$0xf]
        %v1499 = vld [vmem:[%s1497 + $0x4] sm:$0xf]
        %v1500 = vld [vmem:[%s1497 + $0x8] sm:$0xf]
        %v1501 = vld [vmem:[%s1497 + $0xc] sm:$0xf]
        %v1502 = vld [vmem:[%s1497 + $0x10] sm:$0xf]
        %v1503 = vld [vmem:[%s1497 + $0x14] sm:$0xf]
        %v1504 = vld [vmem:[%s1497 + $0x18] sm:$0xf]
        %v1505 = vld [vmem:[%s1497 + $0x1c] sm:$0xf]
        %v1506 = vld [vmem:[%s1497 + $0x20] sm:$0xf]
        %v1507 = vld [vmem:[%s1497 + $0x24] sm:$0xf]
        %v1508 = vld [vmem:[%s1497 + $0x28] sm:$0xf]
        %v1509 = vld [vmem:[%s1497 + $0x2c] sm:$0xf]
        %v1510 = vld [vmem:[%s1497 + $0x30] sm:$0xf]
        %v1511 = vld [vmem:[%s1497 + $0x34] sm:$0xf]
        %v1512 = vld [vmem:[%s1497 + $0x38] sm:$0xf]
        %v1513 = vld [vmem:[%s1497 + $0x3c] sm:$0xf]
        %s1514 = scalar_lea.vmem [#allocation7], 1
        %v1515 = vld [vmem:[%s1514] sm:$0x1]
        %v1517 = vperm.slane %v1515, 0
        %v1535 = vunpack.c.l.b16 %v1498
        %v1536 = vunpack.c.l.b16 %v1499
        %v1537 = vunpack.c.l.b16 %v1500
        %v1538 = vunpack.c.l.b16 %v1501
        %v1539 = vunpack.c.l.b16 %v1502
        %v1540 = vunpack.c.l.b16 %v1503
        %v1541 = vunpack.c.l.b16 %v1504
        %v1542 = vunpack.c.l.b16 %v1505
        %v1543 = vunpack.c.l.b16 %v1506
        %v1544 = vunpack.c.l.b16 %v1507
        %v1545 = vunpack.c.l.b16 %v1508
        %v1546 = vunpack.c.l.b16 %v1509
        %v1547 = vunpack.c.l.b16 %v1510
        %v1548 = vunpack.c.l.b16 %v1511
        %v1549 = vunpack.c.l.b16 %v1512
        %v1550 = vunpack.c.l.b16 %v1513
        %v1551 = vpack.c.b16 %v1536, %v1535
        %v1552 = vpack.c.b16 %v1538, %v1537
        %v1553 = vpack.c.b16 %v1540, %v1539
        %v1554 = vpack.c.b16 %v1542, %v1541
        %v1555 = vpack.c.b16 %v1544, %v1543
        %v1556 = vpack.c.b16 %v1546, %v1545
        %v1557 = vpack.c.b16 %v1548, %v1547
        %v1558 = vpack.c.b16 %v1550, %v1549
        %1567 = vmatpush.bf16.msra.mxu0 %v1558
        %1568 = vmatpush.bf16.msra.mxu0 %v1557
        %1569 = vmatpush.bf16.msra.mxu0 %v1556
        %1570 = vmatpush.bf16.msra.mxu0 %v1555
        %1571 = vmatpush.bf16.msra.mxu0 %v1554
        %1572 = vmatpush.bf16.msra.mxu0 %v1553
        %1573 = vmatpush.bf16.msra.mxu0 %v1552
        %1574 = vmatpush.bf16.msra.mxu0 %v1551
        %1575 = vmatmul.bf16.gmra.mxu0 %v1081
        %v1576 = vpop.f32.mrf.mxu0
        %v1577 = vadd.f32 %v1517, %v1576
        %v1578 = vpop.f32.mrf.mxu0
        %v1579 = vadd.f32 %v1517, %v1578
        %1580 = vmatmul.bf16.gmra.mxu0 %v1082
        %v1581 = vpop.f32.mrf.mxu0
        %v1582 = vadd.f32 %v1517, %v1581
        %v1583 = vpop.f32.mrf.mxu0
        %v1584 = vadd.f32 %v1517, %v1583
        %1585 = vdwg.mxu0
        %s1586 = scalar_lea.vmem %s6, 64
        %v1587 = vld [vmem:[%s1586] sm:$0xf]
        %v1588 = vld [vmem:[%s1586 + $0x4] sm:$0xf]
        %v1589 = vld [vmem:[%s1586 + $0x8] sm:$0xf]
        %v1590 = vld [vmem:[%s1586 + $0xc] sm:$0xf]
        %v1591 = vld [vmem:[%s1586 + $0x10] sm:$0xf]
        %v1592 = vld [vmem:[%s1586 + $0x14] sm:$0xf]
        %v1593 = vld [vmem:[%s1586 + $0x18] sm:$0xf]
        %v1594 = vld [vmem:[%s1586 + $0x1c] sm:$0xf]
        %v1595 = vld [vmem:[%s1586 + $0x20] sm:$0xf]
        %v1596 = vld [vmem:[%s1586 + $0x24] sm:$0xf]
        %v1597 = vld [vmem:[%s1586 + $0x28] sm:$0xf]
        %v1598 = vld [vmem:[%s1586 + $0x2c] sm:$0xf]
        %v1599 = vld [vmem:[%s1586 + $0x30] sm:$0xf]
        %v1600 = vld [vmem:[%s1586 + $0x34] sm:$0xf]
        %v1601 = vld [vmem:[%s1586 + $0x38] sm:$0xf]
        %v1602 = vld [vmem:[%s1586 + $0x3c] sm:$0xf]
        %s1603 = scalar_lea.vmem %s7, 1
        %v1604 = vld [vmem:[%s1603] sm:$0x1]
        %v1606 = vperm.slane %v1604, 0
        %v1624 = vunpack.c.l.b16 %v1587
        %v1625 = vunpack.c.l.b16 %v1588
        %v1626 = vunpack.c.l.b16 %v1589
        %v1627 = vunpack.c.l.b16 %v1590
        %v1628 = vunpack.c.l.b16 %v1591
        %v1629 = vunpack.c.l.b16 %v1592
        %v1630 = vunpack.c.l.b16 %v1593
        %v1631 = vunpack.c.l.b16 %v1594
        %v1632 = vunpack.c.l.b16 %v1595
        %v1633 = vunpack.c.l.b16 %v1596
        %v1634 = vunpack.c.l.b16 %v1597
        %v1635 = vunpack.c.l.b16 %v1598
        %v1636 = vunpack.c.l.b16 %v1599
        %v1637 = vunpack.c.l.b16 %v1600
        %v1638 = vunpack.c.l.b16 %v1601
        %v1639 = vunpack.c.l.b16 %v1602
        %v1640 = vpack.c.b16 %v1625, %v1624
        %v1641 = vpack.c.b16 %v1627, %v1626
        %v1642 = vpack.c.b16 %v1629, %v1628
        %v1643 = vpack.c.b16 %v1631, %v1630
        %v1644 = vpack.c.b16 %v1633, %v1632
        %v1645 = vpack.c.b16 %v1635, %v1634
        %v1646 = vpack.c.b16 %v1637, %v1636
        %v1647 = vpack.c.b16 %v1639, %v1638
        %1656 = vmatpush.bf16.msra.mxu0 %v1647
        %1657 = vmatpush.bf16.msra.mxu0 %v1646
        %1658 = vmatpush.bf16.msra.mxu0 %v1645
        %1659 = vmatpush.bf16.msra.mxu0 %v1644
        %1660 = vmatpush.bf16.msra.mxu0 %v1643
        %1661 = vmatpush.bf16.msra.mxu0 %v1642
        %1662 = vmatpush.bf16.msra.mxu0 %v1641
        %1663 = vmatpush.bf16.msra.mxu0 %v1640
        %1664 = vmatmul.bf16.gmra.mxu0 %v1077
        %v1665 = vpop.f32.mrf.mxu0
        %v1666 = vadd.f32 %v1606, %v1665
        %v1667 = vpop.f32.mrf.mxu0
        %v1668 = vadd.f32 %v1606, %v1667
        %1669 = vmatmul.bf16.gmra.mxu0 %v1078
        %v1670 = vpop.f32.mrf.mxu0
        %v1671 = vadd.f32 %v1606, %v1670
        %v1672 = vpop.f32.mrf.mxu0
        %v1673 = vadd.f32 %v1606, %v1672
        %1674 = vmatmul.bf16.gmra.mxu0 %v1079
        %v1675 = vpop.f32.mrf.mxu0
        %v1676 = vadd.f32 %v1606, %v1675
        %v1677 = vpop.f32.mrf.mxu0
        %v1678 = vadd.f32 %v1606, %v1677
        %1679 = vmatmul.bf16.gmra.mxu0 %v1080
        %v1680 = vpop.f32.mrf.mxu0
        %v1681 = vadd.f32 %v1606, %v1680
        %v1682 = vpop.f32.mrf.mxu0
        %v1683 = vadd.f32 %v1606, %v1682
        %1684 = vdwg.mxu0
        %s1685 = scalar_lea.vmem %s8, 64
        %v1686 = vld [vmem:[%s1685] sm:$0xf]
        %v1687 = vld [vmem:[%s1685 + $0x4] sm:$0xf]
        %v1688 = vld [vmem:[%s1685 + $0x8] sm:$0xf]
        %v1689 = vld [vmem:[%s1685 + $0xc] sm:$0xf]
        %v1690 = vld [vmem:[%s1685 + $0x10] sm:$0xf]
        %v1691 = vld [vmem:[%s1685 + $0x14] sm:$0xf]
        %v1692 = vld [vmem:[%s1685 + $0x18] sm:$0xf]
        %v1693 = vld [vmem:[%s1685 + $0x1c] sm:$0xf]
        %v1694 = vld [vmem:[%s1685 + $0x20] sm:$0xf]
        %v1695 = vld [vmem:[%s1685 + $0x24] sm:$0xf]
        %v1696 = vld [vmem:[%s1685 + $0x28] sm:$0xf]
        %v1697 = vld [vmem:[%s1685 + $0x2c] sm:$0xf]
        %v1698 = vld [vmem:[%s1685 + $0x30] sm:$0xf]
        %v1699 = vld [vmem:[%s1685 + $0x34] sm:$0xf]
        %v1700 = vld [vmem:[%s1685 + $0x38] sm:$0xf]
        %v1701 = vld [vmem:[%s1685 + $0x3c] sm:$0xf]
        %s1702 = scalar_lea.vmem %s9, 1
        %v1703 = vld [vmem:[%s1702] sm:$0x1]
        %v1705 = vperm.slane %v1703, 0
        %v1723 = vunpack.c.l.b16 %v1686
        %v1724 = vunpack.c.l.b16 %v1687
        %v1725 = vunpack.c.l.b16 %v1688
        %v1726 = vunpack.c.l.b16 %v1689
        %v1727 = vunpack.c.l.b16 %v1690
        %v1728 = vunpack.c.l.b16 %v1691
        %v1729 = vunpack.c.l.b16 %v1692
        %v1730 = vunpack.c.l.b16 %v1693
        %v1731 = vunpack.c.l.b16 %v1694
        %v1732 = vunpack.c.l.b16 %v1695
        %v1733 = vunpack.c.l.b16 %v1696
        %v1734 = vunpack.c.l.b16 %v1697
        %v1735 = vunpack.c.l.b16 %v1698
        %v1736 = vunpack.c.l.b16 %v1699
        %v1737 = vunpack.c.l.b16 %v1700
        %v1738 = vunpack.c.l.b16 %v1701
        %v1739 = vpack.c.b16 %v1724, %v1723
        %v1740 = vpack.c.b16 %v1726, %v1725
        %v1741 = vpack.c.b16 %v1728, %v1727
        %v1742 = vpack.c.b16 %v1730, %v1729
        %v1743 = vpack.c.b16 %v1732, %v1731
        %v1744 = vpack.c.b16 %v1734, %v1733
        %v1745 = vpack.c.b16 %v1736, %v1735
        %v1746 = vpack.c.b16 %v1738, %v1737
        %1755 = vmatpush.bf16.msra.mxu0 %v1746
        %1756 = vmatpush.bf16.msra.mxu0 %v1745
        %1757 = vmatpush.bf16.msra.mxu0 %v1744
        %1758 = vmatpush.bf16.msra.mxu0 %v1743
        %1759 = vmatpush.bf16.msra.mxu0 %v1742
        %1760 = vmatpush.bf16.msra.mxu0 %v1741
        %1761 = vmatpush.bf16.msra.mxu0 %v1740
        %1762 = vmatpush.bf16.msra.mxu0 %v1739
        %1763 = vmatmul.bf16.gmra.mxu0 %v1077
        %v1764 = vpop.f32.mrf.mxu0
        %v1765 = vadd.f32 %v1705, %v1764
        %v1766 = vpop.f32.mrf.mxu0
        %v1767 = vadd.f32 %v1705, %v1766
        %1768 = vmatmul.bf16.gmra.mxu0 %v1078
        %v1769 = vpop.f32.mrf.mxu0
        %v1770 = vadd.f32 %v1705, %v1769
        %v1771 = vpop.f32.mrf.mxu0
        %v1772 = vadd.f32 %v1705, %v1771
        %1773 = vmatmul.bf16.gmra.mxu0 %v1079
        %v1774 = vpop.f32.mrf.mxu0
        %v1775 = vadd.f32 %v1705, %v1774
        %v1776 = vpop.f32.mrf.mxu0
        %v1777 = vadd.f32 %v1705, %v1776
        %1778 = vmatmul.bf16.gmra.mxu0 %v1080
        %v1779 = vpop.f32.mrf.mxu0
        %v1780 = vadd.f32 %v1705, %v1779
        %v1781 = vpop.f32.mrf.mxu0
        %v1782 = vadd.f32 %v1705, %v1781
        %1783 = vdwg.mxu0
        %v1784 = vpack.c.bf16 %v1579, %v1577
        %v1785 = vpack.c.bf16 %v1584, %v1582
        %v1786 = vpack.c.bf16 %v1668, %v1666
        %v1787 = vpack.c.bf16 %v1673, %v1671
        %v1788 = vpack.c.bf16 %v1678, %v1676
        %v1789 = vpack.c.bf16 %v1683, %v1681
        %v1791 = vsel %vm1370, %v1784, 0
        %v1794 = vsel %vm1370, %v1785, 0
        %v1797 = vsel %vm1370, %v1786, 0
        %v1800 = vsel %vm1370, %v1787, 0
        %v1803 = vsel %vm1370, %v1788, 0
        %v1806 = vsel %vm1370, %v1789, 0
        %1808 = vmatpush.bf16.xpose.msra.mxu0 0
        %1809 = vmatpush.bf16.xpose.msra.mxu0 0
        %1810 = vmatpush.bf16.xpose.msra.mxu0 0
        %1811 = vmatpush.bf16.xpose.msra.mxu0 0
        %1812 = vmatpush.bf16.xpose.msra.mxu0 %v1806
        %1813 = vmatpush.bf16.xpose.msra.mxu0 %v1803
        %1814 = vmatpush.bf16.xpose.msra.mxu0 %v1800
        %1815 = vmatpush.bf16.xpose.msra.mxu0 %v1797
        %1816 = vmatmul.bf16.gmra.mxu0 %v1791
        %v1817 = vpop.f32.mrf.mxu0
        %v1818 = vadd.f32 0.0, %v1817
        %v1819 = vpop.f32.mrf.mxu0
        %v1820 = vadd.f32 0.0, %v1819
        %1821 = vmatmul.bf16.gmra.mxu0 %v1794
        %v1822 = vpop.f32.mrf.mxu0
        %v1823 = vadd.f32 0.0, %v1822
        %v1824 = vpop.f32.mrf.mxu0
        %v1825 = vadd.f32 0.0, %v1824
        %1826 = vdwg.mxu0
        %v1827 = vmul.f32 %v1818, 0.125
        %v1828 = vmul.f32 %v1820, 0.125
        %v1829 = vmul.f32 %v1823, 0.125
        %v1830 = vmul.f32 %v1825, 0.125
        %v1831 = vsel %vm1370, %v1827, -inf
        %1832 = vmax.xlane.f32.xlu0 %v1831
        %v1833 = vpop.xlane.xlu0 %1832
        %v1834 = vsel %vm1370, %v1828, -inf
        %1835 = vmax.xlane.f32.xlu0 %v1834
        %v1836 = vpop.xlane.xlu0 %1835
        %v1837 = vsel %vm1370, %v1829, -inf
        %1838 = vmax.xlane.f32.xlu0 %v1837
        %v1839 = vpop.xlane.xlu0 %1838
        %v1840 = vsel %vm1370, %v1830, -inf
        %1841 = vmax.xlane.f32.xlu0 %v1840
        %v1842 = vpop.xlane.xlu0 %1841
        %v1843 = vsub.f32 %v1827, %v1833
        %v1844 = vsub.f32 %v1828, %v1836
        %v1845 = vsub.f32 %v1829, %v1839
        %v1846 = vsub.f32 %v1830, %v1842
        %v1847 = vmul.f32 %v1843, 1.442695
        %v1848 = vpow.pop %v1847
        %v1849 = vmul.f32 %v1844, 1.442695
        %v1850 = vpow.pop %v1849
        %v1851 = vmul.f32 %v1845, 1.442695
        %v1852 = vpow.pop %v1851
        %v1853 = vmul.f32 %v1846, 1.442695
        %v1854 = vpow.pop %v1853
        %v1855 = vsel %vm1370, %v1848, 0.0
        %1856 = vadd.xlane.f32.xlu0 %v1855
        %v1857 = vpop.xlane.xlu0 %1856
        %v1858 = vsel %vm1370, %v1850, 0.0
        %1859 = vadd.xlane.f32.xlu0 %v1858
        %v1860 = vpop.xlane.xlu0 %1859
        %v1861 = vsel %vm1370, %v1852, 0.0
        %1862 = vadd.xlane.f32.xlu0 %v1861
        %v1863 = vpop.xlane.xlu0 %1862
        %v1864 = vsel %vm1370, %v1854, 0.0
        %1865 = vadd.xlane.f32.xlu0 %v1864
        %v1866 = vpop.xlane.xlu0 %1865
        %v1867 = vrcp.pop %v1857
        %v1868 = vrcp.pop %v1860
        %v1869 = vrcp.pop %v1863
        %v1870 = vrcp.pop %v1866
        %v1871 = vmul.f32 %v1848, %v1867
        %v1872 = vmul.f32 %v1850, %v1868
        %v1873 = vmul.f32 %v1852, %v1869
        %v1874 = vmul.f32 %v1854, %v1870
        %v1875 = vpack.c.bf16 %v1872, %v1871
        %v1876 = vpack.c.bf16 %v1874, %v1873
        %v1877 = vpack.c.bf16 %v1767, %v1765
        %v1878 = vpack.c.bf16 %v1772, %v1770
        %v1879 = vpack.c.bf16 %v1777, %v1775
        %v1880 = vpack.c.bf16 %v1782, %v1780
        %v1882 = vsel %vm1370, %v1875, 0
        %v1885 = vsel %vm1370, %v1876, 0
        %1887 = vmatpush.bf16.msra.mxu0 0
        %1888 = vmatpush.bf16.msra.mxu0 0
        %1889 = vmatpush.bf16.msra.mxu0 0
        %1890 = vmatpush.bf16.msra.mxu0 0
        %1891 = vmatpush.bf16.msra.mxu0 %v1880
        %1892 = vmatpush.bf16.msra.mxu0 %v1879
        %1893 = vmatpush.bf16.msra.mxu0 %v1878
        %1894 = vmatpush.bf16.msra.mxu0 %v1877
        %1895 = vmatmul.bf16.gmra.mxu0 %v1882
        %v1896 = vpop.f32.mrf.mxu0
        %v1897 = vadd.f32 0.0, %v1896
        %v1898 = vpop.f32.mrf.mxu0
        %v1899 = vadd.f32 0.0, %v1898
        %1900 = vmatmul.bf16.gmra.mxu0 %v1885
        %v1901 = vpop.f32.mrf.mxu0
        %v1902 = vadd.f32 0.0, %v1901
        %v1903 = vpop.f32.mrf.mxu0
        %v1904 = vadd.f32 0.0, %v1903
        %1905 = vdwg.mxu0
        %v1906 = vpack.c.bf16 %v1899, %v1897
        %v1907 = vpack.c.bf16 %v1904, %v1902
        %s1908 = scalar_lea.vmem %s10, 32
        %v1909 = vld [vmem:[%s1908] sm:$0xf]
        %v1910 = vld [vmem:[%s1908 + $0x4] sm:$0xf]
        %v1911 = vld [vmem:[%s1908 + $0x8] sm:$0xf]
        %v1912 = vld [vmem:[%s1908 + $0xc] sm:$0xf]
        %v1913 = vld [vmem:[%s1908 + $0x10] sm:$0xf]
        %v1914 = vld [vmem:[%s1908 + $0x14] sm:$0xf]
        %v1915 = vld [vmem:[%s1908 + $0x18] sm:$0xf]
        %v1916 = vld [vmem:[%s1908 + $0x1c] sm:$0xf]
        %v1925 = vunpack.c.l.b16 %v1909
        %v1926 = vunpack.c.l.b16 %v1910
        %v1927 = vunpack.c.l.b16 %v1911
        %v1928 = vunpack.c.l.b16 %v1912
        %v1929 = vunpack.c.l.b16 %v1913
        %v1930 = vunpack.c.l.b16 %v1914
        %v1931 = vunpack.c.l.b16 %v1915
        %v1932 = vunpack.c.l.b16 %v1916
        %v1933 = vpack.c.b16 %v1926, %v1925
        %v1934 = vpack.c.b16 %v1928, %v1927
        %v1935 = vpack.c.b16 %v1930, %v1929
        %v1936 = vpack.c.b16 %v1932, %v1931
        %v1942 = vsel %vm1370, %v1906, 0
        %v1945 = vsel %vm1370, %v1907, 0
        %1947 = vmatpush.bf16.msra.mxu0 0
        %1948 = vmatpush.bf16.msra.mxu0 0
        %1949 = vmatpush.bf16.msra.mxu0 0
        %1950 = vmatpush.bf16.msra.mxu0 0
        %1951 = vmatpush.bf16.msra.mxu0 %v1936
        %1952 = vmatpush.bf16.msra.mxu0 %v1935
        %1953 = vmatpush.bf16.msra.mxu0 %v1934
        %1954 = vmatpush.bf16.msra.mxu0 %v1933
        %1955 = vmatmul.bf16.gmra.mxu0 %v1942
        %v1956 = vpop.f32.mrf.mxu0
        %v1957 = vadd.f32 0.0, %v1956
        %v1958 = vpop.f32.mrf.mxu0
        %v1959 = vadd.f32 0.0, %v1958
        %1960 = vmatmul.bf16.gmra.mxu0 %v1945
        %v1961 = vpop.f32.mrf.mxu0
        %v1962 = vadd.f32 0.0, %v1961
        %v1963 = vpop.f32.mrf.mxu0
        %v1964 = vadd.f32 0.0, %v1963
        %1965 = vdwg.mxu0
        %v1974 = vunpack.c.l.b16 %v1489
        %v1975 = vunpack.c.l.b16 %v1490
        %v1976 = vunpack.c.l.b16 %v1491
        %v1977 = vunpack.c.l.b16 %v1492
        %v1978 = vunpack.c.l.b16 %v1493
        %v1979 = vunpack.c.l.b16 %v1494
        %v1980 = vunpack.c.l.b16 %v1495
        %v1981 = vunpack.c.l.b16 %v1496
        %v1982 = vpack.c.b16 %v1975, %v1974
        %v1983 = vpack.c.b16 %v1977, %v1976
        %v1984 = vpack.c.b16 %v1979, %v1978
        %v1985 = vpack.c.b16 %v1981, %v1980
        %v1991 = vsel %vm1370, %v1487, 0
        %v1994 = vsel %vm1370, %v1488, 0
        %1996 = vmatpush.bf16.msra.mxu0 0
        %1997 = vmatpush.bf16.msra.mxu0 0
        %1998 = vmatpush.bf16.msra.mxu0 0
        %1999 = vmatpush.bf16.msra.mxu0 0
        %2000 = vmatpush.bf16.msra.mxu0 %v1985
        %2001 = vmatpush.bf16.msra.mxu0 %v1984
        %2002 = vmatpush.bf16.msra.mxu0 %v1983
        %2003 = vmatpush.bf16.msra.mxu0 %v1982
        %2004 = vmatmul.bf16.gmra.mxu0 %v1991
        %v2005 = vpop.f32.mrf.mxu0
        %v2006 = vadd.f32 %v1957, %v2005
        %v2007 = vpop.f32.mrf.mxu0
        %v2008 = vadd.f32 %v1959, %v2007
        %2009 = vmatmul.bf16.gmra.mxu0 %v1994
        %v2010 = vpop.f32.mrf.mxu0
        %v2011 = vadd.f32 %v1962, %v2010
        %v2012 = vpop.f32.mrf.mxu0
        %v2013 = vadd.f32 %v1964, %v2012
        %2014 = vdwg.mxu0
        %v2015 = vld [vmem:[#allocation8] sm:$0x1]
        %v2017 = vperm.slane %v2015, 0
        %v2019 = vadd.f32 %v2006, %v2017
        %v2020 = vadd.f32 %v2008, %v2017
        %v2021 = vadd.f32 %v2011, %v2017
        %v2022 = vadd.f32 %v2013, %v2017
        %v2023 = vadd.f32 %v2019, %v794
        %v2024 = vadd.f32 %v2020, %v795
        %v2025 = vadd.f32 %v2021, %v796
        %v2026 = vadd.f32 %v2022, %v797
        %v2027 = vld [vmem:[#allocation10] sm:$0x1]
        %v2028 = vld [vmem:[#allocation11] sm:$0x1]
        %2029 = vadd.xlane.f32.xlu0 %v2023
        %v2030 = vpop.xlane.xlu0 %2029
        %2031 = vadd.xlane.f32.xlu0 %v2024
        %v2032 = vpop.xlane.xlu0 %2031
        %2033 = vadd.xlane.f32.xlu0 %v2025
        %v2034 = vpop.xlane.xlu0 %2033
        %2035 = vadd.xlane.f32.xlu0 %v2026
        %v2036 = vpop.xlane.xlu0 %2035
        %v2037 = vmul.f32 %v2030, %v822
        %v2038 = vmul.f32 %v2032, %v822
        %v2039 = vmul.f32 %v2034, %v822
        %v2040 = vmul.f32 %v2036, %v822
        %v2041 = vsub.f32 %v2023, %v2037
        %v2042 = vsub.f32 %v2024, %v2038
        %v2043 = vsub.f32 %v2025, %v2039
        %v2044 = vsub.f32 %v2026, %v2040
        %v2045 = vmul.f32 %v2041, %v2041
        %v2046 = vmul.f32 %v2042, %v2042
        %v2047 = vmul.f32 %v2043, %v2043
        %v2048 = vmul.f32 %v2044, %v2044
        %2049 = vadd.xlane.f32.xlu0 %v2045
        %v2050 = vpop.xlane.xlu0 %2049
        %2051 = vadd.xlane.f32.xlu0 %v2046
        %v2052 = vpop.xlane.xlu0 %2051
        %2053 = vadd.xlane.f32.xlu0 %v2047
        %v2054 = vpop.xlane.xlu0 %2053
        %2055 = vadd.xlane.f32.xlu0 %v2048
        %v2056 = vpop.xlane.xlu0 %2055
        %v2057 = vmul.f32 %v2050, %v822
        %v2058 = vmul.f32 %v2052, %v822
        %v2059 = vmul.f32 %v2054, %v822
        %v2060 = vmul.f32 %v2056, %v822
        %v2061 = vadd.f32 %v2057, 1e-05
        %v2062 = vadd.f32 %v2058, 1e-05
        %v2063 = vadd.f32 %v2059, 1e-05
        %v2064 = vadd.f32 %v2060, 1e-05
        %v2065 = vrsqrt.pop %v2061
        %v2066 = vmul.f32 %v2065, %v2061
        %v2067 = vmul.f32 %v2066, %v2065
        %v2068 = vmul.f32 0.5, %v2067
        %v2069 = vsub.f32 1.5, %v2068
        %v2070 = vmul.f32 %v2065, %v2069
        %vm2071 = vweird.f32 %v2061
        %vm2072 = vweird.f32 %v2065
        %vm2073 = vmor %vm2071, %vm2072
        %v2074 = vsel %vm2073, %v2065, %v2070
        %v2075 = vrsqrt.pop %v2062
        %v2076 = vmul.f32 %v2075, %v2062
        %v2077 = vmul.f32 %v2076, %v2075
        %v2078 = vmul.f32 0.5, %v2077
        %v2079 = vsub.f32 1.5, %v2078
        %v2080 = vmul.f32 %v2075, %v2079
        %vm2081 = vweird.f32 %v2062
        %vm2082 = vweird.f32 %v2075
        %vm2083 = vmor %vm2081, %vm2082
        %v2084 = vsel %vm2083, %v2075, %v2080
        %v2085 = vrsqrt.pop %v2063
        %v2086 = vmul.f32 %v2085, %v2063
        %v2087 = vmul.f32 %v2086, %v2085
        %v2088 = vmul.f32 0.5, %v2087
        %v2089 = vsub.f32 1.5, %v2088
        %v2090 = vmul.f32 %v2085, %v2089
        %vm2091 = vweird.f32 %v2063
        %vm2092 = vweird.f32 %v2085
        %vm2093 = vmor %vm2091, %vm2092
        %v2094 = vsel %vm2093, %v2085, %v2090
        %v2095 = vrsqrt.pop %v2064
        %v2096 = vmul.f32 %v2095, %v2064
        %v2097 = vmul.f32 %v2096, %v2095
        %v2098 = vmul.f32 0.5, %v2097
        %v2099 = vsub.f32 1.5, %v2098
        %v2100 = vmul.f32 %v2095, %v2099
        %vm2101 = vweird.f32 %v2064
        %vm2102 = vweird.f32 %v2095
        %vm2103 = vmor %vm2101, %vm2102
        %v2104 = vsel %vm2103, %v2095, %v2100
        %v2105 = vmul.f32 %v2041, %v2074
        %v2106 = vmul.f32 %v2042, %v2084
        %v2107 = vmul.f32 %v2043, %v2094
        %v2108 = vmul.f32 %v2044, %v2104
        %v2110 = vperm.slane %v2027, 0
        %v2112 = vmul.f32 %v2105, %v2110
        %v2113 = vmul.f32 %v2106, %v2110
        %v2114 = vmul.f32 %v2107, %v2110
        %v2115 = vmul.f32 %v2108, %v2110
        %v2117 = vperm.slane %v2028, 0
        %v2119 = vadd.f32 %v2112, %v2117
        %v2120 = vadd.f32 %v2113, %v2117
        %v2121 = vadd.f32 %v2114, %v2117
        %v2122 = vadd.f32 %v2115, %v2117
        %v2123 = vpack.c.bf16 %v2120, %v2119
        %v2124 = vpack.c.bf16 %v2122, %v2121
        %v2125 = vld [vmem:[%s14] sm:$0xff]
        %v2126 = vld [vmem:[%s14 + $0x8] sm:$0xff]
        %v2127 = vld [vmem:[%s14 + $0x10] sm:$0xff]
        %v2128 = vld [vmem:[%s14 + $0x18] sm:$0xff]
        %v2129 = vld [vmem:[%s14 + $0x20] sm:$0xff]
        %v2130 = vld [vmem:[%s14 + $0x28] sm:$0xff]
        %v2131 = vld [vmem:[%s14 + $0x30] sm:$0xff]
        %v2132 = vld [vmem:[%s14 + $0x38] sm:$0xff]
        %v2133 = vld [vmem:[%s14 + $0x40] sm:$0xff]
        %v2134 = vld [vmem:[%s14 + $0x48] sm:$0xff]
        %v2135 = vld [vmem:[%s14 + $0x50] sm:$0xff]
        %v2136 = vld [vmem:[%s14 + $0x58] sm:$0xff]
        %v2137 = vld [vmem:[%s14 + $0x60] sm:$0xff]
        %v2138 = vld [vmem:[%s14 + $0x68] sm:$0xff]
        %v2139 = vld [vmem:[%s14 + $0x70] sm:$0xff]
        %v2140 = vld [vmem:[%s14 + $0x78] sm:$0xff]
        %v2141 = vld [vmem:[%s15] sm:$0x3]
        %v2143 = vperm.slane %v2141, 0
        %v2144 = vperm.slane %v2141, 1
        %v2163 = vunpack.c.l.b16 %v2125
        %v2164 = vunpack.c.h.b16 %v2125
        %v2165 = vunpack.c.l.b16 %v2126
        %v2166 = vunpack.c.h.b16 %v2126
        %v2167 = vunpack.c.l.b16 %v2127
        %v2168 = vunpack.c.h.b16 %v2127
        %v2169 = vunpack.c.l.b16 %v2128
        %v2170 = vunpack.c.h.b16 %v2128
        %v2171 = vunpack.c.l.b16 %v2129
        %v2172 = vunpack.c.h.b16 %v2129
        %v2173 = vunpack.c.l.b16 %v2130
        %v2174 = vunpack.c.h.b16 %v2130
        %v2175 = vunpack.c.l.b16 %v2131
        %v2176 = vunpack.c.h.b16 %v2131
        %v2177 = vunpack.c.l.b16 %v2132
        %v2178 = vunpack.c.h.b16 %v2132
        %v2179 = vunpack.c.l.b16 %v2133
        %v2180 = vunpack.c.h.b16 %v2133
        %v2181 = vunpack.c.l.b16 %v2134
        %v2182 = vunpack.c.h.b16 %v2134
        %v2183 = vunpack.c.l.b16 %v2135
        %v2184 = vunpack.c.h.b16 %v2135
        %v2185 = vunpack.c.l.b16 %v2136
        %v2186 = vunpack.c.h.b16 %v2136
        %v2187 = vunpack.c.l.b16 %v2137
        %v2188 = vunpack.c.h.b16 %v2137
        %v2189 = vunpack.c.l.b16 %v2138
        %v2190 = vunpack.c.h.b16 %v2138
        %v2191 = vunpack.c.l.b16 %v2139
        %v2192 = vunpack.c.h.b16 %v2139
        %v2193 = vunpack.c.l.b16 %v2140
        %v2194 = vunpack.c.h.b16 %v2140
        %v2195 = vpack.c.b16 %v2165, %v2163
        %v2196 = vpack.c.b16 %v2166, %v2164
        %v2197 = vpack.c.b16 %v2169, %v2167
        %v2198 = vpack.c.b16 %v2170, %v2168
        %v2199 = vpack.c.b16 %v2173, %v2171
        %v2200 = vpack.c.b16 %v2174, %v2172
        %v2201 = vpack.c.b16 %v2177, %v2175
        %v2202 = vpack.c.b16 %v2178, %v2176
        %v2203 = vpack.c.b16 %v2181, %v2179
        %v2204 = vpack.c.b16 %v2182, %v2180
        %v2205 = vpack.c.b16 %v2185, %v2183
        %v2206 = vpack.c.b16 %v2186, %v2184
        %v2207 = vpack.c.b16 %v2189, %v2187
        %v2208 = vpack.c.b16 %v2190, %v2188
        %v2209 = vpack.c.b16 %v2193, %v2191
        %v2210 = vpack.c.b16 %v2194, %v2192
        %2227 = vmatpush.bf16.msra.mxu0 %v2209
        %2228 = vmatpush.bf16.msra.mxu0 %v2207
        %2229 = vmatpush.bf16.msra.mxu0 %v2205
        %2230 = vmatpush.bf16.msra.mxu0 %v2203
        %2231 = vmatpush.bf16.msra.mxu0 %v2201
        %2232 = vmatpush.bf16.msra.mxu0 %v2199
        %2233 = vmatpush.bf16.msra.mxu0 %v2197
        %2234 = vmatpush.bf16.msra.mxu0 %v2195
        %2235 = vmatmul.bf16.gmra.mxu0 %v2123
        %v2236 = vpop.f32.mrf.mxu0
        %v2237 = vadd.f32 %v2143, %v2236
        %v2238 = vpop.f32.mrf.mxu0
        %v2239 = vadd.f32 %v2143, %v2238
        %2240 = vmatmul.bf16.gmra.mxu0 %v2124
        %v2241 = vpop.f32.mrf.mxu0
        %v2242 = vadd.f32 %v2143, %v2241
        %v2243 = vpop.f32.mrf.mxu0
        %v2244 = vadd.f32 %v2143, %v2243
        %2245 = vdwg.mxu0
        %2246 = vmatpush.bf16.msra.mxu0 %v2210
        %2247 = vmatpush.bf16.msra.mxu0 %v2208
        %2248 = vmatpush.bf16.msra.mxu0 %v2206
        %2249 = vmatpush.bf16.msra.mxu0 %v2204
        %2250 = vmatpush.bf16.msra.mxu0 %v2202
        %2251 = vmatpush.bf16.msra.mxu0 %v2200
        %2252 = vmatpush.bf16.msra.mxu0 %v2198
        %2253 = vmatpush.bf16.msra.mxu0 %v2196
        %2254 = vmatmul.bf16.gmra.mxu0 %v2123
        %v2255 = vpop.f32.mrf.mxu0
        %v2256 = vadd.f32 %v2144, %v2255
        %v2257 = vpop.f32.mrf.mxu0
        %v2258 = vadd.f32 %v2144, %v2257
        %2259 = vmatmul.bf16.gmra.mxu0 %v2124
        %v2260 = vpop.f32.mrf.mxu0
        %v2261 = vadd.f32 %v2144, %v2260
        %v2262 = vpop.f32.mrf.mxu0
        %v2263 = vadd.f32 %v2144, %v2262
        %2264 = vdwg.mxu0
        %v2265 = vmul.f32 %v2237, 0.5
        %v2266 = vmul.f32 %v2256, 0.5
        %v2267 = vmul.f32 %v2239, 0.5
        %v2268 = vmul.f32 %v2258, 0.5
        %v2269 = vmul.f32 %v2242, 0.5
        %v2270 = vmul.f32 %v2261, 0.5
        %v2271 = vmul.f32 %v2244, 0.5
        %v2272 = vmul.f32 %v2263, 0.5
        %v2273 = vmul.f32 %v2237, 0.70710677
        %v2274 = vmul.f32 %v2256, 0.70710677
        %v2275 = vmul.f32 %v2239, 0.70710677
        %v2276 = vmul.f32 %v2258, 0.70710677
        %v2277 = vmul.f32 %v2242, 0.70710677
        %v2278 = vmul.f32 %v2261, 0.70710677
        %v2279 = vmul.f32 %v2244, 0.70710677
        %v2280 = vmul.f32 %v2263, 0.70710677
        %v2281 = vmul.f32 %v2273, %v2273
        %v2282 = vmin.f32 16.0, %v2281
        %v2283 = vmul.f32 %v2282, 2.1237322e-06
        %v2284 = vadd.f32 %v2283, 0.00028619796
        %v2285 = vmul.f32 %v2282, %v2284
        %v2286 = vadd.f32 %v2285, 0.0036580483
        %v2287 = vmul.f32 %v2282, %v2286
        %v2288 = vadd.f32 %v2287, 0.05243302
        %v2289 = vmul.f32 %v2282, %v2288
        %v2290 = vadd.f32 %v2289, 0.18741608
        %v2291 = vmul.f32 %v2282, %v2290
        %v2292 = vadd.f32 %v2291, 1.1283791
        %v2293 = vmul.f32 %v2273, %v2292
        %v2294 = vmul.f32 %v2282, 3.8918573e-05
        %v2295 = vadd.f32 %v2294, 0.001143296
        %v2296 = vmul.f32 %v2282, %v2295
        %v2297 = vadd.f32 %v2296, 0.014752088
        %v2298 = vmul.f32 %v2282, %v2297
        %v2299 = vadd.f32 %v2298, 0.112945676
        %v2300 = vmul.f32 %v2282, %v2299
        %v2301 = vadd.f32 %v2300, 0.4994258
        %v2302 = vmul.f32 %v2282, %v2301
        %v2303 = vadd.f32 %v2302, 1.0
        %v2304 = vrcp.pop %v2303
        %v2305 = vmul.f32 %v2303, %v2304
        %v2306 = vsub.f32 1.0, %v2305
        %v2307 = vmul.f32 %v2304, %v2306
        %v2308 = vadd.f32 %v2304, %v2307
        %vm2309 = vweird.f32 %v2303
        %vm2310 = vweird.f32 %v2304
        %vm2311 = vmor %vm2309, %vm2310
        %v2312 = vsel %vm2311, %v2304, %v2308
        %v2313 = vand.u32 2147483647, %v2303
        %vm2314 = vcmp.eq.f32.partialorder %v2313, 8.507059e+37
        %v2315 = vand.u32 %v2303, 2147483648
        %v2316 = vor.u32 1.1754944e-38, %v2315
        %v2317 = vsel %vm2314, %v2316, %v2312
        %v2318 = vmul.f32 %v2293, %v2317
        %v2319 = vmin.f32 %v2318, 1.0
        %v2320 = vmax.f32 %v2319, -1.0
        %v2321 = vmul.f32 %v2274, %v2274
        %v2322 = vmin.f32 16.0, %v2321
        %v2323 = vmul.f32 %v2322, 2.1237322e-06
        %v2324 = vadd.f32 %v2323, 0.00028619796
        %v2325 = vmul.f32 %v2322, %v2324
        %v2326 = vadd.f32 %v2325, 0.0036580483
        %v2327 = vmul.f32 %v2322, %v2326
        %v2328 = vadd.f32 %v2327, 0.05243302
        %v2329 = vmul.f32 %v2322, %v2328
        %v2330 = vadd.f32 %v2329, 0.18741608
        %v2331 = vmul.f32 %v2322, %v2330
        %v2332 = vadd.f32 %v2331, 1.1283791
        %v2333 = vmul.f32 %v2274, %v2332
        %v2334 = vmul.f32 %v2322, 3.8918573e-05
        %v2335 = vadd.f32 %v2334, 0.001143296
        %v2336 = vmul.f32 %v2322, %v2335
        %v2337 = vadd.f32 %v2336, 0.014752088
        %v2338 = vmul.f32 %v2322, %v2337
        %v2339 = vadd.f32 %v2338, 0.112945676
        %v2340 = vmul.f32 %v2322, %v2339
        %v2341 = vadd.f32 %v2340, 0.4994258
        %v2342 = vmul.f32 %v2322, %v2341
        %v2343 = vadd.f32 %v2342, 1.0
        %v2344 = vrcp.pop %v2343
        %v2345 = vmul.f32 %v2343, %v2344
        %v2346 = vsub.f32 1.0, %v2345
        %v2347 = vmul.f32 %v2344, %v2346
        %v2348 = vadd.f32 %v2344, %v2347
        %vm2349 = vweird.f32 %v2343
        %vm2350 = vweird.f32 %v2344
        %vm2351 = vmor %vm2349, %vm2350
        %v2352 = vsel %vm2351, %v2344, %v2348
        %v2353 = vand.u32 2147483647, %v2343
        %vm2354 = vcmp.eq.f32.partialorder %v2353, 8.507059e+37
        %v2355 = vand.u32 %v2343, 2147483648
        %v2356 = vor.u32 1.1754944e-38, %v2355
        %v2357 = vsel %vm2354, %v2356, %v2352
        %v2358 = vmul.f32 %v2333, %v2357
        %v2359 = vmin.f32 %v2358, 1.0
        %v2360 = vmax.f32 %v2359, -1.0
        %v2361 = vmul.f32 %v2275, %v2275
        %v2362 = vmin.f32 16.0, %v2361
        %v2363 = vmul.f32 %v2362, 2.1237322e-06
        %v2364 = vadd.f32 %v2363, 0.00028619796
        %v2365 = vmul.f32 %v2362, %v2364
        %v2366 = vadd.f32 %v2365, 0.0036580483
        %v2367 = vmul.f32 %v2362, %v2366
        %v2368 = vadd.f32 %v2367, 0.05243302
        %v2369 = vmul.f32 %v2362, %v2368
        %v2370 = vadd.f32 %v2369, 0.18741608
        %v2371 = vmul.f32 %v2362, %v2370
        %v2372 = vadd.f32 %v2371, 1.1283791
        %v2373 = vmul.f32 %v2275, %v2372
        %v2374 = vmul.f32 %v2362, 3.8918573e-05
        %v2375 = vadd.f32 %v2374, 0.001143296
        %v2376 = vmul.f32 %v2362, %v2375
        %v2377 = vadd.f32 %v2376, 0.014752088
        %v2378 = vmul.f32 %v2362, %v2377
        %v2379 = vadd.f32 %v2378, 0.112945676
        %v2380 = vmul.f32 %v2362, %v2379
        %v2381 = vadd.f32 %v2380, 0.4994258
        %v2382 = vmul.f32 %v2362, %v2381
        %v2383 = vadd.f32 %v2382, 1.0
        %v2384 = vrcp.pop %v2383
        %v2385 = vmul.f32 %v2383, %v2384
        %v2386 = vsub.f32 1.0, %v2385
        %v2387 = vmul.f32 %v2384, %v2386
        %v2388 = vadd.f32 %v2384, %v2387
        %vm2389 = vweird.f32 %v2383
        %vm2390 = vweird.f32 %v2384
        %vm2391 = vmor %vm2389, %vm2390
        %v2392 = vsel %vm2391, %v2384, %v2388
        %v2393 = vand.u32 2147483647, %v2383
        %vm2394 = vcmp.eq.f32.partialorder %v2393, 8.507059e+37
        %v2395 = vand.u32 %v2383, 2147483648
        %v2396 = vor.u32 1.1754944e-38, %v2395
        %v2397 = vsel %vm2394, %v2396, %v2392
        %v2398 = vmul.f32 %v2373, %v2397
        %v2399 = vmin.f32 %v2398, 1.0
        %v2400 = vmax.f32 %v2399, -1.0
        %v2401 = vmul.f32 %v2276, %v2276
        %v2402 = vmin.f32 16.0, %v2401
        %v2403 = vmul.f32 %v2402, 2.1237322e-06
        %v2404 = vadd.f32 %v2403, 0.00028619796
        %v2405 = vmul.f32 %v2402, %v2404
        %v2406 = vadd.f32 %v2405, 0.0036580483
        %v2407 = vmul.f32 %v2402, %v2406
        %v2408 = vadd.f32 %v2407, 0.05243302
        %v2409 = vmul.f32 %v2402, %v2408
        %v2410 = vadd.f32 %v2409, 0.18741608
        %v2411 = vmul.f32 %v2402, %v2410
        %v2412 = vadd.f32 %v2411, 1.1283791
        %v2413 = vmul.f32 %v2276, %v2412
        %v2414 = vmul.f32 %v2402, 3.8918573e-05
        %v2415 = vadd.f32 %v2414, 0.001143296
        %v2416 = vmul.f32 %v2402, %v2415
        %v2417 = vadd.f32 %v2416, 0.014752088
        %v2418 = vmul.f32 %v2402, %v2417
        %v2419 = vadd.f32 %v2418, 0.112945676
        %v2420 = vmul.f32 %v2402, %v2419
        %v2421 = vadd.f32 %v2420, 0.4994258
        %v2422 = vmul.f32 %v2402, %v2421
        %v2423 = vadd.f32 %v2422, 1.0
        %v2424 = vrcp.pop %v2423
        %v2425 = vmul.f32 %v2423, %v2424
        %v2426 = vsub.f32 1.0, %v2425
        %v2427 = vmul.f32 %v2424, %v2426
        %v2428 = vadd.f32 %v2424, %v2427
        %vm2429 = vweird.f32 %v2423
        %vm2430 = vweird.f32 %v2424
        %vm2431 = vmor %vm2429, %vm2430
        %v2432 = vsel %vm2431, %v2424, %v2428
        %v2433 = vand.u32 2147483647, %v2423
        %vm2434 = vcmp.eq.f32.partialorder %v2433, 8.507059e+37
        %v2435 = vand.u32 %v2423, 2147483648
        %v2436 = vor.u32 1.1754944e-38, %v2435
        %v2437 = vsel %vm2434, %v2436, %v2432
        %v2438 = vmul.f32 %v2413, %v2437
        %v2439 = vmin.f32 %v2438, 1.0
        %v2440 = vmax.f32 %v2439, -1.0
        %v2441 = vmul.f32 %v2277, %v2277
        %v2442 = vmin.f32 16.0, %v2441
        %v2443 = vmul.f32 %v2442, 2.1237322e-06
        %v2444 = vadd.f32 %v2443, 0.00028619796
        %v2445 = vmul.f32 %v2442, %v2444
        %v2446 = vadd.f32 %v2445, 0.0036580483
        %v2447 = vmul.f32 %v2442, %v2446
        %v2448 = vadd.f32 %v2447, 0.05243302
        %v2449 = vmul.f32 %v2442, %v2448
        %v2450 = vadd.f32 %v2449, 0.18741608
        %v2451 = vmul.f32 %v2442, %v2450
        %v2452 = vadd.f32 %v2451, 1.1283791
        %v2453 = vmul.f32 %v2277, %v2452
        %v2454 = vmul.f32 %v2442, 3.8918573e-05
        %v2455 = vadd.f32 %v2454, 0.001143296
        %v2456 = vmul.f32 %v2442, %v2455
        %v2457 = vadd.f32 %v2456, 0.014752088
        %v2458 = vmul.f32 %v2442, %v2457
        %v2459 = vadd.f32 %v2458, 0.112945676
        %v2460 = vmul.f32 %v2442, %v2459
        %v2461 = vadd.f32 %v2460, 0.4994258
        %v2462 = vmul.f32 %v2442, %v2461
        %v2463 = vadd.f32 %v2462, 1.0
        %v2464 = vrcp.pop %v2463
        %v2465 = vmul.f32 %v2463, %v2464
        %v2466 = vsub.f32 1.0, %v2465
        %v2467 = vmul.f32 %v2464, %v2466
        %v2468 = vadd.f32 %v2464, %v2467
        %vm2469 = vweird.f32 %v2463
        %vm2470 = vweird.f32 %v2464
        %vm2471 = vmor %vm2469, %vm2470
        %v2472 = vsel %vm2471, %v2464, %v2468
        %v2473 = vand.u32 2147483647, %v2463
        %vm2474 = vcmp.eq.f32.partialorder %v2473, 8.507059e+37
        %v2475 = vand.u32 %v2463, 2147483648
        %v2476 = vor.u32 1.1754944e-38, %v2475
        %v2477 = vsel %vm2474, %v2476, %v2472
        %v2478 = vmul.f32 %v2453, %v2477
        %v2479 = vmin.f32 %v2478, 1.0
        %v2480 = vmax.f32 %v2479, -1.0
        %v2481 = vmul.f32 %v2278, %v2278
        %v2482 = vmin.f32 16.0, %v2481
        %v2483 = vmul.f32 %v2482, 2.1237322e-06
        %v2484 = vadd.f32 %v2483, 0.00028619796
        %v2485 = vmul.f32 %v2482, %v2484
        %v2486 = vadd.f32 %v2485, 0.0036580483
        %v2487 = vmul.f32 %v2482, %v2486
        %v2488 = vadd.f32 %v2487, 0.05243302
        %v2489 = vmul.f32 %v2482, %v2488
        %v2490 = vadd.f32 %v2489, 0.18741608
        %v2491 = vmul.f32 %v2482, %v2490
        %v2492 = vadd.f32 %v2491, 1.1283791
        %v2493 = vmul.f32 %v2278, %v2492
        %v2494 = vmul.f32 %v2482, 3.8918573e-05
        %v2495 = vadd.f32 %v2494, 0.001143296
        %v2496 = vmul.f32 %v2482, %v2495
        %v2497 = vadd.f32 %v2496, 0.014752088
        %v2498 = vmul.f32 %v2482, %v2497
        %v2499 = vadd.f32 %v2498, 0.112945676
        %v2500 = vmul.f32 %v2482, %v2499
        %v2501 = vadd.f32 %v2500, 0.4994258
        %v2502 = vmul.f32 %v2482, %v2501
        %v2503 = vadd.f32 %v2502, 1.0
        %v2504 = vrcp.pop %v2503
        %v2505 = vmul.f32 %v2503, %v2504
        %v2506 = vsub.f32 1.0, %v2505
        %v2507 = vmul.f32 %v2504, %v2506
        %v2508 = vadd.f32 %v2504, %v2507
        %vm2509 = vweird.f32 %v2503
        %vm2510 = vweird.f32 %v2504
        %vm2511 = vmor %vm2509, %vm2510
        %v2512 = vsel %vm2511, %v2504, %v2508
        %v2513 = vand.u32 2147483647, %v2503
        %vm2514 = vcmp.eq.f32.partialorder %v2513, 8.507059e+37
        %v2515 = vand.u32 %v2503, 2147483648
        %v2516 = vor.u32 1.1754944e-38, %v2515
        %v2517 = vsel %vm2514, %v2516, %v2512
        %v2518 = vmul.f32 %v2493, %v2517
        %v2519 = vmin.f32 %v2518, 1.0
        %v2520 = vmax.f32 %v2519, -1.0
        %v2521 = vmul.f32 %v2279, %v2279
        %v2522 = vmin.f32 16.0, %v2521
        %v2523 = vmul.f32 %v2522, 2.1237322e-06
        %v2524 = vadd.f32 %v2523, 0.00028619796
        %v2525 = vmul.f32 %v2522, %v2524
        %v2526 = vadd.f32 %v2525, 0.0036580483
        %v2527 = vmul.f32 %v2522, %v2526
        %v2528 = vadd.f32 %v2527, 0.05243302
        %v2529 = vmul.f32 %v2522, %v2528
        %v2530 = vadd.f32 %v2529, 0.18741608
        %v2531 = vmul.f32 %v2522, %v2530
        %v2532 = vadd.f32 %v2531, 1.1283791
        %v2533 = vmul.f32 %v2279, %v2532
        %v2534 = vmul.f32 %v2522, 3.8918573e-05
        %v2535 = vadd.f32 %v2534, 0.001143296
        %v2536 = vmul.f32 %v2522, %v2535
        %v2537 = vadd.f32 %v2536, 0.014752088
        %v2538 = vmul.f32 %v2522, %v2537
        %v2539 = vadd.f32 %v2538, 0.112945676
        %v2540 = vmul.f32 %v2522, %v2539
        %v2541 = vadd.f32 %v2540, 0.4994258
        %v2542 = vmul.f32 %v2522, %v2541
        %v2543 = vadd.f32 %v2542, 1.0
        %v2544 = vrcp.pop %v2543
        %v2545 = vmul.f32 %v2543, %v2544
        %v2546 = vsub.f32 1.0, %v2545
        %v2547 = vmul.f32 %v2544, %v2546
        %v2548 = vadd.f32 %v2544, %v2547
        %vm2549 = vweird.f32 %v2543
        %vm2550 = vweird.f32 %v2544
        %vm2551 = vmor %vm2549, %vm2550
        %v2552 = vsel %vm2551, %v2544, %v2548
        %v2553 = vand.u32 2147483647, %v2543
        %vm2554 = vcmp.eq.f32.partialorder %v2553, 8.507059e+37
        %v2555 = vand.u32 %v2543, 2147483648
        %v2556 = vor.u32 1.1754944e-38, %v2555
        %v2557 = vsel %vm2554, %v2556, %v2552
        %v2558 = vmul.f32 %v2533, %v2557
        %v2559 = vmin.f32 %v2558, 1.0
        %v2560 = vmax.f32 %v2559, -1.0
        %v2561 = vmul.f32 %v2280, %v2280
        %v2562 = vmin.f32 16.0, %v2561
        %v2563 = vmul.f32 %v2562, 2.1237322e-06
        %v2564 = vadd.f32 %v2563, 0.00028619796
        %v2565 = vmul.f32 %v2562, %v2564
        %v2566 = vadd.f32 %v2565, 0.0036580483
        %v2567 = vmul.f32 %v2562, %v2566
        %v2568 = vadd.f32 %v2567, 0.05243302
        %v2569 = vmul.f32 %v2562, %v2568
        %v2570 = vadd.f32 %v2569, 0.18741608
        %v2571 = vmul.f32 %v2562, %v2570
        %v2572 = vadd.f32 %v2571, 1.1283791
        %v2573 = vmul.f32 %v2280, %v2572
        %v2574 = vmul.f32 %v2562, 3.8918573e-05
        %v2575 = vadd.f32 %v2574, 0.001143296
        %v2576 = vmul.f32 %v2562, %v2575
        %v2577 = vadd.f32 %v2576, 0.014752088
        %v2578 = vmul.f32 %v2562, %v2577
        %v2579 = vadd.f32 %v2578, 0.112945676
        %v2580 = vmul.f32 %v2562, %v2579
        %v2581 = vadd.f32 %v2580, 0.4994258
        %v2582 = vmul.f32 %v2562, %v2581
        %v2583 = vadd.f32 %v2582, 1.0
        %v2584 = vrcp.pop %v2583
        %v2585 = vmul.f32 %v2583, %v2584
        %v2586 = vsub.f32 1.0, %v2585
        %v2587 = vmul.f32 %v2584, %v2586
        %v2588 = vadd.f32 %v2584, %v2587
        %vm2589 = vweird.f32 %v2583
        %vm2590 = vweird.f32 %v2584
        %vm2591 = vmor %vm2589, %vm2590
        %v2592 = vsel %vm2591, %v2584, %v2588
        %v2593 = vand.u32 2147483647, %v2583
        %vm2594 = vcmp.eq.f32.partialorder %v2593, 8.507059e+37
        %v2595 = vand.u32 %v2583, 2147483648
        %v2596 = vor.u32 1.1754944e-38, %v2595
        %v2597 = vsel %vm2594, %v2596, %v2592
        %v2598 = vmul.f32 %v2573, %v2597
        %v2599 = vmin.f32 %v2598, 1.0
        %v2600 = vmax.f32 %v2599, -1.0
        %v2601 = vadd.f32 %v2320, 1.0
        %v2602 = vadd.f32 %v2360, 1.0
        %v2603 = vadd.f32 %v2400, 1.0
        %v2604 = vadd.f32 %v2440, 1.0
        %v2605 = vadd.f32 %v2480, 1.0
        %v2606 = vadd.f32 %v2520, 1.0
        %v2607 = vadd.f32 %v2560, 1.0
        %v2608 = vadd.f32 %v2600, 1.0
        %v2609 = vmul.f32 %v2265, %v2601
        %v2610 = vmul.f32 %v2266, %v2602
        %v2611 = vmul.f32 %v2267, %v2603
        %v2612 = vmul.f32 %v2268, %v2604
        %v2613 = vmul.f32 %v2269, %v2605
        %v2614 = vmul.f32 %v2270, %v2606
        %v2615 = vmul.f32 %v2271, %v2607
        %v2616 = vmul.f32 %v2272, %v2608
        %v2617 = vpack.c.bf16 %v2611, %v2609
        %v2618 = vpack.c.bf16 %v2612, %v2610
        %v2619 = vpack.c.bf16 %v2615, %v2613
        %v2620 = vpack.c.bf16 %v2616, %v2614
        %v2621 = vld [vmem:[#allocation13] sm:$0xf]
        %v2622 = vld [vmem:[#allocation13 + $0x4] sm:$0xf]
        %v2623 = vld [vmem:[#allocation13 + $0x8] sm:$0xf]
        %v2624 = vld [vmem:[#allocation13 + $0xc] sm:$0xf]
        %v2625 = vld [vmem:[#allocation13 + $0x10] sm:$0xf]
        %v2626 = vld [vmem:[#allocation13 + $0x14] sm:$0xf]
        %v2627 = vld [vmem:[#allocation13 + $0x18] sm:$0xf]
        %v2628 = vld [vmem:[#allocation13 + $0x1c] sm:$0xf]
        %v2629 = vld [vmem:[#allocation13 + $0x20] sm:$0xf]
        %v2630 = vld [vmem:[#allocation13 + $0x24] sm:$0xf]
        %v2631 = vld [vmem:[#allocation13 + $0x28] sm:$0xf]
        %v2632 = vld [vmem:[#allocation13 + $0x2c] sm:$0xf]
        %v2633 = vld [vmem:[#allocation13 + $0x30] sm:$0xf]
        %v2634 = vld [vmem:[#allocation13 + $0x34] sm:$0xf]
        %v2635 = vld [vmem:[#allocation13 + $0x38] sm:$0xf]
        %v2636 = vld [vmem:[#allocation13 + $0x3c] sm:$0xf]
        %v2637 = vld [vmem:[#allocation13 + $0x40] sm:$0xf]
        %v2638 = vld [vmem:[#allocation13 + $0x44] sm:$0xf]
        %v2639 = vld [vmem:[#allocation13 + $0x48] sm:$0xf]
        %v2640 = vld [vmem:[#allocation13 + $0x4c] sm:$0xf]
        %v2641 = vld [vmem:[#allocation13 + $0x50] sm:$0xf]
        %v2642 = vld [vmem:[#allocation13 + $0x54] sm:$0xf]
        %v2643 = vld [vmem:[#allocation13 + $0x58] sm:$0xf]
        %v2644 = vld [vmem:[#allocation13 + $0x5c] sm:$0xf]
        %v2645 = vld [vmem:[#allocation13 + $0x60] sm:$0xf]
        %v2646 = vld [vmem:[#allocation13 + $0x64] sm:$0xf]
        %v2647 = vld [vmem:[#allocation13 + $0x68] sm:$0xf]
        %v2648 = vld [vmem:[#allocation13 + $0x6c] sm:$0xf]
        %v2649 = vld [vmem:[#allocation13 + $0x70] sm:$0xf]
        %v2650 = vld [vmem:[#allocation13 + $0x74] sm:$0xf]
        %v2651 = vld [vmem:[#allocation13 + $0x78] sm:$0xf]
        %v2652 = vld [vmem:[#allocation13 + $0x7c] sm:$0xf]
        %v2653 = vld [vmem:[%s17] sm:$0x1]
        %v2655 = vperm.slane %v2653, 0
        %v2689 = vunpack.c.l.b16 %v2621
        %v2690 = vunpack.c.l.b16 %v2622
        %v2691 = vunpack.c.l.b16 %v2623
        %v2692 = vunpack.c.l.b16 %v2624
        %v2693 = vunpack.c.l.b16 %v2625
        %v2694 = vunpack.c.l.b16 %v2626
        %v2695 = vunpack.c.l.b16 %v2627
        %v2696 = vunpack.c.l.b16 %v2628
        %v2697 = vunpack.c.l.b16 %v2629
        %v2698 = vunpack.c.l.b16 %v2630
        %v2699 = vunpack.c.l.b16 %v2631
        %v2700 = vunpack.c.l.b16 %v2632
        %v2701 = vunpack.c.l.b16 %v2633
        %v2702 = vunpack.c.l.b16 %v2634
        %v2703 = vunpack.c.l.b16 %v2635
        %v2704 = vunpack.c.l.b16 %v2636
        %v2705 = vunpack.c.l.b16 %v2637
        %v2706 = vunpack.c.l.b16 %v2638
        %v2707 = vunpack.c.l.b16 %v2639
        %v2708 = vunpack.c.l.b16 %v2640
        %v2709 = vunpack.c.l.b16 %v2641
        %v2710 = vunpack.c.l.b16 %v2642
        %v2711 = vunpack.c.l.b16 %v2643
        %v2712 = vunpack.c.l.b16 %v2644
        %v2713 = vunpack.c.l.b16 %v2645
        %v2714 = vunpack.c.l.b16 %v2646
        %v2715 = vunpack.c.l.b16 %v2647
        %v2716 = vunpack.c.l.b16 %v2648
        %v2717 = vunpack.c.l.b16 %v2649
        %v2718 = vunpack.c.l.b16 %v2650
        %v2719 = vunpack.c.l.b16 %v2651
        %v2720 = vunpack.c.l.b16 %v2652
        %v2721 = vpack.c.b16 %v2690, %v2689
        %v2722 = vpack.c.b16 %v2692, %v2691
        %v2723 = vpack.c.b16 %v2694, %v2693
        %v2724 = vpack.c.b16 %v2696, %v2695
        %v2725 = vpack.c.b16 %v2698, %v2697
        %v2726 = vpack.c.b16 %v2700, %v2699
        %v2727 = vpack.c.b16 %v2702, %v2701
        %v2728 = vpack.c.b16 %v2704, %v2703
        %v2729 = vpack.c.b16 %v2706, %v2705
        %v2730 = vpack.c.b16 %v2708, %v2707
        %v2731 = vpack.c.b16 %v2710, %v2709
        %v2732 = vpack.c.b16 %v2712, %v2711
        %v2733 = vpack.c.b16 %v2714, %v2713
        %v2734 = vpack.c.b16 %v2716, %v2715
        %v2735 = vpack.c.b16 %v2718, %v2717
        %v2736 = vpack.c.b16 %v2720, %v2719
        %2753 = vmatpush.bf16.msra.mxu0 %v2728
        %2754 = vmatpush.bf16.msra.mxu0 %v2727
        %2755 = vmatpush.bf16.msra.mxu0 %v2726
        %2756 = vmatpush.bf16.msra.mxu0 %v2725
        %2757 = vmatpush.bf16.msra.mxu0 %v2724
        %2758 = vmatpush.bf16.msra.mxu0 %v2723
        %2759 = vmatpush.bf16.msra.mxu0 %v2722
        %2760 = vmatpush.bf16.msra.mxu0 %v2721
        %2761 = vmatmul.bf16.gmra.mxu0 %v2617
        %v2762 = vpop.f32.mrf.mxu0
        %v2763 = vadd.f32 %v2655, %v2762
        %v2764 = vpop.f32.mrf.mxu0
        %v2765 = vadd.f32 %v2655, %v2764
        %2766 = vmatmul.bf16.gmra.mxu0 %v2619
        %v2767 = vpop.f32.mrf.mxu0
        %v2768 = vadd.f32 %v2655, %v2767
        %v2769 = vpop.f32.mrf.mxu0
        %v2770 = vadd.f32 %v2655, %v2769
        %2771 = vdwg.mxu0
        %2772 = vmatpush.bf16.msra.mxu0 %v2736
        %2773 = vmatpush.bf16.msra.mxu0 %v2735
        %2774 = vmatpush.bf16.msra.mxu0 %v2734
        %2775 = vmatpush.bf16.msra.mxu0 %v2733
        %2776 = vmatpush.bf16.msra.mxu0 %v2732
        %2777 = vmatpush.bf16.msra.mxu0 %v2731
        %2778 = vmatpush.bf16.msra.mxu0 %v2730
        %2779 = vmatpush.bf16.msra.mxu0 %v2729
        %2780 = vmatmul.bf16.gmra.mxu0 %v2618
        %v2781 = vpop.f32.mrf.mxu0
        %v2782 = vadd.f32 %v2763, %v2781
        %v2783 = vpop.f32.mrf.mxu0
        %v2784 = vadd.f32 %v2765, %v2783
        %2785 = vmatmul.bf16.gmra.mxu0 %v2620
        %v2786 = vpop.f32.mrf.mxu0
        %v2787 = vadd.f32 %v2768, %v2786
        %v2788 = vpop.f32.mrf.mxu0
        %v2789 = vadd.f32 %v2770, %v2788
        %2790 = vdwg.mxu0
        %v2791 = vadd.f32 %v2782, %v2023
        %v2792 = vadd.f32 %v2784, %v2024
        %v2793 = vadd.f32 %v2787, %v2025
        %v2794 = vadd.f32 %v2789, %v2026
        %v2795 = vld [vmem:[%s18] sm:$0x1]
        %v2796 = vld [vmem:[%s19] sm:$0x1]
        %2797 = vadd.xlane.f32.xlu0 %v2791
        %v2798 = vpop.xlane.xlu0 %2797
        %2799 = vadd.xlane.f32.xlu0 %v2792
        %v2800 = vpop.xlane.xlu0 %2799
        %2801 = vadd.xlane.f32.xlu0 %v2793
        %v2802 = vpop.xlane.xlu0 %2801
        %2803 = vadd.xlane.f32.xlu0 %v2794
        %v2804 = vpop.xlane.xlu0 %2803
        %v2805 = vmul.f32 %v2798, %v822
        %v2806 = vmul.f32 %v2800, %v822
        %v2807 = vmul.f32 %v2802, %v822
        %v2808 = vmul.f32 %v2804, %v822
        %v2809 = vsub.f32 %v2791, %v2805
        %v2810 = vsub.f32 %v2792, %v2806
        %v2811 = vsub.f32 %v2793, %v2807
        %v2812 = vsub.f32 %v2794, %v2808
        %v2813 = vmul.f32 %v2809, %v2809
        %v2814 = vmul.f32 %v2810, %v2810
        %v2815 = vmul.f32 %v2811, %v2811
        %v2816 = vmul.f32 %v2812, %v2812
        %2817 = vadd.xlane.f32.xlu0 %v2813
        %v2818 = vpop.xlane.xlu0 %2817
        %2819 = vadd.xlane.f32.xlu0 %v2814
        %v2820 = vpop.xlane.xlu0 %2819
        %2821 = vadd.xlane.f32.xlu0 %v2815
        %v2822 = vpop.xlane.xlu0 %2821
        %2823 = vadd.xlane.f32.xlu0 %v2816
        %v2824 = vpop.xlane.xlu0 %2823
        %v2825 = vmul.f32 %v2818, %v822
        %v2826 = vmul.f32 %v2820, %v822
        %v2827 = vmul.f32 %v2822, %v822
        %v2828 = vmul.f32 %v2824, %v822
        %v2829 = vadd.f32 %v2825, 1e-05
        %v2830 = vadd.f32 %v2826, 1e-05
        %v2831 = vadd.f32 %v2827, 1e-05
        %v2832 = vadd.f32 %v2828, 1e-05
        %v2833 = vrsqrt.pop %v2829
        %v2834 = vmul.f32 %v2833, %v2829
        %v2835 = vmul.f32 %v2834, %v2833
        %v2836 = vmul.f32 0.5, %v2835
        %v2837 = vsub.f32 1.5, %v2836
        %v2838 = vmul.f32 %v2833, %v2837
        %vm2839 = vweird.f32 %v2829
        %vm2840 = vweird.f32 %v2833
        %vm2841 = vmor %vm2839, %vm2840
        %v2842 = vsel %vm2841, %v2833, %v2838
        %v2843 = vrsqrt.pop %v2830
        %v2844 = vmul.f32 %v2843, %v2830
        %v2845 = vmul.f32 %v2844, %v2843
        %v2846 = vmul.f32 0.5, %v2845
        %v2847 = vsub.f32 1.5, %v2846
        %v2848 = vmul.f32 %v2843, %v2847
        %vm2849 = vweird.f32 %v2830
        %vm2850 = vweird.f32 %v2843
        %vm2851 = vmor %vm2849, %vm2850
        %v2852 = vsel %vm2851, %v2843, %v2848
        %v2853 = vrsqrt.pop %v2831
        %v2854 = vmul.f32 %v2853, %v2831
        %v2855 = vmul.f32 %v2854, %v2853
        %v2856 = vmul.f32 0.5, %v2855
        %v2857 = vsub.f32 1.5, %v2856
        %v2858 = vmul.f32 %v2853, %v2857
        %vm2859 = vweird.f32 %v2831
        %vm2860 = vweird.f32 %v2853
        %vm2861 = vmor %vm2859, %vm2860
        %v2862 = vsel %vm2861, %v2853, %v2858
        %v2863 = vrsqrt.pop %v2832
        %v2864 = vmul.f32 %v2863, %v2832
        %v2865 = vmul.f32 %v2864, %v2863
        %v2866 = vmul.f32 0.5, %v2865
        %v2867 = vsub.f32 1.5, %v2866
        %v2868 = vmul.f32 %v2863, %v2867
        %vm2869 = vweird.f32 %v2832
        %vm2870 = vweird.f32 %v2863
        %vm2871 = vmor %vm2869, %vm2870
        %v2872 = vsel %vm2871, %v2863, %v2868
        %v2873 = vmul.f32 %v2809, %v2842
        %v2874 = vmul.f32 %v2810, %v2852
        %v2875 = vmul.f32 %v2811, %v2862
        %v2876 = vmul.f32 %v2812, %v2872
        %v2878 = vperm.slane %v2795, 0
        %v2880 = vmul.f32 %v2873, %v2878
        %v2881 = vmul.f32 %v2874, %v2878
        %v2882 = vmul.f32 %v2875, %v2878
        %v2883 = vmul.f32 %v2876, %v2878
        %v2885 = vperm.slane %v2796, 0
        %v2887 = vadd.f32 %v2880, %v2885
        %v2888 = vadd.f32 %v2881, %v2885
        %v2889 = vadd.f32 %v2882, %v2885
        %v2890 = vadd.f32 %v2883, %v2885
        %2891 = vst [vmem:[%s768] sm:$0xff] %v2887
        %2892 = vst [vmem:[%s768 + $0x8] sm:$0xff] %v2888
        %2893 = vst [vmem:[%s768 + $0x10] sm:$0xff] %v2889
        %2894 = vst [vmem:[%s768 + $0x18] sm:$0xff] %v2890
        %s2895 = sand.u32 %s492, 1
        %s2896 = scalar_lea.sflag [#allocation4], %s2895
        %s2897 = sand.u32 %s492, 1
        %s2898 = smul.addr %s2897, 32
        %s2899 = scalar_lea.vmem [#allocation14], %s2898
        // Predicated region
        $region129: #{tpu_custom_call.1} parent=99 // pred_check
          %p2900 = pneg %p502
        $region130: #{tpu_custom_call.1} parent=99 // pred_check_branch
          %2902 = sbr.rel (%p2900) target = $region132
        $region131: #{tpu_custom_call.1} parent=99 // pred_region
          %s2903 = smul.u32 4, %s43
          %2905 = vsyncadd %s2896, 0
          %s2906 = smul.addr %s42, 8
          %s2907 = sadd.s32 %s2903, %s2906
          %s2908 = smul.addr %s2907, 8
          %s2909 = scalar_lea.hbm %s20, %s2908
          %s2910 = sshll.u32 %s2899, 4
          %s2911 = int_to_ptr.vmem [resolvable:$true] %s2910
          %s2912 = sshll.u32 %s2909, 4
          %s2913 = int_to_ptr.hbm [resolvable:$true] %s2912
          %2918 = dma.vmem_to_hbm [thread:$0]  %s2911, 512, %s2913, %s2896, 128, 128, 8
        $region132: #{tpu_custom_call.1} parent=99 // pred_fallthru
          _
      $region100: #{tpu_custom_call.1} parent=5 // pred_fallthru
        _
      %p2919 = scmp.le.s32.totalorder 2, %s33
      // Predicated region
      $region133: #{tpu_custom_call.1} parent=5 // pred_check
        %p2920 = pneg %p2919
      $region134: #{tpu_custom_call.1} parent=5 // pred_check_branch
        %2922 = sbr.rel (%p2920) target = $region136
      $region135: #{tpu_custom_call.1} parent=5 // pred_region
        %s2923 = ssub.s32 %s33, 2
        // Predicated region
        $region137: #{tpu_custom_call.1} parent=135 // pred_check
          %p2924 = pneg %p508
        $region138: #{tpu_custom_call.1} parent=135 // pred_check_branch
          %2926 = sbr.rel (%p2924) target = $region140
        $region139: #{tpu_custom_call.1} parent=135 // pred_region
          %s2927 = sand.u32 %s493, 1
          %s2928 = scalar_lea.sflag [#allocation4], %s2927
          %s2929 = sand.u32 %s493, 1
          %s2930 = smul.addr %s2929, 32
          %s2931 = scalar_lea.vmem [#allocation14], %s2930
          %2933 = dma.done %s2928, 512
        $region140: #{tpu_custom_call.1} parent=135 // pred_fallthru
          _
      $region136: #{tpu_custom_call.1} parent=5 // pred_fallthru
        _
    $region6: #{tpu_custom_call.1} parent=1 // loop_footer
      %s37 = sadd.s32 1, %s33
    $region7: #{tpu_custom_call.1} parent=1 // loop_footer_branch
      %32 = sbr.rel target = $region3
    $region8: #{tpu_custom_call.1} parent=1 // loop_exit
      _
    %2934 = vsyncpa [#allocation3], 1
    %s2935 = scalar_lea.sflag [#allocation3], 1
    %2936 = vsyncpa %s2935, 1
    %2937 = vsyncpa [#allocation6], 1
    %2938 = vsyncpa [#allocation9], 1
    %2939 = vsyncpa [#allocation12], 1
    %2940 = vsyncpa [#allocation4], 1
    %s2941 = scalar_lea.sflag [#allocation4], 1
    %2942 = vsyncpa %s2941, 1

</llo_original>
